<compile_context>
chip_gen: v7x
topology: tpu7x:2x2x1
jax: 0.10.0
libtpu: 0.0.40
codegen_flags: <defaults>
</compile_context>

<pallas_src>
import math
import functools

import jax
import jax.numpy as jnp
from jax.experimental import pallas as pl
from jax.experimental.pallas import tpu as pltpu

_LANE_TILES = (1536, 1280, 1024, 768, 640, 512, 384, 256, 128)  # lane-dim tiles
_SUB_TILES = (512, 256, 128, 64, 32, 16, 8)                      # sublane tiles
_VMEM_LIMIT = 32 * 1024 * 1024   # safe on v5e/v6e/v7x; our tiles stay far below


def _pick_tile(n, candidates):
    """Largest candidate tile that divides n, else the full extent."""
    for t in candidates:
        if n % t == 0:
            return t
    return n


# --------------------------- plain tiled matmul ----------------------------

def _mm_kernel(x_ref, w_ref, o_ref, acc_ref):
    @pl.when(pl.program_id(2) == 0)
    def _():
        acc_ref[...] = jnp.zeros_like(acc_ref)
    acc_ref[...] += jnp.dot(x_ref[...].astype(jnp.bfloat16), w_ref[...],
                            preferred_element_type=jnp.float32)

    @pl.when(pl.program_id(2) == pl.num_programs(2) - 1)
    def _():
        o_ref[...] = acc_ref[...]


def pallas_matmul(x, w):
    """y = x @ w ; x: (M, K) f32, w: (K, N) bf16 -> (M, N) f32."""
    M, K = x.shape
    K2, N = w.shape
    assert K == K2
    tm = _pick_tile(M, _SUB_TILES)
    tn = _pick_tile(N, _LANE_TILES)
    tk = _pick_tile(K, _LANE_TILES)
    grid = (M // tm, N // tn, K // tk)
    return pl.pallas_call(
        _mm_kernel,
        out_shape=jax.ShapeDtypeStruct((M, N), jnp.float32),
        grid=grid,
        in_specs=[pl.BlockSpec((tm, tk), lambda i, j, k: (i, k)),
                  pl.BlockSpec((tk, tn), lambda i, j, k: (k, j))],
        out_specs=pl.BlockSpec((tm, tn), lambda i, j, k: (i, j)),
        scratch_shapes=[pltpu.VMEM((tm, tn), jnp.float32)],
        compiler_params=pltpu.CompilerParams(
            dimension_semantics=("parallel", "parallel", "arbitrary"),
            vmem_limit_bytes=_VMEM_LIMIT),
    )(x, w)


# ----------------------- RMSNorm fused into a matmul ------------------------

def _mm_norm_kernel(x_ref, nw_ref, w_ref, o_ref, *, eps):
    x = x_ref[...]                                        # (tm, K) f32
    ms = jnp.mean(x * x, axis=-1, keepdims=True)
    xn = (x * jax.lax.rsqrt(ms + eps)) * nw_ref[...]      # f32 norm math
    o_ref[...] = jnp.dot(xn.astype(jnp.bfloat16), w_ref[...],
                         preferred_element_type=jnp.float32)


def pallas_rmsnorm_matmul(x, norm_w, w, *, eps=1e-6):
    """(RMSNorm(x) * norm_w) @ w ; x: (M, K) f32, w: (K, N) bf16 -> f32.

    RMSNorm needs the full row, so the K axis is kept un-tiled (fine for
    dim-sized K).  N is tiled lane-dense (>=512 where the shape allows)."""
    M, K = x.shape
    K2, N = w.shape
    assert K == K2
    tm = _pick_tile(M, _SUB_TILES)
    tn = _pick_tile(N, _LANE_TILES)
    grid = (M // tm, N // tn)
    return pl.pallas_call(
        functools.partial(_mm_norm_kernel, eps=eps),
        out_shape=jax.ShapeDtypeStruct((M, N), jnp.float32),
        grid=grid,
        in_specs=[pl.BlockSpec((tm, K), lambda i, j: (i, 0)),
                  pl.BlockSpec((1, K), lambda i, j: (0, 0)),
                  pl.BlockSpec((K, tn), lambda i, j: (0, j))],
        out_specs=pl.BlockSpec((tm, tn), lambda i, j: (i, j)),
        compiler_params=pltpu.CompilerParams(
            dimension_semantics=("parallel", "parallel"),
            vmem_limit_bytes=_VMEM_LIMIT),
    )(x, norm_w.reshape(1, K), w)


# --------------------- SiLU gate fused into the w2 matmul -------------------

def _mm_gate_kernel(a_ref, g_ref, w_ref, o_ref, acc_ref):
    @pl.when(pl.program_id(2) == 0)
    def _():
        acc_ref[...] = jnp.zeros_like(acc_ref)
    a = a_ref[...]                                        # f32
    silu = a * pl.reciprocal(1.0 + jnp.exp(-a), approx=True)   # exp+rcp on EUP
    x = (silu * g_ref[...]).astype(jnp.bfloat16)
    acc_ref[...] += jnp.dot(x, w_ref[...], preferred_element_type=jnp.float32)

    @pl.when(pl.program_id(2) == pl.num_programs(2) - 1)
    def _():
        o_ref[...] = acc_ref[...]


def pallas_silu_matmul(ag, w, *, hidden):
    """(silu(ag[:, :hidden]) * ag[:, hidden:]) @ w ; ag f32, w bf16 -> f32.

    ag is passed twice with different index_maps so no host-side split copy
    is materialized."""
    M, H2 = ag.shape
    assert H2 == 2 * hidden
    K, N = w.shape
    assert K == hidden
    tm = _pick_tile(M, _SUB_TILES)
    tn = _pick_tile(N, _LANE_TILES)
    tk = _pick_tile(hidden, _LANE_TILES)
    goff = hidden // tk
    grid = (M // tm, N // tn, hidden // tk)
    return pl.pallas_call(
        _mm_gate_kernel,
        out_shape=jax.ShapeDtypeStruct((M, N), jnp.float32),
        grid=grid,
        in_specs=[pl.BlockSpec((tm, tk), lambda i, j, k: (i, k)),
                  pl.BlockSpec((tm, tk), lambda i, j, k: (i, k + goff)),
                  pl.BlockSpec((tk, tn), lambda i, j, k: (k, j))],
        out_specs=pl.BlockSpec((tm, tn), lambda i, j, k: (i, j)),
        scratch_shapes=[pltpu.VMEM((tm, tn), jnp.float32)],
        compiler_params=pltpu.CompilerParams(
            dimension_semantics=("parallel", "parallel", "arbitrary"),
            vmem_limit_bytes=_VMEM_LIMIT),
    )(ag, ag, w)


# -------- attention: RoPE + causal mask + softmax fused, all heads/step -----

def _attention_kernel(qkv_ref, cos_ref, sin_ref, o_ref, *, n_heads, scale):
    S, D = o_ref.shape[1], o_ref.shape[2]
    hd = D // n_heads
    qkv = qkv_ref[0]                                      # (S, 3D) f32
    q, k, v = qkv[:, :D], qkv[:, D:2 * D], qkv[:, 2 * D:]

    # Interleaved RoPE: out = x*cos + swap_pairs(x)*sin_signed, where
    # swap_pairs exchanges lanes (2i, 2i+1).  The swap is done as x @ P with
    # P[r, c] = 1 iff c == r XOR 1 (exact permutation, rides the MXU).
    r = jax.lax.broadcasted_iota(jnp.int32, (D, D), 0)
    c = jax.lax.broadcasted_iota(jnp.int32, (D, D), 1)
    perm = (c == (r + 1 - 2 * (r % 2))).astype(jnp.float32)
    cos = cos_ref[...]
    sin = sin_ref[...]

    def rope(x):
        swapped = jnp.dot(x, perm, preferred_element_type=jnp.float32)
        return x * cos + swapped * sin

    qr = rope(q)
    kr = rope(k)

    # Causal mask built in-kernel (no (S,S) HBM mask traffic per head).
    row = jax.lax.broadcasted_iota(jnp.int32, (S, S), 0)
    col = jax.lax.broadcasted_iota(jnp.int32, (S, S), 1)
    causal = col <= row

    outs = []
    for h in range(n_heads):                              # static unroll
        sl = slice(h * hd, (h + 1) * hd)
        qh = qr[:, sl].astype(jnp.bfloat16)
        kh = kr[:, sl].astype(jnp.bfloat16)
        vh = v[:, sl].astype(jnp.bfloat16)
        s = jnp.dot(qh, kh.T, preferred_element_type=jnp.float32) * scale
        s = jnp.where(causal, s, -1e30)
        m = jnp.max(s, axis=-1, keepdims=True)
        p = jnp.exp(s - m)                                # f32 softmax math
        l = jnp.sum(p, axis=-1, keepdims=True)
        oh = jnp.dot(p.astype(jnp.bfloat16), vh,
                     preferred_element_type=jnp.float32)
        outs.append(oh * pl.reciprocal(l, approx=True))
    # One lane-dense (S, D) store for all heads.
    o_ref[0] = jnp.concatenate(outs, axis=-1)
    # TODO(synk): for long sequences (S >> a few hundred) switch to a
    # flash-style online-softmax with a KV grid axis to bound VMEM.


def pallas_attention(qkv, cos_f, sin_f, *, n_heads, scale):
    """qkv: (B, S, 3*D) f32 (fused QKV proj), cos/sin: (S, D) -> (B, S, D)."""
    B, S, D3 = qkv.shape
    D = D3 // 3
    return pl.pallas_call(
        functools.partial(_attention_kernel, n_heads=n_heads, scale=scale),
        out_shape=jax.ShapeDtypeStruct((B, S, D), jnp.float32),
        grid=(B,),
        in_specs=[pl.BlockSpec((1, S, D3), lambda b: (b, 0, 0)),
                  pl.BlockSpec((S, D), lambda b: (0, 0)),
                  pl.BlockSpec((S, D), lambda b: (0, 0))],
        out_specs=pl.BlockSpec((1, S, D), lambda b: (b, 0, 0)),
        compiler_params=pltpu.CompilerParams(
            dimension_semantics=("parallel",),
            vmem_limit_bytes=_VMEM_LIMIT),
    )(qkv, cos_f, sin_f)


# ------------------------------ model (glue) -------------------------------

def precompute_rope(head_dim, n_heads, max_seq_len, theta=10000.0):
    """cos/sin tables pre-expanded to (T, dim) for the interleaved RoPE."""
    freqs = 1.0 / theta ** (jnp.arange(0, head_dim, 2)[: head_dim // 2]
                            .astype(jnp.float32) / head_dim)
    t = jnp.arange(max_seq_len, dtype=jnp.float32)
    ang = jnp.outer(t, freqs)                             # (T, hd//2)
    cos_il = jnp.repeat(jnp.cos(ang), 2, axis=-1)         # (T, hd)
    sin_il = jnp.repeat(jnp.sin(ang), 2, axis=-1)
    sign = jnp.tile(jnp.array([-1.0, 1.0], jnp.float32), head_dim // 2)
    cos_f = jnp.tile(cos_il, (1, n_heads))                # (T, dim)
    sin_f = jnp.tile(sin_il * sign[None, :], (1, n_heads))
    return cos_f, sin_f


def init_params(key, *, dim, n_heads, n_layers, hidden_dim, vocab_size,
                max_seq_len):
    std = 0.02
    keys = jax.random.split(key, 2 + n_layers * 7)
    params = {}
    params['emb'] = jax.random.normal(keys[0], (vocab_size, dim),
                                      jnp.float32) * std
    # nn.Linear weight (out, in) init N(0, 0.02); stored transposed, bf16.
    params['out_w'] = ((jax.random.normal(keys[1], (vocab_size, dim),
                                          jnp.float32) * std)
                       .T.astype(jnp.bfloat16))
    layers = []
    for l in range(n_layers):
        k = keys[2 + l * 7: 2 + (l + 1) * 7]
        wq = (jax.random.normal(k[0], (dim, dim), jnp.float32) * std).T
        wk = (jax.random.normal(k[1], (dim, dim), jnp.float32) * std).T
        wv = (jax.random.normal(k[2], (dim, dim), jnp.float32) * std).T
        wo = (jax.random.normal(k[3], (dim, dim), jnp.float32) * std).T
        w1 = (jax.random.normal(k[4], (hidden_dim, dim), jnp.float32) * std).T
        w2 = (jax.random.normal(k[5], (dim, hidden_dim), jnp.float32) * std).T
        w3 = (jax.random.normal(k[6], (hidden_dim, dim), jnp.float32) * std).T
        layer = {
            'wqkv': jnp.concatenate([wq, wk, wv], axis=1).astype(jnp.bfloat16),
            'wo': wo.astype(jnp.bfloat16),
            'w13': jnp.concatenate([w1, w3], axis=1).astype(jnp.bfloat16),
            'w2': w2.astype(jnp.bfloat16),
            # FeedForward biases are zero-initialized -> numerically a no-op.
            'attn_norm': jnp.ones((dim,), jnp.float32),
            'ffn_norm': jnp.ones((dim,), jnp.float32),
        }
        layers.append(layer)
    params['layers'] = layers
    params['norm'] = jnp.ones((dim,), jnp.float32)
    cos_f, sin_f = precompute_rope(dim // n_heads, n_heads, max_seq_len)
    params['rope_cos'] = cos_f
    params['rope_sin'] = sin_f
    return params


def llama_forward(tokens, params, *, dim, n_heads):
    B, S = tokens.shape
    hd = dim // n_heads
    scale = 1.0 / math.sqrt(hd)
    hidden = params['layers'][0]['w2'].shape[0]

    h = jnp.take(params['emb'], tokens, axis=0)           # (B, S, D) f32
    cos_f = params['rope_cos'][:S]
    sin_f = params['rope_sin'][:S]

    for layer in params['layers']:
        # --- attention block: fused RMSNorm+QKV, fused RoPE/mask/softmax ---
        x2 = h.reshape(B * S, dim)
        qkv = pallas_rmsnorm_matmul(x2, layer['attn_norm'], layer['wqkv'])
        attn = pallas_attention(qkv.reshape(B, S, 3 * dim), cos_f, sin_f,
                                n_heads=n_heads, scale=scale)  # (B, S, D)
        attn_out = pallas_matmul(attn.reshape(B * S, dim), layer['wo'])
        h = h + attn_out.reshape(B, S, dim)

        # --- feed-forward block: fused RMSNorm+w1/w3, fused SiLU-gate+w2 ---
        ag = pallas_rmsnorm_matmul(h.reshape(B * S, dim), layer['ffn_norm'],
                                   layer['w13'])               # (M, 2*hidden)
        ff = pallas_silu_matmul(ag, layer['w2'], hidden=hidden)
        h = h + ff.reshape(B, S, dim)

    logits = pallas_rmsnorm_matmul(h.reshape(B * S, dim), params['norm'],
                                   params['out_w'])            # (M, vocab)
    vocab = params['out_w'].shape[1]
    # targets=None path of the PyTorch forward -> loss is None
    return logits.reshape(B, S, vocab), None
    # TODO(synk): cross-entropy loss (targets path) not implemented; forward
    # with targets=None only.


# ---------------------------------- main -----------------------------------

if __name__ == "__main__":
    # Small config consistent with the module (vocab_size hard-coded to 32000).
    DIM = 128
    N_HEADS = 4
    N_LAYERS = 3
    HIDDEN = 256
    VOCAB = 32000
    MAX_SEQ = 16
    B, S = 2, 8

    key = jax.random.PRNGKey(0)
    pkey, tkey = jax.random.split(key)
    params = init_params(pkey, dim=DIM, n_heads=N_HEADS, n_layers=N_LAYERS,
                         hidden_dim=HIDDEN, vocab_size=VOCAB,
                         max_seq_len=MAX_SEQ)
    tokens = jax.random.randint(tkey, (B, S), 0, VOCAB, dtype=jnp.int32)

    fwd = jax.jit(functools.partial(llama_forward, dim=DIM, n_heads=N_HEADS))
    logits, loss = fwd(tokens, params)
    logits = jax.block_until_ready(logits)
    assert logits.shape == (B, S, VOCAB)
    assert logits.dtype == jnp.float32
    assert bool(jnp.all(jnp.isfinite(logits)))
    print("KERNEL_OK")
</pallas_src>

<mosaic_0001>
module attributes {stable_mosaic.version = 11 : i64} {
  func.func @_mm_norm_kernel(%arg0: i32, %arg1: i32, %arg2: memref<16x128xf32, #tpu.memory_space<vmem>>, %arg3: memref<1x128xf32, #tpu.memory_space<vmem>>, %arg4: memref<128x384xbf16, #tpu.memory_space<vmem>>, %arg5: memref<16x384xf32, #tpu.memory_space<vmem>>) attributes {dimension_semantics = [#tpu.dimension_semantics<parallel>, #tpu.dimension_semantics<parallel>], iteration_bounds = array<i64: 1, 1>, scalar_prefetch = 0 : i64, scratch_operands = 0 : i64, tpu.core_type = #tpu.core_type<tc>, window_params = [{transform_indices = @transform_0, window_bounds = array<i64: 16, 128>}, {pipeline_mode = #tpu.pipeline_mode<synchronous>, transform_indices = @transform_1, window_bounds = array<i64: 1, 128>}, {transform_indices = @transform_2, window_bounds = array<i64: 128, 384>}, {transform_indices = @transform_3, window_bounds = array<i64: 16, 384>}]} {
    %c0 = arith.constant 0 : index
    %c0_0 = arith.constant 0 : index
    %0 = vector.load %arg2[%c0, %c0_0] : memref<16x128xf32, #tpu.memory_space<vmem>>, vector<16x128xf32>
    %1 = arith.mulf %0, %0 : vector<16x128xf32>
    %cst = arith.constant dense<0.000000e+00> : vector<16xf32>
    %2 = vector.multi_reduction <add>, %1, %cst [1] : vector<16x128xf32> to vector<16xf32>
    %3 = vector.shape_cast %2 : vector<16xf32> to vector<16x1xf32>
    %cst_1 = arith.constant 1.280000e+02 : f32
    %4 = vector.broadcast %cst_1 : f32 to vector<16x1xf32>
    %5 = arith.divf %3, %4 : vector<16x1xf32>
    %cst_2 = arith.constant 9.99999997E-7 : f32
    %6 = vector.broadcast %cst_2 : f32 to vector<16x1xf32>
    %7 = arith.addf %5, %6 : vector<16x1xf32>
    %8 = math.rsqrt %7 : vector<16x1xf32>
    %9 = vector.broadcast %8 : vector<16x1xf32> to vector<16x128xf32>
    %10 = arith.mulf %0, %9 : vector<16x128xf32>
    %c0_3 = arith.constant 0 : index
    %c0_4 = arith.constant 0 : index
    %11 = vector.load %arg3[%c0_3, %c0_4] : memref<1x128xf32, #tpu.memory_space<vmem>>, vector<1x128xf32>
    %12 = vector.broadcast %11 : vector<1x128xf32> to vector<16x128xf32>
    %13 = arith.mulf %10, %12 : vector<16x128xf32>
    %14 = arith.truncf %13 : vector<16x128xf32> to vector<16x128xbf16>
    %c0_5 = arith.constant 0 : index
    %c0_6 = arith.constant 0 : index
    %15 = vector.load %arg4[%c0_5, %c0_6] : memref<128x384xbf16, #tpu.memory_space<vmem>>, vector<128x384xbf16>
    %cst_7 = arith.constant dense<0.000000e+00> : vector<16x384xf32>
    %16 = tpu.matmul %14, %15, %cst_7 {dimension_numbers = #tpu.dot_dimension_numbers<[1], [0], [0], [1], [0, 0, 1, 1], [], []>} : vector<16x128xbf16>, vector<128x384xbf16>, vector<16x384xf32> -> vector<16x384xf32>
    %c0_8 = arith.constant 0 : index
    %c0_9 = arith.constant 0 : index
    %17 = vector.load %arg5[%c0_8, %c0_9] : memref<16x384xf32, #tpu.memory_space<vmem>>, vector<16x384xf32>
    tpu.vector_store %arg5[%c0_8, %c0_9], %16 {strides = array<i32>} : memref<16x384xf32, #tpu.memory_space<vmem>>, vector<16x384xf32>,
    return
  }
  func.func @transform_0(%arg0: i32, %arg1: i32) -> (i32, i32) {
    %c0_i32 = arith.constant 0 : i32
    %c0_i32_0 = arith.constant 0 : i32
    return %arg0, %c0_i32 : i32, i32
  }
  func.func @transform_1(%arg0: i32, %arg1: i32) -> (i32, i32) {
    %c0_i32 = arith.constant 0 : i32
    %c0_i32_0 = arith.constant 0 : i32
    %c0_i32_1 = arith.constant 0 : i32
    return %c0_i32, %c0_i32_0 : i32, i32
  }
  func.func @transform_2(%arg0: i32, %arg1: i32) -> (i32, i32) {
    %c0_i32 = arith.constant 0 : i32
    %c0_i32_0 = arith.constant 0 : i32
    return %c0_i32, %arg1 : i32, i32
  }
  func.func @transform_3(%arg0: i32, %arg1: i32) -> (i32, i32) {
    %c0_i32 = arith.constant 0 : i32
    return %arg0, %arg1 : i32, i32
  }
}

module attributes {stable_mosaic.version = 11 : i64} {
  func.func @_mm_norm_kernel(%arg0: i32, %arg1: i32, %arg2: memref<16x128xf32, #tpu.memory_space<vmem>>, %arg3: memref<1x128xf32, #tpu.memory_space<vmem>>, %arg4: memref<128x512xbf16, #tpu.memory_space<vmem>>, %arg5: memref<16x512xf32, #tpu.memory_space<vmem>>) attributes {dimension_semantics = [#tpu.dimension_semantics<parallel>, #tpu.dimension_semantics<parallel>], iteration_bounds = array<i64: 1, 1>, scalar_prefetch = 0 : i64, scratch_operands = 0 : i64, tpu.core_type = #tpu.core_type<tc>, window_params = [{transform_indices = @transform_0, window_bounds = array<i64: 16, 128>}, {pipeline_mode = #tpu.pipeline_mode<synchronous>, transform_indices = @transform_1, window_bounds = array<i64: 1, 128>}, {transform_indices = @transform_2, window_bounds = array<i64: 128, 512>}, {transform_indices = @transform_3, window_bounds = array<i64: 16, 512>}]} {
    %c0 = arith.constant 0 : index
    %c0_0 = arith.constant 0 : index
    %0 = vector.load %arg2[%c0, %c0_0] : memref<16x128xf32, #tpu.memory_space<vmem>>, vector<16x128xf32>
    %1 = arith.mulf %0, %0 : vector<16x128xf32>
    %cst = arith.constant dense<0.000000e+00> : vector<16xf32>
    %2 = vector.multi_reduction <add>, %1, %cst [1] : vector<16x128xf32> to vector<16xf32>
    %3 = vector.shape_cast %2 : vector<16xf32> to vector<16x1xf32>
    %cst_1 = arith.constant 1.280000e+02 : f32
    %4 = vector.broadcast %cst_1 : f32 to vector<16x1xf32>
    %5 = arith.divf %3, %4 : vector<16x1xf32>
    %cst_2 = arith.constant 9.99999997E-7 : f32
    %6 = vector.broadcast %cst_2 : f32 to vector<16x1xf32>
    %7 = arith.addf %5, %6 : vector<16x1xf32>
    %8 = math.rsqrt %7 : vector<16x1xf32>
    %9 = vector.broadcast %8 : vector<16x1xf32> to vector<16x128xf32>
    %10 = arith.mulf %0, %9 : vector<16x128xf32>
    %c0_3 = arith.constant 0 : index
    %c0_4 = arith.constant 0 : index
    %11 = vector.load %arg3[%c0_3, %c0_4] : memref<1x128xf32, #tpu.memory_space<vmem>>, vector<1x128xf32>
    %12 = vector.broadcast %11 : vector<1x128xf32> to vector<16x128xf32>
    %13 = arith.mulf %10, %12 : vector<16x128xf32>
    %14 = arith.truncf %13 : vector<16x128xf32> to vector<16x128xbf16>
    %c0_5 = arith.constant 0 : index
    %c0_6 = arith.constant 0 : index
    %15 = vector.load %arg4[%c0_5, %c0_6] : memref<128x512xbf16, #tpu.memory_space<vmem>>, vector<128x512xbf16>
    %cst_7 = arith.constant dense<0.000000e+00> : vector<16x512xf32>
    %16 = tpu.matmul %14, %15, %cst_7 {dimension_numbers = #tpu.dot_dimension_numbers<[1], [0], [0], [1], [0, 0, 1, 1], [], []>} : vector<16x128xbf16>, vector<128x512xbf16>, vector<16x512xf32> -> vector<16x512xf32>
    %c0_8 = arith.constant 0 : index
    %c0_9 = arith.constant 0 : index
    %17 = vector.load %arg5[%c0_8, %c0_9] : memref<16x512xf32, #tpu.memory_space<vmem>>, vector<16x512xf32>
    tpu.vector_store %arg5[%c0_8, %c0_9], %16 {strides = array<i32>} : memref<16x512xf32, #tpu.memory_space<vmem>>, vector<16x512xf32>,
    return
  }
  func.func @transform_0(%arg0: i32, %arg1: i32) -> (i32, i32) {
    %c0_i32 = arith.constant 0 : i32
    %c0_i32_0 = arith.constant 0 : i32
    return %arg0, %c0_i32 : i32, i32
  }
  func.func @transform_1(%arg0: i32, %arg1: i32) -> (i32, i32) {
    %c0_i32 = arith.constant 0 : i32
    %c0_i32_0 = arith.constant 0 : i32
    %c0_i32_1 = arith.constant 0 : i32
    return %c0_i32, %c0_i32_0 : i32, i32
  }
  func.func @transform_2(%arg0: i32, %arg1: i32) -> (i32, i32) {
    %c0_i32 = arith.constant 0 : i32
    %c0_i32_0 = arith.constant 0 : i32
    return %c0_i32, %arg1 : i32, i32
  }
  func.func @transform_3(%arg0: i32, %arg1: i32) -> (i32, i32) {
    %c0_i32 = arith.constant 0 : i32
    return %arg0, %arg1 : i32, i32
  }
}

module attributes {stable_mosaic.version = 11 : i64} {
  func.func @_attention_kernel(%arg0: i32, %arg1: memref<1x8x384xf32, #tpu.memory_space<vmem>>, %arg2: memref<8x128xf32, #tpu.memory_space<vmem>>, %arg3: memref<8x128xf32, #tpu.memory_space<vmem>>, %arg4: memref<1x8x128xf32, #tpu.memory_space<vmem>>) attributes {dimension_semantics = [#tpu.dimension_semantics<parallel>], iteration_bounds = array<i64: 2>, scalar_prefetch = 0 : i64, scratch_operands = 0 : i64, tpu.core_type = #tpu.core_type<tc>, window_params = [{transform_indices = @transform_0, window_bounds = array<i64: 1, 8, 384>}, {pipeline_mode = #tpu.pipeline_mode<synchronous>, transform_indices = @transform_1, window_bounds = array<i64: 8, 128>}, {pipeline_mode = #tpu.pipeline_mode<synchronous>, transform_indices = @transform_2, window_bounds = array<i64: 8, 128>}, {transform_indices = @transform_3, window_bounds = array<i64: 1, 8, 128>}]} {
    %c0 = arith.constant 0 : index
    %c0_0 = arith.constant 0 : index
    %c0_1 = arith.constant 0 : index
    %0 = vector.load %arg1[%c0, %c0_0, %c0_1] : memref<1x8x384xf32, #tpu.memory_space<vmem>>, vector<1x8x384xf32>
    %1 = vector.shape_cast %0 : vector<1x8x384xf32> to vector<8x384xf32>
    %2 = vector.extract_strided_slice %1 {offsets = [0, 0], sizes = [8, 128], strides = [1, 1]} : vector<8x384xf32> to vector<8x128xf32>
    %3 = vector.extract_strided_slice %1 {offsets = [0, 128], sizes = [8, 128], strides = [1, 1]} : vector<8x384xf32> to vector<8x128xf32>
    %4 = vector.extract_strided_slice %1 {offsets = [0, 256], sizes = [8, 128], strides = [1, 1]} : vector<8x384xf32> to vector<8x128xf32>
    %5 = tpu.iota {dimensions = array<i32: 0>} : vector<128x128xi32>
    %6 = tpu.iota {dimensions = array<i32: 1>} : vector<128x128xi32>
    %c1_i32 = arith.constant 1 : i32
    %7 = vector.broadcast %c1_i32 : i32 to vector<128x128xi32>
    %8 = arith.addi %5, %7 : vector<128x128xi32>
    %c2_i32 = arith.constant 2 : i32
    %c0_i32 = arith.constant 0 : i32
    %9 = arith.cmpi eq, %c2_i32, %c0_i32 : i32
    %c1_i32_2 = arith.constant 1 : i32
    %10 = arith.select %9, %c1_i32_2, %c2_i32 : i32
    %11 = vector.broadcast %10 : i32 to vector<128x128xi32>
    %12 = arith.remsi %5, %11 : vector<128x128xi32>
    %c0_i32_3 = arith.constant 0 : i32
    %13 = vector.broadcast %c0_i32_3 : i32 to vector<128x128xi32>
    %14 = arith.cmpi ne, %12, %13 : vector<128x128xi32>
    %c0_i32_4 = arith.constant 0 : i32
    %15 = vector.broadcast %c0_i32_4 : i32 to vector<128x128xi32>
    %16 = arith.cmpi slt, %12, %15 : vector<128x128xi32>
    %c0_i32_5 = arith.constant 0 : i32
    %17 = arith.cmpi slt, %10, %c0_i32_5 : i32
    %18 = vector.broadcast %17 : i1 to vector<128x128xi1>
    %19 = vector.broadcast %18 : vector<128x128xi1> to vector<128x128xi1>
    %20 = arith.xori %16, %19 : vector<128x128xi1>
    %21 = arith.andi %20, %14 : vector<128x128xi1>
    %22 = vector.broadcast %10 : i32 to vector<128x128xi32>
    %23 = arith.addi %12, %22 : vector<128x128xi32>
    %24 = arith.select %21, %23, %12 : vector<128x128xi1>, vector<128x128xi32>
    %c2_i32_6 = arith.constant 2 : i32
    %25 = vector.broadcast %c2_i32_6 : i32 to vector<128x128xi32>
    %26 = arith.muli %25, %24 : vector<128x128xi32>
    %27 = arith.subi %8, %26 : vector<128x128xi32>
    %28 = arith.cmpi eq, %6, %27 : vector<128x128xi32>
    %29 = arith.extui %28 : vector<128x128xi1> to vector<128x128xi32>
    %30 = arith.sitofp %29 : vector<128x128xi32> to vector<128x128xf32>
    %c0_7 = arith.constant 0 : index
    %c0_8 = arith.constant 0 : index
    %31 = vector.load %arg2[%c0_7, %c0_8] : memref<8x128xf32, #tpu.memory_space<vmem>>, vector<8x128xf32>
    %c0_9 = arith.constant 0 : index
    %c0_10 = arith.constant 0 : index
    %32 = vector.load %arg3[%c0_9, %c0_10] : memref<8x128xf32, #tpu.memory_space<vmem>>, vector<8x128xf32>
    %cst = arith.constant dense<0.000000e+00> : vector<8x128xf32>
    %33 = tpu.matmul %2, %30, %cst {dimension_numbers = #tpu.dot_dimension_numbers<[1], [0], [0], [1], [0, 0, 1, 1], [], []>} : vector<8x128xf32>, vector<128x128xf32>, vector<8x128xf32> -> vector<8x128xf32>
    %34 = arith.mulf %2, %31 : vector<8x128xf32>
    %35 = arith.mulf %33, %32 : vector<8x128xf32>
    %36 = arith.addf %34, %35 : vector<8x128xf32>
    %cst_11 = arith.constant dense<0.000000e+00> : vector<8x128xf32>
    %37 = tpu.matmul %3, %30, %cst_11 {dimension_numbers = #tpu.dot_dimension_numbers<[1], [0], [0], [1], [0, 0, 1, 1], [], []>} : vector<8x128xf32>, vector<128x128xf32>, vector<8x128xf32> -> vector<8x128xf32>
    %38 = arith.mulf %3, %31 : vector<8x128xf32>
    %39 = arith.mulf %37, %32 : vector<8x128xf32>
    %40 = arith.addf %38, %39 : vector<8x128xf32>
    %41 = tpu.iota {dimensions = array<i32: 0>} : vector<8x8xi32>
    %42 = tpu.iota {dimensions = array<i32: 1>} : vector<8x8xi32>
    %43 = arith.cmpi sle, %42, %41 : vector<8x8xi32>
    %44 = vector.extract_strided_slice %36 {offsets = [0, 0], sizes = [8, 32], strides = [1, 1]} : vector<8x128xf32> to vector<8x32xf32>
    %45 = arith.truncf %44 : vector<8x32xf32> to vector<8x32xbf16>
    %46 = vector.extract_strided_slice %40 {offsets = [0, 0], sizes = [8, 32], strides = [1, 1]} : vector<8x128xf32> to vector<8x32xf32>
    %47 = arith.truncf %46 : vector<8x32xf32> to vector<8x32xbf16>
    %48 = vector.extract_strided_slice %4 {offsets = [0, 0], sizes = [8, 32], strides = [1, 1]} : vector<8x128xf32> to vector<8x32xf32>
    %49 = arith.truncf %48 : vector<8x32xf32> to vector<8x32xbf16>
    %50 = tpu.transpose %47, [1, 0] : vector<8x32xbf16> -> vector<32x8xbf16>
    %cst_12 = arith.constant dense<0.000000e+00> : vector<8x8xf32>
    %51 = tpu.matmul %45, %50, %cst_12 {dimension_numbers = #tpu.dot_dimension_numbers<[1], [0], [0], [1], [0, 0, 1, 1], [], []>} : vector<8x32xbf16>, vector<32x8xbf16>, vector<8x8xf32> -> vector<8x8xf32>
    %cst_13 = arith.constant 0.176776692 : f32
    %52 = vector.broadcast %cst_13 : f32 to vector<8x8xf32>
    %53 = arith.mulf %51, %52 : vector<8x8xf32>
    %cst_14 = arith.constant -1.000000e+30 : f32
    %54 = vector.broadcast %cst_14 : f32 to vector<8x8xf32>
    %55 = arith.select %43, %53, %54 : vector<8x8xi1>, vector<8x8xf32>
    %cst_15 = arith.constant dense<0xFF800000> : vector<8xf32>
    %56 = vector.multi_reduction <maximumf>, %55, %cst_15 [1] : vector<8x8xf32> to vector<8xf32>
    %57 = vector.shape_cast %56 : vector<8xf32> to vector<8x1xf32>
    %58 = vector.broadcast %57 : vector<8x1xf32> to vector<8x8xf32>
    %59 = arith.subf %55, %58 : vector<8x8xf32>
    %60 = math.exp %59 : vector<8x8xf32>
    %cst_16 = arith.constant dense<0.000000e+00> : vector<8xf32>
    %61 = vector.multi_reduction <add>, %60, %cst_16 [1] : vector<8x8xf32> to vector<8xf32>
    %62 = vector.shape_cast %61 : vector<8xf32> to vector<8x1xf32>
    %63 = arith.truncf %60 : vector<8x8xf32> to vector<8x8xbf16>
    %cst_17 = arith.constant dense<0.000000e+00> : vector<8x32xf32>
    %64 = tpu.matmul %63, %49, %cst_17 {dimension_numbers = #tpu.dot_dimension_numbers<[1], [0], [0], [1], [0, 0, 1, 1], [], []>} : vector<8x8xbf16>, vector<8x32xbf16>, vector<8x32xf32> -> vector<8x32xf32>
    %65 = tpu.reciprocal %62 {approx = true} : vector<8x1xf32> -> vector<8x1xf32>
    %66 = vector.broadcast %65 : vector<8x1xf32> to vector<8x32xf32>
    %67 = arith.mulf %64, %66 : vector<8x32xf32>
    %68 = vector.extract_strided_slice %36 {offsets = [0, 32], sizes = [8, 32], strides = [1, 1]} : vector<8x128xf32> to vector<8x32xf32>
    %69 = arith.truncf %68 : vector<8x32xf32> to vector<8x32xbf16>
    %70 = vector.extract_strided_slice %40 {offsets = [0, 32], sizes = [8, 32], strides = [1, 1]} : vector<8x128xf32> to vector<8x32xf32>
    %71 = arith.truncf %70 : vector<8x32xf32> to vector<8x32xbf16>
    %72 = vector.extract_strided_slice %4 {offsets = [0, 32], sizes = [8, 32], strides = [1, 1]} : vector<8x128xf32> to vector<8x32xf32>
    %73 = arith.truncf %72 : vector<8x32xf32> to vector<8x32xbf16>
    %74 = tpu.transpose %71, [1, 0] : vector<8x32xbf16> -> vector<32x8xbf16>
    %cst_18 = arith.constant dense<0.000000e+00> : vector<8x8xf32>
    %75 = tpu.matmul %69, %74, %cst_18 {dimension_numbers = #tpu.dot_dimension_numbers<[1], [0], [0], [1], [0, 0, 1, 1], [], []>} : vector<8x32xbf16>, vector<32x8xbf16>, vector<8x8xf32> -> vector<8x8xf32>
    %cst_19 = arith.constant 0.176776692 : f32
    %76 = vector.broadcast %cst_19 : f32 to vector<8x8xf32>
    %77 = arith.mulf %75, %76 : vector<8x8xf32>
    %cst_20 = arith.constant -1.000000e+30 : f32
    %78 = vector.broadcast %cst_20 : f32 to vector<8x8xf32>
    %79 = arith.select %43, %77, %78 : vector<8x8xi1>, vector<8x8xf32>
    %cst_21 = arith.constant dense<0xFF800000> : vector<8xf32>
    %80 = vector.multi_reduction <maximumf>, %79, %cst_21 [1] : vector<8x8xf32> to vector<8xf32>
    %81 = vector.shape_cast %80 : vector<8xf32> to vector<8x1xf32>
    %82 = vector.broadcast %81 : vector<8x1xf32> to vector<8x8xf32>
    %83 = arith.subf %79, %82 : vector<8x8xf32>
    %84 = math.exp %83 : vector<8x8xf32>
    %cst_22 = arith.constant dense<0.000000e+00> : vector<8xf32>
    %85 = vector.multi_reduction <add>, %84, %cst_22 [1] : vector<8x8xf32> to vector<8xf32>
    %86 = vector.shape_cast %85 : vector<8xf32> to vector<8x1xf32>
    %87 = arith.truncf %84 : vector<8x8xf32> to vector<8x8xbf16>
    %cst_23 = arith.constant dense<0.000000e+00> : vector<8x32xf32>
    %88 = tpu.matmul %87, %73, %cst_23 {dimension_numbers = #tpu.dot_dimension_numbers<[1], [0], [0], [1], [0, 0, 1, 1], [], []>} : vector<8x8xbf16>, vector<8x32xbf16>, vector<8x32xf32> -> vector<8x32xf32>
    %89 = tpu.reciprocal %86 {approx = true} : vector<8x1xf32> -> vector<8x1xf32>
    %90 = vector.broadcast %89 : vector<8x1xf32> to vector<8x32xf32>
    %91 = arith.mulf %88, %90 : vector<8x32xf32>
    %92 = vector.extract_strided_slice %36 {offsets = [0, 64], sizes = [8, 32], strides = [1, 1]} : vector<8x128xf32> to vector<8x32xf32>
    %93 = arith.truncf %92 : vector<8x32xf32> to vector<8x32xbf16>
    %94 = vector.extract_strided_slice %40 {offsets = [0, 64], sizes = [8, 32], strides = [1, 1]} : vector<8x128xf32> to vector<8x32xf32>
    %95 = arith.truncf %94 : vector<8x32xf32> to vector<8x32xbf16>
    %96 = vector.extract_strided_slice %4 {offsets = [0, 64], sizes = [8, 32], strides = [1, 1]} : vector<8x128xf32> to vector<8x32xf32>
    %97 = arith.truncf %96 : vector<8x32xf32> to vector<8x32xbf16>
    %98 = tpu.transpose %95, [1, 0] : vector<8x32xbf16> -> vector<32x8xbf16>
    %cst_24 = arith.constant dense<0.000000e+00> : vector<8x8xf32>
    %99 = tpu.matmul %93, %98, %cst_24 {dimension_numbers = #tpu.dot_dimension_numbers<[1], [0], [0], [1], [0, 0, 1, 1], [], []>} : vector<8x32xbf16>, vector<32x8xbf16>, vector<8x8xf32> -> vector<8x8xf32>
    %cst_25 = arith.constant 0.176776692 : f32
    %100 = vector.broadcast %cst_25 : f32 to vector<8x8xf32>
    %101 = arith.mulf %99, %100 : vector<8x8xf32>
    %cst_26 = arith.constant -1.000000e+30 : f32
    %102 = vector.broadcast %cst_26 : f32 to vector<8x8xf32>
    %103 = arith.select %43, %101, %102 : vector<8x8xi1>, vector<8x8xf32>
    %cst_27 = arith.constant dense<0xFF800000> : vector<8xf32>
    %104 = vector.multi_reduction <maximumf>, %103, %cst_27 [1] : vector<8x8xf32> to vector<8xf32>
    %105 = vector.shape_cast %104 : vector<8xf32> to vector<8x1xf32>
    %106 = vector.broadcast %105 : vector<8x1xf32> to vector<8x8xf32>
    %107 = arith.subf %103, %106 : vector<8x8xf32>
    %108 = math.exp %107 : vector<8x8xf32>
    %cst_28 = arith.constant dense<0.000000e+00> : vector<8xf32>
    %109 = vector.multi_reduction <add>, %108, %cst_28 [1] : vector<8x8xf32> to vector<8xf32>
    %110 = vector.shape_cast %109 : vector<8xf32> to vector<8x1xf32>
    %111 = arith.truncf %108 : vector<8x8xf32> to vector<8x8xbf16>
    %cst_29 = arith.constant dense<0.000000e+00> : vector<8x32xf32>
    %112 = tpu.matmul %111, %97, %cst_29 {dimension_numbers = #tpu.dot_dimension_numbers<[1], [0], [0], [1], [0, 0, 1, 1], [], []>} : vector<8x8xbf16>, vector<8x32xbf16>, vector<8x32xf32> -> vector<8x32xf32>
    %113 = tpu.reciprocal %110 {approx = true} : vector<8x1xf32> -> vector<8x1xf32>
    %114 = vector.broadcast %113 : vector<8x1xf32> to vector<8x32xf32>
    %115 = arith.mulf %112, %114 : vector<8x32xf32>
    %116 = vector.extract_strided_slice %36 {offsets = [0, 96], sizes = [8, 32], strides = [1, 1]} : vector<8x128xf32> to vector<8x32xf32>
    %117 = arith.truncf %116 : vector<8x32xf32> to vector<8x32xbf16>
    %118 = vector.extract_strided_slice %40 {offsets = [0, 96], sizes = [8, 32], strides = [1, 1]} : vector<8x128xf32> to vector<8x32xf32>
    %119 = arith.truncf %118 : vector<8x32xf32> to vector<8x32xbf16>
    %120 = vector.extract_strided_slice %4 {offsets = [0, 96], sizes = [8, 32], strides = [1, 1]} : vector<8x128xf32> to vector<8x32xf32>
    %121 = arith.truncf %120 : vector<8x32xf32> to vector<8x32xbf16>
    %122 = tpu.transpose %119, [1, 0] : vector<8x32xbf16> -> vector<32x8xbf16>
    %cst_30 = arith.constant dense<0.000000e+00> : vector<8x8xf32>
    %123 = tpu.matmul %117, %122, %cst_30 {dimension_numbers = #tpu.dot_dimension_numbers<[1], [0], [0], [1], [0, 0, 1, 1], [], []>} : vector<8x32xbf16>, vector<32x8xbf16>, vector<8x8xf32> -> vector<8x8xf32>
    %cst_31 = arith.constant 0.176776692 : f32
    %124 = vector.broadcast %cst_31 : f32 to vector<8x8xf32>
    %125 = arith.mulf %123, %124 : vector<8x8xf32>
    %cst_32 = arith.constant -1.000000e+30 : f32
    %126 = vector.broadcast %cst_32 : f32 to vector<8x8xf32>
    %127 = arith.select %43, %125, %126 : vector<8x8xi1>, vector<8x8xf32>
    %cst_33 = arith.constant dense<0xFF800000> : vector<8xf32>
    %128 = vector.multi_reduction <maximumf>, %127, %cst_33 [1] : vector<8x8xf32> to vector<8xf32>
    %129 = vector.shape_cast %128 : vector<8xf32> to vector<8x1xf32>
    %130 = vector.broadcast %129 : vector<8x1xf32> to vector<8x8xf32>
    %131 = arith.subf %127, %130 : vector<8x8xf32>
    %132 = math.exp %131 : vector<8x8xf32>
    %cst_34 = arith.constant dense<0.000000e+00> : vector<8xf32>
    %133 = vector.multi_reduction <add>, %132, %cst_34 [1] : vector<8x8xf32> to vector<8xf32>
    %134 = vector.shape_cast %133 : vector<8xf32> to vector<8x1xf32>
    %135 = arith.truncf %132 : vector<8x8xf32> to vector<8x8xbf16>
    %cst_35 = arith.constant dense<0.000000e+00> : vector<8x32xf32>
    %136 = tpu.matmul %135, %121, %cst_35 {dimension_numbers = #tpu.dot_dimension_numbers<[1], [0], [0], [1], [0, 0, 1, 1], [], []>} : vector<8x8xbf16>, vector<8x32xbf16>, vector<8x32xf32> -> vector<8x32xf32>
    %137 = tpu.reciprocal %134 {approx = true} : vector<8x1xf32> -> vector<8x1xf32>
    %138 = vector.broadcast %137 : vector<8x1xf32> to vector<8x32xf32>
    %139 = arith.mulf %136, %138 : vector<8x32xf32>
    %140 = tpu.concatenate %67, %91, %115, %139 in 1 : vector<8x32xf32>, vector<8x32xf32>, vector<8x32xf32>, vector<8x32xf32> -> vector<8x128xf32>
    %c0_36 = arith.constant 0 : index
    %c0_37 = arith.constant 0 : index
    %c0_38 = arith.constant 0 : index
    %141 = vector.load %arg4[%c0_36, %c0_37, %c0_38] : memref<1x8x128xf32, #tpu.memory_space<vmem>>, vector<1x8x128xf32>
    %142 = vector.shape_cast %141 : vector<1x8x128xf32> to vector<8x128xf32>
    %143 = vector.shape_cast %140 : vector<8x128xf32> to vector<1x8x128xf32>
    tpu.vector_store %arg4[%c0_36, %c0_37, %c0_38], %143 {strides = array<i32>} : memref<1x8x128xf32, #tpu.memory_space<vmem>>, vector<1x8x128xf32>,
    return
  }
  func.func @transform_0(%arg0: i32) -> (i32, i32, i32) {
    %c0_i32 = arith.constant 0 : i32
    %c0_i32_0 = arith.constant 0 : i32
    %c0_i32_1 = arith.constant 0 : i32
    return %arg0, %c0_i32, %c0_i32_0 : i32, i32, i32
  }
  func.func @transform_1(%arg0: i32) -> (i32, i32) {
    %c0_i32 = arith.constant 0 : i32
    %c0_i32_0 = arith.constant 0 : i32
    %c0_i32_1 = arith.constant 0 : i32
    return %c0_i32, %c0_i32_0 : i32, i32
  }
  func.func @transform_2(%arg0: i32) -> (i32, i32) {
    %c0_i32 = arith.constant 0 : i32
    %c0_i32_0 = arith.constant 0 : i32
    %c0_i32_1 = arith.constant 0 : i32
    return %c0_i32, %c0_i32_0 : i32, i32
  }
  func.func @transform_3(%arg0: i32) -> (i32, i32, i32) {
    %c0_i32 = arith.constant 0 : i32
    %c0_i32_0 = arith.constant 0 : i32
    %c0_i32_1 = arith.constant 0 : i32
    return %arg0, %c0_i32, %c0_i32_0 : i32, i32, i32
  }
}

module attributes {stable_mosaic.version = 11 : i64} {
  func.func @_mm_kernel(%arg0: i32, %arg1: i32, %arg2: i32, %arg3: memref<16x128xf32, #tpu.memory_space<vmem>>, %arg4: memref<128x128xbf16, #tpu.memory_space<vmem>>, %arg5: memref<16x128xf32, #tpu.memory_space<vmem>>, %arg6: memref<16x128xf32, #tpu.memory_space<vmem>>) attributes {dimension_semantics = [#tpu.dimension_semantics<parallel>, #tpu.dimension_semantics<parallel>, #tpu.dimension_semantics<arbitrary>], iteration_bounds = array<i64: 1, 1, 1>, scalar_prefetch = 0 : i64, scratch_operands = 1 : i64, tpu.core_type = #tpu.core_type<tc>, window_params = [{transform_indices = @transform_0, window_bounds = array<i64: 16, 128>}, {transform_indices = @transform_1, window_bounds = array<i64: 128, 128>}, {transform_indices = @transform_2, window_bounds = array<i64: 16, 128>}]} {
    %c0_i32 = arith.constant 0 : i32
    %0 = arith.cmpi eq, %arg2, %c0_i32 : i32
    %1 = arith.extui %0 : i1 to i32
    %c0_i32_0 = arith.constant 0 : i32
    %2 = arith.cmpi ne, %1, %c0_i32_0 : i32
    scf.if %2 {
      %cst_10 = arith.constant 0.000000e+00 : f32
      %13 = vector.broadcast %cst_10 : f32 to vector<16x128xf32>
      %c0_11 = arith.constant 0 : index
      %c0_12 = arith.constant 0 : index
      %14 = vector.load %arg6[%c0_11, %c0_12] : memref<16x128xf32, #tpu.memory_space<vmem>>, vector<16x128xf32>
      tpu.vector_store %arg6[%c0_11, %c0_12], %13 {strides = array<i32>} : memref<16x128xf32, #tpu.memory_space<vmem>>, vector<16x128xf32>,
    } else {
    }
    %c0 = arith.constant 0 : index
    %c0_1 = arith.constant 0 : index
    %3 = vector.load %arg6[%c0, %c0_1] : memref<16x128xf32, #tpu.memory_space<vmem>>, vector<16x128xf32>
    %c0_2 = arith.constant 0 : index
    %c0_3 = arith.constant 0 : index
    %4 = vector.load %arg3[%c0_2, %c0_3] : memref<16x128xf32, #tpu.memory_space<vmem>>, vector<16x128xf32>
    %5 = arith.truncf %4 : vector<16x128xf32> to vector<16x128xbf16>
    %c0_4 = arith.constant 0 : index
    %c0_5 = arith.constant 0 : index
    %6 = vector.load %arg4[%c0_4, %c0_5] : memref<128x128xbf16, #tpu.memory_space<vmem>>, vector<128x128xbf16>
    %cst = arith.constant dense<0.000000e+00> : vector<16x128xf32>
    %7 = tpu.matmul %5, %6, %cst {dimension_numbers = #tpu.dot_dimension_numbers<[1], [0], [0], [1], [0, 0, 1, 1], [], []>} : vector<16x128xbf16>, vector<128x128xbf16>, vector<16x128xf32> -> vector<16x128xf32>
    %8 = arith.addf %3, %7 : vector<16x128xf32>
    %c0_6 = arith.constant 0 : index
    %c0_7 = arith.constant 0 : index
    %9 = vector.load %arg6[%c0_6, %c0_7] : memref<16x128xf32, #tpu.memory_space<vmem>>, vector<16x128xf32>
    tpu.vector_store %arg6[%c0_6, %c0_7], %8 {strides = array<i32>} : memref<16x128xf32, #tpu.memory_space<vmem>>, vector<16x128xf32>,
    %c0_i32_8 = arith.constant 0 : i32
    %10 = arith.cmpi eq, %arg2, %c0_i32_8 : i32
    %11 = arith.extui %10 : i1 to i32
    %c0_i32_9 = arith.constant 0 : i32
    %12 = arith.cmpi ne, %11, %c0_i32_9 : i32
    scf.if %12 {
      %c0_10 = arith.constant 0 : index
      %c0_11 = arith.constant 0 : index
      %13 = vector.load %arg6[%c0_10, %c0_11] : memref<16x128xf32, #tpu.memory_space<vmem>>, vector<16x128xf32>
      %c0_12 = arith.constant 0 : index
      %c0_13 = arith.constant 0 : index
      %14 = vector.load %arg5[%c0_12, %c0_13] : memref<16x128xf32, #tpu.memory_space<vmem>>, vector<16x128xf32>
      tpu.vector_store %arg5[%c0_12, %c0_13], %13 {strides = array<i32>} : memref<16x128xf32, #tpu.memory_space<vmem>>, vector<16x128xf32>,
    } else {
    }
    return
  }
  func.func @transform_0(%arg0: i32, %arg1: i32, %arg2: i32) -> (i32, i32) {
    %c0_i32 = arith.constant 0 : i32
    return %arg0, %arg2 : i32, i32
  }
  func.func @transform_1(%arg0: i32, %arg1: i32, %arg2: i32) -> (i32, i32) {
    %c0_i32 = arith.constant 0 : i32
    return %arg2, %arg1 : i32, i32
  }
  func.func @transform_2(%arg0: i32, %arg1: i32, %arg2: i32) -> (i32, i32) {
    %c0_i32 = arith.constant 0 : i32
    return %arg0, %arg1 : i32, i32
  }
}

module attributes {stable_mosaic.version = 11 : i64} {
  func.func @_mm_gate_kernel(%arg0: i32, %arg1: i32, %arg2: i32, %arg3: memref<16x256xf32, #tpu.memory_space<vmem>>, %arg4: memref<16x256xf32, #tpu.memory_space<vmem>>, %arg5: memref<256x128xbf16, #tpu.memory_space<vmem>>, %arg6: memref<16x128xf32, #tpu.memory_space<vmem>>, %arg7: memref<16x128xf32, #tpu.memory_space<vmem>>) attributes {dimension_semantics = [#tpu.dimension_semantics<parallel>, #tpu.dimension_semantics<parallel>, #tpu.dimension_semantics<arbitrary>], iteration_bounds = array<i64: 1, 1, 1>, scalar_prefetch = 0 : i64, scratch_operands = 1 : i64, tpu.core_type = #tpu.core_type<tc>, window_params = [{transform_indices = @transform_0, window_bounds = array<i64: 16, 256>}, {transform_indices = @transform_1, window_bounds = array<i64: 16, 256>}, {transform_indices = @transform_2, window_bounds = array<i64: 256, 128>}, {transform_indices = @transform_3, window_bounds = array<i64: 16, 128>}]} {
    %c0_i32 = arith.constant 0 : i32
    %0 = arith.cmpi eq, %arg2, %c0_i32 : i32
    %1 = arith.extui %0 : i1 to i32
    %c0_i32_0 = arith.constant 0 : i32
    %2 = arith.cmpi ne, %1, %c0_i32_0 : i32
    scf.if %2 {
      %cst_14 = arith.constant 0.000000e+00 : f32
      %22 = vector.broadcast %cst_14 : f32 to vector<16x128xf32>
      %c0_15 = arith.constant 0 : index
      %c0_16 = arith.constant 0 : index
      %23 = vector.load %arg7[%c0_15, %c0_16] : memref<16x128xf32, #tpu.memory_space<vmem>>, vector<16x128xf32>
      tpu.vector_store %arg7[%c0_15, %c0_16], %22 {strides = array<i32>} : memref<16x128xf32, #tpu.memory_space<vmem>>, vector<16x128xf32>,
    } else {
    }
    %c0 = arith.constant 0 : index
    %c0_1 = arith.constant 0 : index
    %3 = vector.load %arg3[%c0, %c0_1] : memref<16x256xf32, #tpu.memory_space<vmem>>, vector<16x256xf32>
    %cst = arith.constant 0.000000e+00 : f32
    %4 = vector.broadcast %cst : f32 to vector<16x256xf32>
    %5 = arith.subf %4, %3 : vector<16x256xf32>
    %6 = math.exp %5 : vector<16x256xf32>
    %cst_2 = arith.constant 1.000000e+00 : f32
    %7 = vector.broadcast %cst_2 : f32 to vector<16x256xf32>
    %8 = arith.addf %7, %6 : vector<16x256xf32>
    %9 = tpu.reciprocal %8 {approx = true} : vector<16x256xf32> -> vector<16x256xf32>
    %10 = arith.mulf %3, %9 : vector<16x256xf32>
    %c0_3 = arith.constant 0 : index
    %c0_4 = arith.constant 0 : index
    %11 = vector.load %arg4[%c0_3, %c0_4] : memref<16x256xf32, #tpu.memory_space<vmem>>, vector<16x256xf32>
    %12 = arith.mulf %10, %11 : vector<16x256xf32>
    %13 = arith.truncf %12 : vector<16x256xf32> to vector<16x256xbf16>
    %c0_5 = arith.constant 0 : index
    %c0_6 = arith.constant 0 : index
    %14 = vector.load %arg7[%c0_5, %c0_6] : memref<16x128xf32, #tpu.memory_space<vmem>>, vector<16x128xf32>
    %c0_7 = arith.constant 0 : index
    %c0_8 = arith.constant 0 : index
    %15 = vector.load %arg5[%c0_7, %c0_8] : memref<256x128xbf16, #tpu.memory_space<vmem>>, vector<256x128xbf16>
    %cst_9 = arith.constant dense<0.000000e+00> : vector<16x128xf32>
    %16 = tpu.matmul %13, %15, %cst_9 {dimension_numbers = #tpu.dot_dimension_numbers<[1], [0], [0], [1], [0, 0, 1, 1], [], []>} : vector<16x256xbf16>, vector<256x128xbf16>, vector<16x128xf32> -> vector<16x128xf32>
    %17 = arith.addf %14, %16 : vector<16x128xf32>
    %c0_10 = arith.constant 0 : index
    %c0_11 = arith.constant 0 : index
    %18 = vector.load %arg7[%c0_10, %c0_11] : memref<16x128xf32, #tpu.memory_space<vmem>>, vector<16x128xf32>
    tpu.vector_store %arg7[%c0_10, %c0_11], %17 {strides = array<i32>} : memref<16x128xf32, #tpu.memory_space<vmem>>, vector<16x128xf32>,
    %c0_i32_12 = arith.constant 0 : i32
    %19 = arith.cmpi eq, %arg2, %c0_i32_12 : i32
    %20 = arith.extui %19 : i1 to i32
    %c0_i32_13 = arith.constant 0 : i32
    %21 = arith.cmpi ne, %20, %c0_i32_13 : i32
    scf.if %21 {
      %c0_14 = arith.constant 0 : index
      %c0_15 = arith.constant 0 : index
      %22 = vector.load %arg7[%c0_14, %c0_15] : memref<16x128xf32, #tpu.memory_space<vmem>>, vector<16x128xf32>
      %c0_16 = arith.constant 0 : index
      %c0_17 = arith.constant 0 : index
      %23 = vector.load %arg6[%c0_16, %c0_17] : memref<16x128xf32, #tpu.memory_space<vmem>>, vector<16x128xf32>
      tpu.vector_store %arg6[%c0_16, %c0_17], %22 {strides = array<i32>} : memref<16x128xf32, #tpu.memory_space<vmem>>, vector<16x128xf32>,
    } else {
    }
    return
  }
  func.func @transform_0(%arg0: i32, %arg1: i32, %arg2: i32) -> (i32, i32) {
    %c0_i32 = arith.constant 0 : i32
    return %arg0, %arg2 : i32, i32
  }
  func.func @transform_1(%arg0: i32, %arg1: i32, %arg2: i32) -> (i32, i32) {
    %c1_i32 = arith.constant 1 : i32
    %0 = arith.addi %arg2, %c1_i32 : i32
    %c0_i32 = arith.constant 0 : i32
    return %arg0, %0 : i32, i32
  }
  func.func @transform_2(%arg0: i32, %arg1: i32, %arg2: i32) -> (i32, i32) {
    %c0_i32 = arith.constant 0 : i32
    return %arg2, %arg1 : i32, i32
  }
  func.func @transform_3(%arg0: i32, %arg1: i32, %arg2: i32) -> (i32, i32) {
    %c0_i32 = arith.constant 0 : i32
    return %arg0, %arg1 : i32, i32
  }
}

module attributes {stable_mosaic.version = 11 : i64} {
  func.func @_mm_norm_kernel(%arg0: i32, %arg1: i32, %arg2: memref<16x128xf32, #tpu.memory_space<vmem>>, %arg3: memref<1x128xf32, #tpu.memory_space<vmem>>, %arg4: memref<128x1280xbf16, #tpu.memory_space<vmem>>, %arg5: memref<16x1280xf32, #tpu.memory_space<vmem>>) attributes {dimension_semantics = [#tpu.dimension_semantics<parallel>, #tpu.dimension_semantics<parallel>], iteration_bounds = array<i64: 1, 25>, scalar_prefetch = 0 : i64, scratch_operands = 0 : i64, tpu.core_type = #tpu.core_type<tc>, window_params = [{transform_indices = @transform_0, window_bounds = array<i64: 16, 128>}, {pipeline_mode = #tpu.pipeline_mode<synchronous>, transform_indices = @transform_1, window_bounds = array<i64: 1, 128>}, {transform_indices = @transform_2, window_bounds = array<i64: 128, 1280>}, {transform_indices = @transform_3, window_bounds = array<i64: 16, 1280>}]} {
    %c0 = arith.constant 0 : index
    %c0_0 = arith.constant 0 : index
    %0 = vector.load %arg2[%c0, %c0_0] : memref<16x128xf32, #tpu.memory_space<vmem>>, vector<16x128xf32>
    %1 = arith.mulf %0, %0 : vector<16x128xf32>
    %cst = arith.constant dense<0.000000e+00> : vector<16xf32>
    %2 = vector.multi_reduction <add>, %1, %cst [1] : vector<16x128xf32> to vector<16xf32>
    %3 = vector.shape_cast %2 : vector<16xf32> to vector<16x1xf32>
    %cst_1 = arith.constant 1.280000e+02 : f32
    %4 = vector.broadcast %cst_1 : f32 to vector<16x1xf32>
    %5 = arith.divf %3, %4 : vector<16x1xf32>
    %cst_2 = arith.constant 9.99999997E-7 : f32
    %6 = vector.broadcast %cst_2 : f32 to vector<16x1xf32>
    %7 = arith.addf %5, %6 : vector<16x1xf32>
    %8 = math.rsqrt %7 : vector<16x1xf32>
    %9 = vector.broadcast %8 : vector<16x1xf32> to vector<16x128xf32>
    %10 = arith.mulf %0, %9 : vector<16x128xf32>
    %c0_3 = arith.constant 0 : index
    %c0_4 = arith.constant 0 : index
    %11 = vector.load %arg3[%c0_3, %c0_4] : memref<1x128xf32, #tpu.memory_space<vmem>>, vector<1x128xf32>
    %12 = vector.broadcast %11 : vector<1x128xf32> to vector<16x128xf32>
    %13 = arith.mulf %10, %12 : vector<16x128xf32>
    %14 = arith.truncf %13 : vector<16x128xf32> to vector<16x128xbf16>
    %c0_5 = arith.constant 0 : index
    %c0_6 = arith.constant 0 : index
    %15 = vector.load %arg4[%c0_5, %c0_6] : memref<128x1280xbf16, #tpu.memory_space<vmem>>, vector<128x1280xbf16>
    %cst_7 = arith.constant dense<0.000000e+00> : vector<16x1280xf32>
    %16 = tpu.matmul %14, %15, %cst_7 {dimension_numbers = #tpu.dot_dimension_numbers<[1], [0], [0], [1], [0, 0, 1, 1], [], []>} : vector<16x128xbf16>, vector<128x1280xbf16>, vector<16x1280xf32> -> vector<16x1280xf32>
    %c0_8 = arith.constant 0 : index
    %c0_9 = arith.constant 0 : index
    %17 = vector.load %arg5[%c0_8, %c0_9] : memref<16x1280xf32, #tpu.memory_space<vmem>>, vector<16x1280xf32>
    tpu.vector_store %arg5[%c0_8, %c0_9], %16 {strides = array<i32>} : memref<16x1280xf32, #tpu.memory_space<vmem>>, vector<16x1280xf32>,
    return
  }
  func.func @transform_0(%arg0: i32, %arg1: i32) -> (i32, i32) {
    %c0_i32 = arith.constant 0 : i32
    %c0_i32_0 = arith.constant 0 : i32
    return %arg0, %c0_i32 : i32, i32
  }
  func.func @transform_1(%arg0: i32, %arg1: i32) -> (i32, i32) {
    %c0_i32 = arith.constant 0 : i32
    %c0_i32_0 = arith.constant 0 : i32
    %c0_i32_1 = arith.constant 0 : i32
    return %c0_i32, %c0_i32_0 : i32, i32
  }
  func.func @transform_2(%arg0: i32, %arg1: i32) -> (i32, i32) {
    %c0_i32 = arith.constant 0 : i32
    %c0_i32_0 = arith.constant 0 : i32
    return %c0_i32, %arg1 : i32, i32
  }
  func.func @transform_3(%arg0: i32, %arg1: i32) -> (i32, i32) {
    %c0_i32 = arith.constant 0 : i32
    return %arg0, %arg1 : i32, i32
  }
}

</mosaic_0001>

<llo_original>
// kernel: llama_forward.16
$region0: #{llama_forward.16}
  #allocation0 [shape = 'u32[]', space=smem, size = 0x4, offset = 0x4, fixed_abs, tag = 'smem constant byte address 0x4 - core index']
  #allocation1 [shape = 'u32[144,128]{1,0:T(1,128)}', space=vmem, size = 0x12000, scoped, tag = 'internal scratch']
  %s0 = inlined_call_operand.vmem [shape: f32[16,128], index: 0, kind: input, shape index: {}]
  %s1 = inlined_call_operand.hbm [shape: f32[1,128], index: 1, kind: input, shape index: {}]
  %s2 = inlined_call_operand.hbm [shape: bf16[128,384], index: 2, kind: input, shape index: {}]
  %s3 = inlined_call_operand.vmem [shape: f32[16,384], index: 3, kind: output, shape index: {}]
  %s4 = sld [smem:[#allocation0]]
  $region30: #{llama_forward.16} parent=0
    _
  %s6 = ssub.s32 1, %s4
  %s7 = scalar_select 0, %s6, %s4
  $region1: #{llama_forward.16} parent=0
    #allocation2 [shape = 'u8[512]{0}', space=vmem, size = 0x400, scoped, tag = 'input window, operand 1, single buffered']
    #allocation3 [shape = 's32[1]{0}', space=sflag, size = 0x4, scoped, tag = 'scoped memory for llama_forward.16']
    #allocation4 [shape = 'u8[98304]{0}', space=vmem, size = 0x18000, scoped, tag = 'input window, operand 2, single buffered']
    #allocation5 [shape = 's32[1]{0}', space=sflag, size = 0x4, scoped, tag = 'scoped memory for llama_forward.16']
    %8 = vsyncpa [#allocation3], 0
    %9 = vsyncpa [#allocation5], 0
    // Predicated region
    $region2: #{llama_forward.16} parent=1 // pred_check
      _
    $region3: #{llama_forward.16} parent=1 // pred_check_branch
      %11 = sbr.rel (0) target = $region5
    $region4: #{llama_forward.16} parent=1 // pred_region
      _
    $region5: #{llama_forward.16} parent=1 // pred_fallthru
      _
    // Predicated region
    $region6: #{llama_forward.16} parent=1 // pred_check
      _
    $region7: #{llama_forward.16} parent=1 // pred_check_branch
      %13 = sbr.rel (0) target = $region9
    $region8: #{llama_forward.16} parent=1 // pred_region
      %s15 = ssub.s32 16, 16
      %16 = vsyncadd [#allocation3], %s15
      %s18 = sshll.u32 [#allocation2], 4
      %s19 = int_to_ptr.vmem [resolvable:$true] %s18
      %21 = dma.hbm_to_vmem [thread:$0]  %s1, 16, %s19, [#allocation3]
    $region9: #{llama_forward.16} parent=1 // pred_fallthru
      _
    // Predicated region
    $region10: #{llama_forward.16} parent=1 // pred_check
      _
    $region11: #{llama_forward.16} parent=1 // pred_check_branch
      %23 = sbr.rel (0) target = $region13
    $region12: #{llama_forward.16} parent=1 // pred_region
      %s25 = ssub.s32 3072, 3072
      %26 = vsyncadd [#allocation5], %s25
      %s27 = sshll.u32 [#allocation4], 4
      %s28 = int_to_ptr.vmem [resolvable:$true] %s27
      %33 = dma.hbm_to_vmem [thread:$0]  %s2, 3072, %s28, [#allocation5], 192, 192, 12
    $region13: #{llama_forward.16} parent=1 // pred_fallthru
      _
    // Predicated region
    $region14: #{llama_forward.16} parent=1 // pred_check
      _
    $region15: #{llama_forward.16} parent=1 // pred_check_branch
      %35 = sbr.rel (0) target = $region17
    $region16: #{llama_forward.16} parent=1 // pred_region
      %36 = dma.done [#allocation3], 16
    $region17: #{llama_forward.16} parent=1 // pred_fallthru
      _
    // Predicated region
    $region18: #{llama_forward.16} parent=1 // pred_check
      _
    $region19: #{llama_forward.16} parent=1 // pred_check_branch
      %38 = sbr.rel (0) target = $region21
    $region20: #{llama_forward.16} parent=1 // pred_region
      %39 = dma.done [#allocation5], 3072
    $region21: #{llama_forward.16} parent=1 // pred_fallthru
      _
    %v41 = vld [vmem:[%s0] sm:$0xff]
    %v42 = vld [vmem:[%s0 + $0x8] sm:$0xff]
    %v43 = vmul.f32 %v41, %v41
    %v44 = vmul.f32 %v42, %v42
    %45 = vadd.xlane.f32.xlu0 %v43
    %v46 = vpop.xlane.xlu0 %45
    %47 = vadd.xlane.f32.xlu0 %v44
    %v48 = vpop.xlane.xlu0 %47
    %v49 = vrcp.pop 128.0
    %v50 = vmul.f32 %v46, %v49
    %v51 = vmul.f32 %v48, %v49
    %v52 = vadd.f32 %v50, 1e-06
    %v53 = vadd.f32 %v51, 1e-06
    %v54 = vrsqrt.pop %v52
    %v55 = vrsqrt.pop %v53
    %v56 = vmul.f32 %v41, %v54
    %v57 = vmul.f32 %v42, %v55
    %v58 = vld [vmem:[#allocation2] sm:$0x1]
    %v60 = vlaneseq
    %v61 = vshrl.u32 %v60, 7
    %v62 = vsub.s32 0, %v61
    %v63 = vrot.slane %v58, %v62
    %v65 = vmul.f32 %v56, %v63
    %v66 = vmul.f32 %v57, %v63
    %v67 = vpack.c.bf16 %v66, %v65
    %v68 = vld [vmem:[#allocation4] sm:$0xff]
    %v69 = vld [vmem:[#allocation4 + $0x8] sm:$0xf]
    %v70 = vld [vmem:[#allocation4 + $0xc] sm:$0xff]
    %v71 = vld [vmem:[#allocation4 + $0x14] sm:$0xf]
    %v72 = vld [vmem:[#allocation4 + $0x18] sm:$0xff]
    %v73 = vld [vmem:[#allocation4 + $0x20] sm:$0xf]
    %v74 = vld [vmem:[#allocation4 + $0x24] sm:$0xff]
    %v75 = vld [vmem:[#allocation4 + $0x2c] sm:$0xf]
    %v76 = vld [vmem:[#allocation4 + $0x30] sm:$0xff]
    %v77 = vld [vmem:[#allocation4 + $0x38] sm:$0xf]
    %v78 = vld [vmem:[#allocation4 + $0x3c] sm:$0xff]
    %v79 = vld [vmem:[#allocation4 + $0x44] sm:$0xf]
    %v80 = vld [vmem:[#allocation4 + $0x48] sm:$0xff]
    %v81 = vld [vmem:[#allocation4 + $0x50] sm:$0xf]
    %v82 = vld [vmem:[#allocation4 + $0x54] sm:$0xff]
    %v83 = vld [vmem:[#allocation4 + $0x5c] sm:$0xf]
    %v84 = vld [vmem:[#allocation4 + $0x60] sm:$0xff]
    %v85 = vld [vmem:[#allocation4 + $0x68] sm:$0xf]
    %v86 = vld [vmem:[#allocation4 + $0x6c] sm:$0xff]
    %v87 = vld [vmem:[#allocation4 + $0x74] sm:$0xf]
    %v88 = vld [vmem:[#allocation4 + $0x78] sm:$0xff]
    %v89 = vld [vmem:[#allocation4 + $0x80] sm:$0xf]
    %v90 = vld [vmem:[#allocation4 + $0x84] sm:$0xff]
    %v91 = vld [vmem:[#allocation4 + $0x8c] sm:$0xf]
    %v92 = vld [vmem:[#allocation4 + $0x90] sm:$0xff]
    %v93 = vld [vmem:[#allocation4 + $0x98] sm:$0xf]
    %v94 = vld [vmem:[#allocation4 + $0x9c] sm:$0xff]
    %v95 = vld [vmem:[#allocation4 + $0xa4] sm:$0xf]
    %v96 = vld [vmem:[#allocation4 + $0xa8] sm:$0xff]
    %v97 = vld [vmem:[#allocation4 + $0xb0] sm:$0xf]
    %v98 = vld [vmem:[#allocation4 + $0xb4] sm:$0xff]
    %v99 = vld [vmem:[#allocation4 + $0xbc] sm:$0xf]
    %v132 = vunpack.c.l.b16 %v68
    %v133 = vunpack.c.h.b16 %v68
    %v134 = vunpack.c.l.b16 %v69
    %v135 = vunpack.c.l.b16 %v70
    %v136 = vunpack.c.h.b16 %v70
    %v137 = vunpack.c.l.b16 %v71
    %v138 = vunpack.c.l.b16 %v72
    %v139 = vunpack.c.h.b16 %v72
    %v140 = vunpack.c.l.b16 %v73
    %v141 = vunpack.c.l.b16 %v74
    %v142 = vunpack.c.h.b16 %v74
    %v143 = vunpack.c.l.b16 %v75
    %v144 = vunpack.c.l.b16 %v76
    %v145 = vunpack.c.h.b16 %v76
    %v146 = vunpack.c.l.b16 %v77
    %v147 = vunpack.c.l.b16 %v78
    %v148 = vunpack.c.h.b16 %v78
    %v149 = vunpack.c.l.b16 %v79
    %v150 = vunpack.c.l.b16 %v80
    %v151 = vunpack.c.h.b16 %v80
    %v152 = vunpack.c.l.b16 %v81
    %v153 = vunpack.c.l.b16 %v82
    %v154 = vunpack.c.h.b16 %v82
    %v155 = vunpack.c.l.b16 %v83
    %v156 = vunpack.c.l.b16 %v84
    %v157 = vunpack.c.h.b16 %v84
    %v158 = vunpack.c.l.b16 %v85
    %v159 = vunpack.c.l.b16 %v86
    %v160 = vunpack.c.h.b16 %v86
    %v161 = vunpack.c.l.b16 %v87
    %v162 = vunpack.c.l.b16 %v88
    %v163 = vunpack.c.h.b16 %v88
    %v164 = vunpack.c.l.b16 %v89
    %v165 = vunpack.c.l.b16 %v90
    %v166 = vunpack.c.h.b16 %v90
    %v167 = vunpack.c.l.b16 %v91
    %v168 = vunpack.c.l.b16 %v92
    %v169 = vunpack.c.h.b16 %v92
    %v170 = vunpack.c.l.b16 %v93
    %v171 = vunpack.c.l.b16 %v94
    %v172 = vunpack.c.h.b16 %v94
    %v173 = vunpack.c.l.b16 %v95
    %v174 = vunpack.c.l.b16 %v96
    %v175 = vunpack.c.h.b16 %v96
    %v176 = vunpack.c.l.b16 %v97
    %v177 = vunpack.c.l.b16 %v98
    %v178 = vunpack.c.h.b16 %v98
    %v179 = vunpack.c.l.b16 %v99
    %v180 = vpack.c.b16 %v135, %v132
    %v181 = vpack.c.b16 %v136, %v133
    %v182 = vpack.c.b16 %v137, %v134
    %v183 = vpack.c.b16 %v141, %v138
    %v184 = vpack.c.b16 %v142, %v139
    %v185 = vpack.c.b16 %v143, %v140
    %v186 = vpack.c.b16 %v147, %v144
    %v187 = vpack.c.b16 %v148, %v145
    %v188 = vpack.c.b16 %v149, %v146
    %v189 = vpack.c.b16 %v153, %v150
    %v190 = vpack.c.b16 %v154, %v151
    %v191 = vpack.c.b16 %v155, %v152
    %v192 = vpack.c.b16 %v159, %v156
    %v193 = vpack.c.b16 %v160, %v157
    %v194 = vpack.c.b16 %v161, %v158
    %v195 = vpack.c.b16 %v165, %v162
    %v196 = vpack.c.b16 %v166, %v163
    %v197 = vpack.c.b16 %v167, %v164
    %v198 = vpack.c.b16 %v171, %v168
    %v199 = vpack.c.b16 %v172, %v169
    %v200 = vpack.c.b16 %v173, %v170
    %v201 = vpack.c.b16 %v177, %v174
    %v202 = vpack.c.b16 %v178, %v175
    %v203 = vpack.c.b16 %v179, %v176
    %228 = vmatprep.subr.bf16.mxu0 %v181
    %229 = vmatpush1.bf16.msra.mxu0 %v180
    %230 = vmatprep.subr.bf16.mxu0 %v184
    %231 = vmatpush1.bf16.msra.mxu0 %v183
    %232 = vmatprep.subr.bf16.mxu0 %v187
    %233 = vmatpush1.bf16.msra.mxu0 %v186
    %234 = vmatprep.subr.bf16.mxu0 %v190
    %235 = vmatpush1.bf16.msra.mxu0 %v189
    %236 = vmatprep.subr.bf16.mxu0 %v193
    %237 = vmatpush1.bf16.msra.mxu0 %v192
    %238 = vmatprep.subr.bf16.mxu0 %v196
    %239 = vmatpush1.bf16.msra.mxu0 %v195
    %240 = vmatprep.subr.bf16.mxu0 %v199
    %241 = vmatpush1.bf16.msra.mxu0 %v198
    %242 = vmatprep.subr.bf16.mxu0 %v202
    %243 = vmatpush1.bf16.msra.mxu0 %v201
    %244 = vmatprep.subr.bf16.mxu0 0
    %245 = vmatpush1.bf16.msra.mxu0 0
    %246 = vmatprep.subr.bf16.mxu0 0
    %247 = vmatpush1.bf16.msra.mxu0 0
    %248 = vmatprep.subr.bf16.mxu0 0
    %249 = vmatpush1.bf16.msra.mxu0 0
    %250 = vmatprep.subr.bf16.mxu0 0
    %251 = vmatpush1.bf16.msra.mxu0 0
    %252 = vmatprep.subr.bf16.mxu0 0
    %253 = vmatpush1.bf16.msra.mxu0 0
    %254 = vmatprep.subr.bf16.mxu0 0
    %255 = vmatpush1.bf16.msra.mxu0 0
    %256 = vmatprep.subr.bf16.mxu0 0
    %257 = vmatpush1.bf16.msra.mxu0 0
    %258 = vmatprep.subr.bf16.mxu0 0
    %259 = vmatpush1.bf16.msra.mxu0 0
    %260 = vmatprep.mubr.bf16.mxu0 0
    %261 = vmatmul.mubr.bf16.gmra.mrb[0].mxu0 %v67
    %v262 = vpop.f32.mrb[0].mxu0
    %v263 = vadd.f32 0.0, %v262
    %v264 = vpop.f32.mrb[0].mxu0
    %v265 = vadd.f32 0.0, %v264
    %v266 = vpop.f32.mrb[0].mxu0
    %v267 = vadd.f32 0.0, %v266
    %v268 = vpop.f32.mrb[0].mxu0
    %v269 = vadd.f32 0.0, %v268
    %270 = vdwg.mxu0
    %271 = vmatprep.subr.bf16.mxu0 0
    %272 = vmatpush1.bf16.msra.mxu0 %v182
    %273 = vmatprep.subr.bf16.mxu0 0
    %274 = vmatpush1.bf16.msra.mxu0 %v185
    %275 = vmatprep.subr.bf16.mxu0 0
    %276 = vmatpush1.bf16.msra.mxu0 %v188
    %277 = vmatprep.subr.bf16.mxu0 0
    %278 = vmatpush1.bf16.msra.mxu0 %v191
    %279 = vmatprep.subr.bf16.mxu0 0
    %280 = vmatpush1.bf16.msra.mxu0 %v194
    %281 = vmatprep.subr.bf16.mxu0 0
    %282 = vmatpush1.bf16.msra.mxu0 %v197
    %283 = vmatprep.subr.bf16.mxu0 0
    %284 = vmatpush1.bf16.msra.mxu0 %v200
    %285 = vmatprep.subr.bf16.mxu0 0
    %286 = vmatpush1.bf16.msra.mxu0 %v203
    %287 = vmatprep.subr.bf16.mxu0 0
    %288 = vmatpush1.bf16.msra.mxu0 0
    %289 = vmatprep.subr.bf16.mxu0 0
    %290 = vmatpush1.bf16.msra.mxu0 0
    %291 = vmatprep.subr.bf16.mxu0 0
    %292 = vmatpush1.bf16.msra.mxu0 0
    %293 = vmatprep.subr.bf16.mxu0 0
    %294 = vmatpush1.bf16.msra.mxu0 0
    %295 = vmatprep.subr.bf16.mxu0 0
    %296 = vmatpush1.bf16.msra.mxu0 0
    %297 = vmatprep.subr.bf16.mxu0 0
    %298 = vmatpush1.bf16.msra.mxu0 0
    %299 = vmatprep.subr.bf16.mxu0 0
    %300 = vmatpush1.bf16.msra.mxu0 0
    %301 = vmatprep.subr.bf16.mxu0 0
    %302 = vmatpush1.bf16.msra.mxu0 0
    %303 = vmatprep.mubr.bf16.mxu0 0
    %304 = vmatmul.mubr.bf16.gmra.mrb[0].mxu0 %v67
    %v305 = vpop.f32.mrb[0].mxu0
    %v306 = vadd.f32 0.0, %v305
    %v307 = vpop.f32.mrb[0].mxu0
    %v308 = vpop.f32.mrb[0].mxu0
    %v309 = vadd.f32 0.0, %v308
    %v310 = vpop.f32.mrb[0].mxu0
    %311 = vdwg.mxu0
    %312 = vst [vmem:[%s3] sm:$0xff] %v263
    %313 = vst [vmem:[%s3 + $0x8] sm:$0xff] %v265
    %314 = vst [vmem:[%s3 + $0x10] sm:$0xff] %v306
    %315 = vst [vmem:[%s3 + $0x18] sm:$0xff] %v267
    %316 = vst [vmem:[%s3 + $0x20] sm:$0xff] %v269
    %317 = vst [vmem:[%s3 + $0x28] sm:$0xff] %v309
    // Predicated region
    $region22: #{llama_forward.16} parent=1 // pred_check
      _
    $region23: #{llama_forward.16} parent=1 // pred_check_branch
      %319 = sbr.rel (0) target = $region25
    $region24: #{llama_forward.16} parent=1 // pred_region
      _
    $region25: #{llama_forward.16} parent=1 // pred_fallthru
      _
    // Predicated region
    $region26: #{llama_forward.16} parent=1 // pred_check
      _
    $region27: #{llama_forward.16} parent=1 // pred_check_branch
      %321 = sbr.rel (0) target = $region29
    $region28: #{llama_forward.16} parent=1 // pred_region
      _
    $region29: #{llama_forward.16} parent=1 // pred_fallthru
      _
    %322 = vsyncpa [#allocation3], 1
    %323 = vsyncpa [#allocation5], 1

// kernel: llama_forward.19
$region0: #{llama_forward.19}
  #allocation0 [shape = 'u32[]', space=smem, size = 0x4, offset = 0x4, fixed_abs, tag = 'smem constant byte address 0x4 - core index']
  #allocation1 [shape = 'u32[144,128]{1,0:T(1,128)}', space=vmem, size = 0x12000, scoped, tag = 'internal scratch']
  %s0 = inlined_call_operand.vmem [shape: f32[16,128], index: 0, kind: input, shape index: {}]
  %s1 = inlined_call_operand.hbm [shape: f32[1,128], index: 1, kind: input, shape index: {}]
  %s2 = inlined_call_operand.hbm [shape: bf16[128,512], index: 2, kind: input, shape index: {}]
  %s3 = inlined_call_operand.vmem [shape: f32[16,512], index: 3, kind: output, shape index: {}]
  %s4 = sld [smem:[#allocation0]]
  $region30: #{llama_forward.19} parent=0
    _
  %s6 = ssub.s32 1, %s4
  %s7 = scalar_select 0, %s6, %s4
  $region1: #{llama_forward.19} parent=0
    #allocation2 [shape = 'u8[512]{0}', space=vmem, size = 0x400, scoped, tag = 'input window, operand 1, single buffered']
    #allocation3 [shape = 's32[1]{0}', space=sflag, size = 0x4, scoped, tag = 'scoped memory for llama_forward.19']
    #allocation4 [shape = 'u8[131072]{0}', space=vmem, size = 0x20000, scoped, tag = 'input window, operand 2, single buffered']
    #allocation5 [shape = 's32[1]{0}', space=sflag, size = 0x4, scoped, tag = 'scoped memory for llama_forward.19']
    %8 = vsyncpa [#allocation3], 0
    %9 = vsyncpa [#allocation5], 0
    // Predicated region
    $region2: #{llama_forward.19} parent=1 // pred_check
      _
    $region3: #{llama_forward.19} parent=1 // pred_check_branch
      %11 = sbr.rel (0) target = $region5
    $region4: #{llama_forward.19} parent=1 // pred_region
      _
    $region5: #{llama_forward.19} parent=1 // pred_fallthru
      _
    // Predicated region
    $region6: #{llama_forward.19} parent=1 // pred_check
      _
    $region7: #{llama_forward.19} parent=1 // pred_check_branch
      %13 = sbr.rel (0) target = $region9
    $region8: #{llama_forward.19} parent=1 // pred_region
      %s15 = ssub.s32 16, 16
      %16 = vsyncadd [#allocation3], %s15
      %s18 = sshll.u32 [#allocation2], 4
      %s19 = int_to_ptr.vmem [resolvable:$true] %s18
      %21 = dma.hbm_to_vmem [thread:$0]  %s1, 16, %s19, [#allocation3]
    $region9: #{llama_forward.19} parent=1 // pred_fallthru
      _
    // Predicated region
    $region10: #{llama_forward.19} parent=1 // pred_check
      _
    $region11: #{llama_forward.19} parent=1 // pred_check_branch
      %23 = sbr.rel (0) target = $region13
    $region12: #{llama_forward.19} parent=1 // pred_region
      %s25 = ssub.s32 4096, 4096
      %26 = vsyncadd [#allocation5], %s25
      %s27 = sshll.u32 [#allocation4], 4
      %s28 = int_to_ptr.vmem [resolvable:$true] %s27
      %33 = dma.hbm_to_vmem [thread:$0]  %s2, 4096, %s28, [#allocation5], 256, 256, 16
    $region13: #{llama_forward.19} parent=1 // pred_fallthru
      _
    // Predicated region
    $region14: #{llama_forward.19} parent=1 // pred_check
      _
    $region15: #{llama_forward.19} parent=1 // pred_check_branch
      %35 = sbr.rel (0) target = $region17
    $region16: #{llama_forward.19} parent=1 // pred_region
      %36 = dma.done [#allocation3], 16
    $region17: #{llama_forward.19} parent=1 // pred_fallthru
      _
    // Predicated region
    $region18: #{llama_forward.19} parent=1 // pred_check
      _
    $region19: #{llama_forward.19} parent=1 // pred_check_branch
      %38 = sbr.rel (0) target = $region21
    $region20: #{llama_forward.19} parent=1 // pred_region
      %39 = dma.done [#allocation5], 4096
    $region21: #{llama_forward.19} parent=1 // pred_fallthru
      _
    %v41 = vld [vmem:[%s0] sm:$0xff]
    %v42 = vld [vmem:[%s0 + $0x8] sm:$0xff]
    %v43 = vmul.f32 %v41, %v41
    %v44 = vmul.f32 %v42, %v42
    %45 = vadd.xlane.f32.xlu0 %v43
    %v46 = vpop.xlane.xlu0 %45
    %47 = vadd.xlane.f32.xlu0 %v44
    %v48 = vpop.xlane.xlu0 %47
    %v49 = vrcp.pop 128.0
    %v50 = vmul.f32 %v46, %v49
    %v51 = vmul.f32 %v48, %v49
    %v52 = vadd.f32 %v50, 1e-06
    %v53 = vadd.f32 %v51, 1e-06
    %v54 = vrsqrt.pop %v52
    %v55 = vrsqrt.pop %v53
    %v56 = vmul.f32 %v41, %v54
    %v57 = vmul.f32 %v42, %v55
    %v58 = vld [vmem:[#allocation2] sm:$0x1]
    %v60 = vlaneseq
    %v61 = vshrl.u32 %v60, 7
    %v62 = vsub.s32 0, %v61
    %v63 = vrot.slane %v58, %v62
    %v65 = vmul.f32 %v56, %v63
    %v66 = vmul.f32 %v57, %v63
    %v67 = vpack.c.bf16 %v66, %v65
    %v68 = vld [vmem:[#allocation4] sm:$0xff]
    %v69 = vld [vmem:[#allocation4 + $0x8] sm:$0xff]
    %v70 = vld [vmem:[#allocation4 + $0x10] sm:$0xff]
    %v71 = vld [vmem:[#allocation4 + $0x18] sm:$0xff]
    %v72 = vld [vmem:[#allocation4 + $0x20] sm:$0xff]
    %v73 = vld [vmem:[#allocation4 + $0x28] sm:$0xff]
    %v74 = vld [vmem:[#allocation4 + $0x30] sm:$0xff]
    %v75 = vld [vmem:[#allocation4 + $0x38] sm:$0xff]
    %v76 = vld [vmem:[#allocation4 + $0x40] sm:$0xff]
    %v77 = vld [vmem:[#allocation4 + $0x48] sm:$0xff]
    %v78 = vld [vmem:[#allocation4 + $0x50] sm:$0xff]
    %v79 = vld [vmem:[#allocation4 + $0x58] sm:$0xff]
    %v80 = vld [vmem:[#allocation4 + $0x60] sm:$0xff]
    %v81 = vld [vmem:[#allocation4 + $0x68] sm:$0xff]
    %v82 = vld [vmem:[#allocation4 + $0x70] sm:$0xff]
    %v83 = vld [vmem:[#allocation4 + $0x78] sm:$0xff]
    %v84 = vld [vmem:[#allocation4 + $0x80] sm:$0xff]
    %v85 = vld [vmem:[#allocation4 + $0x88] sm:$0xff]
    %v86 = vld [vmem:[#allocation4 + $0x90] sm:$0xff]
    %v87 = vld [vmem:[#allocation4 + $0x98] sm:$0xff]
    %v88 = vld [vmem:[#allocation4 + $0xa0] sm:$0xff]
    %v89 = vld [vmem:[#allocation4 + $0xa8] sm:$0xff]
    %v90 = vld [vmem:[#allocation4 + $0xb0] sm:$0xff]
    %v91 = vld [vmem:[#allocation4 + $0xb8] sm:$0xff]
    %v92 = vld [vmem:[#allocation4 + $0xc0] sm:$0xff]
    %v93 = vld [vmem:[#allocation4 + $0xc8] sm:$0xff]
    %v94 = vld [vmem:[#allocation4 + $0xd0] sm:$0xff]
    %v95 = vld [vmem:[#allocation4 + $0xd8] sm:$0xff]
    %v96 = vld [vmem:[#allocation4 + $0xe0] sm:$0xff]
    %v97 = vld [vmem:[#allocation4 + $0xe8] sm:$0xff]
    %v98 = vld [vmem:[#allocation4 + $0xf0] sm:$0xff]
    %v99 = vld [vmem:[#allocation4 + $0xf8] sm:$0xff]
    %v132 = vunpack.c.l.b16 %v68
    %v133 = vunpack.c.h.b16 %v68
    %v134 = vunpack.c.l.b16 %v69
    %v135 = vunpack.c.h.b16 %v69
    %v136 = vunpack.c.l.b16 %v70
    %v137 = vunpack.c.h.b16 %v70
    %v138 = vunpack.c.l.b16 %v71
    %v139 = vunpack.c.h.b16 %v71
    %v140 = vunpack.c.l.b16 %v72
    %v141 = vunpack.c.h.b16 %v72
    %v142 = vunpack.c.l.b16 %v73
    %v143 = vunpack.c.h.b16 %v73
    %v144 = vunpack.c.l.b16 %v74
    %v145 = vunpack.c.h.b16 %v74
    %v146 = vunpack.c.l.b16 %v75
    %v147 = vunpack.c.h.b16 %v75
    %v148 = vunpack.c.l.b16 %v76
    %v149 = vunpack.c.h.b16 %v76
    %v150 = vunpack.c.l.b16 %v77
    %v151 = vunpack.c.h.b16 %v77
    %v152 = vunpack.c.l.b16 %v78
    %v153 = vunpack.c.h.b16 %v78
    %v154 = vunpack.c.l.b16 %v79
    %v155 = vunpack.c.h.b16 %v79
    %v156 = vunpack.c.l.b16 %v80
    %v157 = vunpack.c.h.b16 %v80
    %v158 = vunpack.c.l.b16 %v81
    %v159 = vunpack.c.h.b16 %v81
    %v160 = vunpack.c.l.b16 %v82
    %v161 = vunpack.c.h.b16 %v82
    %v162 = vunpack.c.l.b16 %v83
    %v163 = vunpack.c.h.b16 %v83
    %v164 = vunpack.c.l.b16 %v84
    %v165 = vunpack.c.h.b16 %v84
    %v166 = vunpack.c.l.b16 %v85
    %v167 = vunpack.c.h.b16 %v85
    %v168 = vunpack.c.l.b16 %v86
    %v169 = vunpack.c.h.b16 %v86
    %v170 = vunpack.c.l.b16 %v87
    %v171 = vunpack.c.h.b16 %v87
    %v172 = vunpack.c.l.b16 %v88
    %v173 = vunpack.c.h.b16 %v88
    %v174 = vunpack.c.l.b16 %v89
    %v175 = vunpack.c.h.b16 %v89
    %v176 = vunpack.c.l.b16 %v90
    %v177 = vunpack.c.h.b16 %v90
    %v178 = vunpack.c.l.b16 %v91
    %v179 = vunpack.c.h.b16 %v91
    %v180 = vunpack.c.l.b16 %v92
    %v181 = vunpack.c.h.b16 %v92
    %v182 = vunpack.c.l.b16 %v93
    %v183 = vunpack.c.h.b16 %v93
    %v184 = vunpack.c.l.b16 %v94
    %v185 = vunpack.c.h.b16 %v94
    %v186 = vunpack.c.l.b16 %v95
    %v187 = vunpack.c.h.b16 %v95
    %v188 = vunpack.c.l.b16 %v96
    %v189 = vunpack.c.h.b16 %v96
    %v190 = vunpack.c.l.b16 %v97
    %v191 = vunpack.c.h.b16 %v97
    %v192 = vunpack.c.l.b16 %v98
    %v193 = vunpack.c.h.b16 %v98
    %v194 = vunpack.c.l.b16 %v99
    %v195 = vunpack.c.h.b16 %v99
    %v196 = vpack.c.b16 %v136, %v132
    %v197 = vpack.c.b16 %v137, %v133
    %v198 = vpack.c.b16 %v138, %v134
    %v199 = vpack.c.b16 %v139, %v135
    %v200 = vpack.c.b16 %v144, %v140
    %v201 = vpack.c.b16 %v145, %v141
    %v202 = vpack.c.b16 %v146, %v142
    %v203 = vpack.c.b16 %v147, %v143
    %v204 = vpack.c.b16 %v152, %v148
    %v205 = vpack.c.b16 %v153, %v149
    %v206 = vpack.c.b16 %v154, %v150
    %v207 = vpack.c.b16 %v155, %v151
    %v208 = vpack.c.b16 %v160, %v156
    %v209 = vpack.c.b16 %v161, %v157
    %v210 = vpack.c.b16 %v162, %v158
    %v211 = vpack.c.b16 %v163, %v159
    %v212 = vpack.c.b16 %v168, %v164
    %v213 = vpack.c.b16 %v169, %v165
    %v214 = vpack.c.b16 %v170, %v166
    %v215 = vpack.c.b16 %v171, %v167
    %v216 = vpack.c.b16 %v176, %v172
    %v217 = vpack.c.b16 %v177, %v173
    %v218 = vpack.c.b16 %v178, %v174
    %v219 = vpack.c.b16 %v179, %v175
    %v220 = vpack.c.b16 %v184, %v180
    %v221 = vpack.c.b16 %v185, %v181
    %v222 = vpack.c.b16 %v186, %v182
    %v223 = vpack.c.b16 %v187, %v183
    %v224 = vpack.c.b16 %v192, %v188
    %v225 = vpack.c.b16 %v193, %v189
    %v226 = vpack.c.b16 %v194, %v190
    %v227 = vpack.c.b16 %v195, %v191
    %260 = vmatprep.subr.bf16.mxu0 %v197
    %261 = vmatpush1.bf16.msra.mxu0 %v196
    %262 = vmatprep.subr.bf16.mxu0 %v201
    %263 = vmatpush1.bf16.msra.mxu0 %v200
    %264 = vmatprep.subr.bf16.mxu0 %v205
    %265 = vmatpush1.bf16.msra.mxu0 %v204
    %266 = vmatprep.subr.bf16.mxu0 %v209
    %267 = vmatpush1.bf16.msra.mxu0 %v208
    %268 = vmatprep.subr.bf16.mxu0 %v213
    %269 = vmatpush1.bf16.msra.mxu0 %v212
    %270 = vmatprep.subr.bf16.mxu0 %v217
    %271 = vmatpush1.bf16.msra.mxu0 %v216
    %272 = vmatprep.subr.bf16.mxu0 %v221
    %273 = vmatpush1.bf16.msra.mxu0 %v220
    %274 = vmatprep.subr.bf16.mxu0 %v225
    %275 = vmatpush1.bf16.msra.mxu0 %v224
    %276 = vmatprep.subr.bf16.mxu0 0
    %277 = vmatpush1.bf16.msra.mxu0 0
    %278 = vmatprep.subr.bf16.mxu0 0
    %279 = vmatpush1.bf16.msra.mxu0 0
    %280 = vmatprep.subr.bf16.mxu0 0
    %281 = vmatpush1.bf16.msra.mxu0 0
    %282 = vmatprep.subr.bf16.mxu0 0
    %283 = vmatpush1.bf16.msra.mxu0 0
    %284 = vmatprep.subr.bf16.mxu0 0
    %285 = vmatpush1.bf16.msra.mxu0 0
    %286 = vmatprep.subr.bf16.mxu0 0
    %287 = vmatpush1.bf16.msra.mxu0 0
    %288 = vmatprep.subr.bf16.mxu0 0
    %289 = vmatpush1.bf16.msra.mxu0 0
    %290 = vmatprep.subr.bf16.mxu0 0
    %291 = vmatpush1.bf16.msra.mxu0 0
    %292 = vmatprep.mubr.bf16.mxu0 0
    %293 = vmatmul.mubr.bf16.gmra.mrb[0].mxu0 %v67
    %v294 = vpop.f32.mrb[0].mxu0
    %v295 = vadd.f32 0.0, %v294
    %v296 = vpop.f32.mrb[0].mxu0
    %v297 = vadd.f32 0.0, %v296
    %v298 = vpop.f32.mrb[0].mxu0
    %v299 = vadd.f32 0.0, %v298
    %v300 = vpop.f32.mrb[0].mxu0
    %v301 = vadd.f32 0.0, %v300
    %302 = vdwg.mxu0
    %303 = vmatprep.subr.bf16.mxu0 %v199
    %304 = vmatpush1.bf16.msra.mxu0 %v198
    %305 = vmatprep.subr.bf16.mxu0 %v203
    %306 = vmatpush1.bf16.msra.mxu0 %v202
    %307 = vmatprep.subr.bf16.mxu0 %v207
    %308 = vmatpush1.bf16.msra.mxu0 %v206
    %309 = vmatprep.subr.bf16.mxu0 %v211
    %310 = vmatpush1.bf16.msra.mxu0 %v210
    %311 = vmatprep.subr.bf16.mxu0 %v215
    %312 = vmatpush1.bf16.msra.mxu0 %v214
    %313 = vmatprep.subr.bf16.mxu0 %v219
    %314 = vmatpush1.bf16.msra.mxu0 %v218
    %315 = vmatprep.subr.bf16.mxu0 %v223
    %316 = vmatpush1.bf16.msra.mxu0 %v222
    %317 = vmatprep.subr.bf16.mxu0 %v227
    %318 = vmatpush1.bf16.msra.mxu0 %v226
    %319 = vmatprep.subr.bf16.mxu0 0
    %320 = vmatpush1.bf16.msra.mxu0 0
    %321 = vmatprep.subr.bf16.mxu0 0
    %322 = vmatpush1.bf16.msra.mxu0 0
    %323 = vmatprep.subr.bf16.mxu0 0
    %324 = vmatpush1.bf16.msra.mxu0 0
    %325 = vmatprep.subr.bf16.mxu0 0
    %326 = vmatpush1.bf16.msra.mxu0 0
    %327 = vmatprep.subr.bf16.mxu0 0
    %328 = vmatpush1.bf16.msra.mxu0 0
    %329 = vmatprep.subr.bf16.mxu0 0
    %330 = vmatpush1.bf16.msra.mxu0 0
    %331 = vmatprep.subr.bf16.mxu0 0
    %332 = vmatpush1.bf16.msra.mxu0 0
    %333 = vmatprep.subr.bf16.mxu0 0
    %334 = vmatpush1.bf16.msra.mxu0 0
    %335 = vmatprep.mubr.bf16.mxu0 0
    %336 = vmatmul.mubr.bf16.gmra.mrb[0].mxu0 %v67
    %v337 = vpop.f32.mrb[0].mxu0
    %v338 = vadd.f32 0.0, %v337
    %v339 = vpop.f32.mrb[0].mxu0
    %v340 = vadd.f32 0.0, %v339
    %v341 = vpop.f32.mrb[0].mxu0
    %v342 = vadd.f32 0.0, %v341
    %v343 = vpop.f32.mrb[0].mxu0
    %v344 = vadd.f32 0.0, %v343
    %345 = vdwg.mxu0
    %346 = vst [vmem:[%s3] sm:$0xff] %v295
    %347 = vst [vmem:[%s3 + $0x8] sm:$0xff] %v297
    %348 = vst [vmem:[%s3 + $0x10] sm:$0xff] %v338
    %349 = vst [vmem:[%s3 + $0x18] sm:$0xff] %v340
    %350 = vst [vmem:[%s3 + $0x20] sm:$0xff] %v299
    %351 = vst [vmem:[%s3 + $0x28] sm:$0xff] %v301
    %352 = vst [vmem:[%s3 + $0x30] sm:$0xff] %v342
    %353 = vst [vmem:[%s3 + $0x38] sm:$0xff] %v344
    // Predicated region
    $region22: #{llama_forward.19} parent=1 // pred_check
      _
    $region23: #{llama_forward.19} parent=1 // pred_check_branch
      %355 = sbr.rel (0) target = $region25
    $region24: #{llama_forward.19} parent=1 // pred_region
      _
    $region25: #{llama_forward.19} parent=1 // pred_fallthru
      _
    // Predicated region
    $region26: #{llama_forward.19} parent=1 // pred_check
      _
    $region27: #{llama_forward.19} parent=1 // pred_check_branch
      %357 = sbr.rel (0) target = $region29
    $region28: #{llama_forward.19} parent=1 // pred_region
      _
    $region29: #{llama_forward.19} parent=1 // pred_fallthru
      _
    %358 = vsyncpa [#allocation3], 1
    %359 = vsyncpa [#allocation5], 1

// kernel: llama_forward.18
$region0: #{llama_forward.18}
  #allocation0 [shape = 'u32[]', space=smem, size = 0x4, offset = 0x4, fixed_abs, tag = 'smem constant byte address 0x4 - core index']
  #allocation1 [shape = 'u32[144,128]{1,0:T(1,128)}', space=vmem, size = 0x12000, scoped, tag = 'internal scratch']
  #allocation2 [shape = 'f32[16,128]{1,0:T(8,128)}', space=vmem, size = 0x2000, scoped, tag = 'scratch operand']
  %s0 = inlined_call_operand.vmem [shape: f32[16,128], index: 0, kind: input, shape index: {}]
  %s1 = inlined_call_operand.hbm [shape: bf16[128,128], index: 1, kind: input, shape index: {}]
  %s2 = inlined_call_operand.vmem [shape: f32[16,128], index: 2, kind: output, shape index: {}]
  %s3 = sld [smem:[#allocation0]]
  $region30: #{llama_forward.18} parent=0
    _
  %s5 = ssub.s32 1, %s3
  %s6 = scalar_select 0, %s5, %s3
  $region1: #{llama_forward.18} parent=0
    #allocation3 [shape = 'u8[32768]{0}', space=vmem, size = 0x8000, scoped, tag = 'input window, operand 1, single buffered']
    #allocation4 [shape = 's32[1]{0}', space=sflag, size = 0x4, scoped, tag = 'scoped memory for llama_forward.18']
    %7 = vsyncpa [#allocation4], 0
    // Predicated region
    $region2: #{llama_forward.18} parent=1 // pred_check
      _
    $region3: #{llama_forward.18} parent=1 // pred_check_branch
      %9 = sbr.rel (0) target = $region5
    $region4: #{llama_forward.18} parent=1 // pred_region
      _
    $region5: #{llama_forward.18} parent=1 // pred_fallthru
      _
    // Predicated region
    $region6: #{llama_forward.18} parent=1 // pred_check
      _
    $region7: #{llama_forward.18} parent=1 // pred_check_branch
      %11 = sbr.rel (0) target = $region9
    $region8: #{llama_forward.18} parent=1 // pred_region
      %s13 = ssub.s32 1024, 1024
      %14 = vsyncadd [#allocation4], %s13
      %s15 = sshll.u32 [#allocation3], 4
      %s16 = int_to_ptr.vmem [resolvable:$true] %s15
      %21 = dma.hbm_to_vmem [thread:$0]  %s1, 1024, %s16, [#allocation4], 64, 64, 4
    $region9: #{llama_forward.18} parent=1 // pred_fallthru
      _
    // Predicated region
    $region10: #{llama_forward.18} parent=1 // pred_check
      _
    $region11: #{llama_forward.18} parent=1 // pred_check_branch
      %23 = sbr.rel (0) target = $region13
    $region12: #{llama_forward.18} parent=1 // pred_region
      %24 = dma.done [#allocation4], 1024
    $region13: #{llama_forward.18} parent=1 // pred_fallthru
      _
    %p26 = scmp.eq.s32.totalorder 0, 0
    // Predicated region
    $region14: #{llama_forward.18} parent=1 // pred_check
      %p27 = pneg %p26
    $region15: #{llama_forward.18} parent=1 // pred_check_branch
      %29 = sbr.rel (%p27) target = $region17
    $region16: #{llama_forward.18} parent=1 // pred_region
      %30 = vst [vmem:[#allocation2] sm:$0xff] 0.0
      %31 = vst [vmem:[#allocation2 + $0x8] sm:$0xff] 0.0
    $region17: #{llama_forward.18} parent=1 // pred_fallthru
      _
    %v32 = vld [vmem:[#allocation2] sm:$0xff]
    %v33 = vld [vmem:[#allocation2 + $0x8] sm:$0xff]
    %v34 = vld [vmem:[%s0] sm:$0xff]
    %v35 = vld [vmem:[%s0 + $0x8] sm:$0xff]
    %v36 = vpack.c.bf16 %v35, %v34
    %v37 = vld [vmem:[#allocation3] sm:$0xf]
    %v38 = vld [vmem:[#allocation3 + $0x4] sm:$0xf]
    %v39 = vld [vmem:[#allocation3 + $0x8] sm:$0xf]
    %v40 = vld [vmem:[#allocation3 + $0xc] sm:$0xf]
    %v41 = vld [vmem:[#allocation3 + $0x10] sm:$0xf]
    %v42 = vld [vmem:[#allocation3 + $0x14] sm:$0xf]
    %v43 = vld [vmem:[#allocation3 + $0x18] sm:$0xf]
    %v44 = vld [vmem:[#allocation3 + $0x1c] sm:$0xf]
    %v45 = vld [vmem:[#allocation3 + $0x20] sm:$0xf]
    %v46 = vld [vmem:[#allocation3 + $0x24] sm:$0xf]
    %v47 = vld [vmem:[#allocation3 + $0x28] sm:$0xf]
    %v48 = vld [vmem:[#allocation3 + $0x2c] sm:$0xf]
    %v49 = vld [vmem:[#allocation3 + $0x30] sm:$0xf]
    %v50 = vld [vmem:[#allocation3 + $0x34] sm:$0xf]
    %v51 = vld [vmem:[#allocation3 + $0x38] sm:$0xf]
    %v52 = vld [vmem:[#allocation3 + $0x3c] sm:$0xf]
    %v69 = vunpack.c.l.b16 %v37
    %v70 = vunpack.c.l.b16 %v38
    %v71 = vunpack.c.l.b16 %v39
    %v72 = vunpack.c.l.b16 %v40
    %v73 = vunpack.c.l.b16 %v41
    %v74 = vunpack.c.l.b16 %v42
    %v75 = vunpack.c.l.b16 %v43
    %v76 = vunpack.c.l.b16 %v44
    %v77 = vunpack.c.l.b16 %v45
    %v78 = vunpack.c.l.b16 %v46
    %v79 = vunpack.c.l.b16 %v47
    %v80 = vunpack.c.l.b16 %v48
    %v81 = vunpack.c.l.b16 %v49
    %v82 = vunpack.c.l.b16 %v50
    %v83 = vunpack.c.l.b16 %v51
    %v84 = vunpack.c.l.b16 %v52
    %v85 = vpack.c.b16 %v70, %v69
    %v86 = vpack.c.b16 %v72, %v71
    %v87 = vpack.c.b16 %v74, %v73
    %v88 = vpack.c.b16 %v76, %v75
    %v89 = vpack.c.b16 %v78, %v77
    %v90 = vpack.c.b16 %v80, %v79
    %v91 = vpack.c.b16 %v82, %v81
    %v92 = vpack.c.b16 %v84, %v83
    %101 = vmatprep.subr.bf16.mxu0 0
    %102 = vmatpush1.bf16.msra.mxu0 %v85
    %103 = vmatprep.subr.bf16.mxu0 0
    %104 = vmatpush1.bf16.msra.mxu0 %v86
    %105 = vmatprep.subr.bf16.mxu0 0
    %106 = vmatpush1.bf16.msra.mxu0 %v87
    %107 = vmatprep.subr.bf16.mxu0 0
    %108 = vmatpush1.bf16.msra.mxu0 %v88
    %109 = vmatprep.subr.bf16.mxu0 0
    %110 = vmatpush1.bf16.msra.mxu0 %v89
    %111 = vmatprep.subr.bf16.mxu0 0
    %112 = vmatpush1.bf16.msra.mxu0 %v90
    %113 = vmatprep.subr.bf16.mxu0 0
    %114 = vmatpush1.bf16.msra.mxu0 %v91
    %115 = vmatprep.subr.bf16.mxu0 0
    %116 = vmatpush1.bf16.msra.mxu0 %v92
    %117 = vmatprep.subr.bf16.mxu0 0
    %118 = vmatpush1.bf16.msra.mxu0 0
    %119 = vmatprep.subr.bf16.mxu0 0
    %120 = vmatpush1.bf16.msra.mxu0 0
    %121 = vmatprep.subr.bf16.mxu0 0
    %122 = vmatpush1.bf16.msra.mxu0 0
    %123 = vmatprep.subr.bf16.mxu0 0
    %124 = vmatpush1.bf16.msra.mxu0 0
    %125 = vmatprep.subr.bf16.mxu0 0
    %126 = vmatpush1.bf16.msra.mxu0 0
    %127 = vmatprep.subr.bf16.mxu0 0
    %128 = vmatpush1.bf16.msra.mxu0 0
    %129 = vmatprep.subr.bf16.mxu0 0
    %130 = vmatpush1.bf16.msra.mxu0 0
    %131 = vmatprep.subr.bf16.mxu0 0
    %132 = vmatpush1.bf16.msra.mxu0 0
    %133 = vmatprep.mubr.bf16.mxu0 0
    %134 = vmatmul.mubr.bf16.gmra.mrb[0].mxu0 %v36
    %v135 = vpop.f32.mrb[0].mxu0
    %v136 = vadd.f32 0.0, %v135
    %v137 = vpop.f32.mrb[0].mxu0
    %v138 = vpop.f32.mrb[0].mxu0
    %v139 = vadd.f32 0.0, %v138
    %v140 = vpop.f32.mrb[0].mxu0
    %141 = vdwg.mxu0
    %v142 = vadd.f32 %v32, %v136
    %v143 = vadd.f32 %v33, %v139
    %144 = vst [vmem:[#allocation2] sm:$0xff] %v142
    %145 = vst [vmem:[#allocation2 + $0x8] sm:$0xff] %v143
    // Predicated region
    $region18: #{llama_forward.18} parent=1 // pred_check
      %p146 = pneg %p26
    $region19: #{llama_forward.18} parent=1 // pred_check_branch
      %148 = sbr.rel (%p146) target = $region21
    $region20: #{llama_forward.18} parent=1 // pred_region
      %v149 = vld [vmem:[#allocation2] sm:$0xff]
      %v150 = vld [vmem:[#allocation2 + $0x8] sm:$0xff]
      %151 = vst [vmem:[%s2] sm:$0xff] %v149
      %152 = vst [vmem:[%s2 + $0x8] sm:$0xff] %v150
    $region21: #{llama_forward.18} parent=1 // pred_fallthru
      _
    // Predicated region
    $region22: #{llama_forward.18} parent=1 // pred_check
      _
    $region23: #{llama_forward.18} parent=1 // pred_check_branch
      %154 = sbr.rel (0) target = $region25
    $region24: #{llama_forward.18} parent=1 // pred_region
      _
    $region25: #{llama_forward.18} parent=1 // pred_fallthru
      _
    // Predicated region
    $region26: #{llama_forward.18} parent=1 // pred_check
      _
    $region27: #{llama_forward.18} parent=1 // pred_check_branch
      %156 = sbr.rel (0) target = $region29
    $region28: #{llama_forward.18} parent=1 // pred_region
      _
    $region29: #{llama_forward.18} parent=1 // pred_fallthru
      _
    %157 = vsyncpa [#allocation4], 1

// kernel: llama_forward.17
$region0: #{llama_forward.17}
  #allocation0 [shape = 'u32[]', space=smem, size = 0x4, offset = 0x4, fixed_abs, tag = 'smem constant byte address 0x4 - core index']
  #allocation1 [shape = 'u32[144,128]{1,0:T(1,128)}', space=vmem, size = 0x12000, scoped, tag = 'internal scratch']
  %s0 = inlined_call_operand.vmem [shape: f32[2,8,384], index: 0, kind: input, shape index: {}]
  %s1 = inlined_call_operand.vmem [shape: f32[8,128], index: 1, kind: input, shape index: {}]
  %s2 = inlined_call_operand.vmem [shape: f32[8,128], index: 2, kind: input, shape index: {}]
  %s3 = inlined_call_operand.vmem [shape: f32[2,8,128], index: 3, kind: output, shape index: {}]
  %s4 = sld [smem:[#allocation0]]
  $region45: #{llama_forward.17} parent=0
    _
  %s6 = ssub.s32 1, %s4
  %s7 = scalar_select 0, %s6, %s4
  loop: start=0, step=1, limit=4
  $region2: #{llama_forward.17} parent=0 // loop_pre_header
    _
  $region3: #{llama_forward.17} parent=0 // loop_header
    %s9 = sphi 0, %s13
    %p10 = scmp.ge.s32.totalorder %s9, 4
    %s19 = sphi 0, %s21
    %s22 = sphi 0, %s19
    %s23 = sphi 0, %s22
    %s39 = sphi 0, %s23
    %s43 = sphi 0, %s43
    %s45 = sphi 0, %s43
    %s46 = sphi 0, %s45
    %s60 = sphi 0, %s46
    %s64 = sphi 0, %s64
    %s66 = sphi 0, %s64
    %s67 = sphi 0, %s66
    %s81 = sphi 0, %s67
    %s87 = sphi 0, %s89
    %s90 = sphi 0, %s87
    %s91 = sphi 0, %s90
    %s107 = sphi 0, %s91
  $region4: #{llama_forward.17} parent=0 // loop_header_branch
    %12 = sbr.rel (%p10) target = $region8
  $region5: #{llama_forward.17} parent=0 // loop_body
    %s14 = ssub.s32 %s9, 1
    %s15 = ssub.s32 %s9, 2
    %s16 = sadd.s32 %s9, 1
    %s17 = ssub.s32 %s9, %s16
    %p18 = scmp.eq.s32.totalorder %s17, 0
    %s20 = sadd.s32 %s19, 1
    %s21 = scalar_select %p18, %s19, %s20
    %p24 = pneg %p18
    %p25 = scmp.eq.s32.totalorder %s9, 1
    %p26 = por %p24, %p25
    %p27 = scmp.ne.s32.totalorder %s19, %s22
    %p28 = scmp.eq.s32.totalorder %s9, 0
    %p29 = por %p27, %p28
    %p30 = scmp.ne.s32.totalorder %s19, %s22
    %p31 = scmp.eq.s32.totalorder %s14, 1
    %p32 = por %p30, %p31
    %p33 = scmp.ne.s32.totalorder %s22, %s23
    %p34 = scmp.eq.s32.totalorder %s14, 0
    %p35 = por %p33, %p34
    %p36 = scmp.ne.s32.totalorder %s22, %s23
    %p37 = scmp.eq.s32.totalorder %s15, 1
    %p38 = por %p36, %p37
    %p40 = scmp.ne.s32.totalorder %s23, %s39
    %p41 = scmp.eq.s32.totalorder %s15, 0
    %p42 = por %p40, %p41
    %s44 = sadd.s32 %s43, 1
    %p47 = scmp.eq.s32.totalorder %s9, 1
    %p48 = scmp.ne.s32.totalorder %s43, %s45
    %p49 = scmp.eq.s32.totalorder %s9, 0
    %p50 = por %p48, %p49
    %p51 = scmp.ne.s32.totalorder %s43, %s45
    %p52 = scmp.eq.s32.totalorder %s14, 1
    %p53 = por %p51, %p52
    %p54 = scmp.ne.s32.totalorder %s45, %s46
    %p55 = scmp.eq.s32.totalorder %s14, 0
    %p56 = por %p54, %p55
    %p57 = scmp.ne.s32.totalorder %s45, %s46
    %p58 = scmp.eq.s32.totalorder %s15, 1
    %p59 = por %p57, %p58
    %p61 = scmp.ne.s32.totalorder %s46, %s60
    %p62 = scmp.eq.s32.totalorder %s15, 0
    %p63 = por %p61, %p62
    %s65 = sadd.s32 %s64, 1
    %p68 = scmp.eq.s32.totalorder %s9, 1
    %p69 = scmp.ne.s32.totalorder %s64, %s66
    %p70 = scmp.eq.s32.totalorder %s9, 0
    %p71 = por %p69, %p70
    %p72 = scmp.ne.s32.totalorder %s64, %s66
    %p73 = scmp.eq.s32.totalorder %s14, 1
    %p74 = por %p72, %p73
    %p75 = scmp.ne.s32.totalorder %s66, %s67
    %p76 = scmp.eq.s32.totalorder %s14, 0
    %p77 = por %p75, %p76
    %p78 = scmp.ne.s32.totalorder %s66, %s67
    %p79 = scmp.eq.s32.totalorder %s15, 1
    %p80 = por %p78, %p79
    %p82 = scmp.ne.s32.totalorder %s67, %s81
    %p83 = scmp.eq.s32.totalorder %s15, 0
    %p84 = por %p82, %p83
    %s85 = ssub.s32 %s9, %s16
    %p86 = scmp.eq.s32.totalorder %s85, 0
    %s88 = sadd.s32 %s87, 1
    %s89 = scalar_select %p86, %s87, %s88
    %p92 = pneg %p86
    %p93 = scmp.eq.s32.totalorder %s9, 1
    %p94 = por %p92, %p93
    %p95 = scmp.ne.s32.totalorder %s87, %s90
    %p96 = scmp.eq.s32.totalorder %s9, 0
    %p97 = por %p95, %p96
    %p98 = scmp.ne.s32.totalorder %s87, %s90
    %p99 = scmp.eq.s32.totalorder %s14, 1
    %p100 = por %p98, %p99
    %p101 = scmp.ne.s32.totalorder %s90, %s91
    %p102 = scmp.eq.s32.totalorder %s14, 0
    %p103 = por %p101, %p102
    %p104 = scmp.ne.s32.totalorder %s90, %s91
    %p105 = scmp.eq.s32.totalorder %s15, 1
    %p106 = por %p104, %p105
    %p108 = scmp.ne.s32.totalorder %s91, %s107
    %p109 = scmp.eq.s32.totalorder %s15, 0
    %p110 = por %p108, %p109
    %p111 = scmp.le.s32.totalorder 1, %s9
    %p112 = scmp.lt.s32.totalorder %s9, 3
    %p113 = pnand %p111, %p112
    %p114 = pneg %p113
    // Predicated region
    $region9: #{llama_forward.17} parent=5 // pred_check
      _
    $region10: #{llama_forward.17} parent=5 // pred_check_branch
      %116 = sbr.rel (%p113) target = $region12
    $region11: #{llama_forward.17} parent=5 // pred_region
      %s117 = ssub.s32 %s9, 1
      // Predicated region
      $region13: #{llama_forward.17} parent=11 // pred_check
        %p118 = pneg %p56
      $region14: #{llama_forward.17} parent=11 // pred_check_branch
        %120 = sbr.rel (%p118) target = $region16
      $region15: #{llama_forward.17} parent=11 // pred_region
        _
      $region16: #{llama_forward.17} parent=11 // pred_fallthru
        _
      // Predicated region
      $region17: #{llama_forward.17} parent=11 // pred_check
        %p121 = pneg %p77
      $region18: #{llama_forward.17} parent=11 // pred_check_branch
        %123 = sbr.rel (%p121) target = $region20
      $region19: #{llama_forward.17} parent=11 // pred_region
        _
      $region20: #{llama_forward.17} parent=11 // pred_fallthru
        _
    $region12: #{llama_forward.17} parent=5 // pred_fallthru
      _
    %p124 = scmp.lt.s32.totalorder %s9, 2
    // Predicated region
    $region21: #{llama_forward.17} parent=5 // pred_check
      %p125 = pneg %p124
    $region22: #{llama_forward.17} parent=5 // pred_check_branch
      %127 = sbr.rel (%p125) target = $region24
    $region23: #{llama_forward.17} parent=5 // pred_region
      // Predicated region
      $region25: #{llama_forward.17} parent=23 // pred_check
        %p128 = pneg %p29
      $region26: #{llama_forward.17} parent=23 // pred_check_branch
        %130 = sbr.rel (%p128) target = $region28
      $region27: #{llama_forward.17} parent=23 // pred_region
        %p131 = scmp.lt.s32.totalorder %s9, 1
        %s132 = scalar_select %p131, %s9, 1
        %s133 = smul.addr %s132, 3
        %s134 = smul.addr %s133, 8
        %s135 = scalar_lea.vmem %s0, %s134
      $region28: #{llama_forward.17} parent=23 // pred_fallthru
        _
    $region24: #{llama_forward.17} parent=5 // pred_fallthru
      _
    %p136 = scmp.le.s32.totalorder 1, %s9
    %p137 = scmp.lt.s32.totalorder %s9, 3
    %p138 = pnand %p136, %p137
    %p139 = pneg %p138
    // Predicated region
    $region29: #{llama_forward.17} parent=5 // pred_check
      _
    $region30: #{llama_forward.17} parent=5 // pred_check_branch
      %141 = sbr.rel (%p138) target = $region32
    $region31: #{llama_forward.17} parent=5 // pred_region
      %s142 = ssub.s32 %s9, 1
      %p143 = scmp.lt.s32.totalorder %s14, 1
      %s144 = scalar_select %p143, %s14, 1
      %s145 = smul.addr %s144, 3
      %s146 = smul.addr %s145, 8
      %s147 = scalar_lea.vmem %s0, %s146
      %p148 = pneg %p35
      %p149 = pneg %p32
      %p150 = pneg %p56
      %p151 = pneg %p53
      %p152 = pneg %p77
      %p153 = pneg %p74
      %p154 = pneg %p103
      %p155 = pneg %p100
      %p156 = scmp.lt.s32.totalorder %s14, 1
      %s157 = scalar_select %p156, %s14, 1
      %s158 = smul.addr %s157, 8
      %s159 = scalar_lea.vmem %s3, %s158
      %p160 = scmp.lt.s32.totalorder %s14, 1
      %s161 = scalar_select %p160, %s14, 1
      %s162 = smul.addr %s161, 3
      %s163 = smul.addr %s162, 8
      %s164 = scalar_lea.vmem %s0, %s163
      %p165 = scmp.lt.s32.totalorder %s14, 1
      %s166 = scalar_select %p165, %s14, 1
      %s167 = smul.addr %s166, 8
      %s168 = scalar_lea.vmem %s3, %s167
      %v170 = vld [vmem:[%s164] sm:$0xff]
      %v171 = vld [vmem:[%s164 + $0x8] sm:$0xff]
      %v172 = vld [vmem:[%s164 + $0x10] sm:$0xff]
      %v173 = vlaneseq
      %v174 = vshrl.u32 %v173, 7
      %v175 = vadd.s32 %v174, 8
      %v176 = vadd.s32 %v174, 16
      %v177 = vadd.s32 %v174, 24
      %v178 = vadd.s32 %v174, 32
      %v179 = vadd.s32 %v174, 40
      %v180 = vadd.s32 %v174, 48
      %v181 = vadd.s32 %v174, 56
      %v182 = vadd.s32 %v174, 64
      %v183 = vadd.s32 %v174, 72
      %v184 = vadd.s32 %v174, 80
      %v185 = vadd.s32 %v174, 88
      %v186 = vadd.s32 %v174, 96
      %v187 = vadd.s32 %v174, 104
      %v188 = vadd.s32 %v174, 112
      %v189 = vadd.s32 %v174, 120
      %v190 = vlaneseq
      %v191 = vand.u32 %v190, 127
      %v192 = vadd.s32 %v174, 1
      %v193 = vadd.s32 %v175, 1
      %v194 = vadd.s32 %v176, 1
      %v195 = vadd.s32 %v177, 1
      %v196 = vadd.s32 %v178, 1
      %v197 = vadd.s32 %v179, 1
      %v198 = vadd.s32 %v180, 1
      %v199 = vadd.s32 %v181, 1
      %v200 = vadd.s32 %v182, 1
      %v201 = vadd.s32 %v183, 1
      %v202 = vadd.s32 %v184, 1
      %v203 = vadd.s32 %v185, 1
      %v204 = vadd.s32 %v186, 1
      %v205 = vadd.s32 %v187, 1
      %v206 = vadd.s32 %v188, 1
      %v207 = vadd.s32 %v189, 1
      %vm208 = vcmp.lt.s32.totalorder %v174, 0
      %v209 = vsub.s32 0, %v174
      %v210 = vsel %vm208, %v209, %v174
      %v211 = vshrl.u32 %v210, 1
      %v212 = vand.u32 %v210, 1
      %v213 = vsub.s32 0, %v212
      %v214 = vsel %vm208, %v213, %v212
      %vm215 = vcmp.lt.s32.totalorder %v175, 0
      %v216 = vsub.s32 0, %v175
      %v217 = vsel %vm215, %v216, %v175
      %v218 = vshrl.u32 %v217, 1
      %v219 = vand.u32 %v217, 1
      %v220 = vsub.s32 0, %v219
      %v221 = vsel %vm215, %v220, %v219
      %vm222 = vcmp.lt.s32.totalorder %v176, 0
      %v223 = vsub.s32 0, %v176
      %v224 = vsel %vm222, %v223, %v176
      %v225 = vshrl.u32 %v224, 1
      %v226 = vand.u32 %v224, 1
      %v227 = vsub.s32 0, %v226
      %v228 = vsel %vm222, %v227, %v226
      %vm229 = vcmp.lt.s32.totalorder %v177, 0
      %v230 = vsub.s32 0, %v177
      %v231 = vsel %vm229, %v230, %v177
      %v232 = vshrl.u32 %v231, 1
      %v233 = vand.u32 %v231, 1
      %v234 = vsub.s32 0, %v233
      %v235 = vsel %vm229, %v234, %v233
      %vm236 = vcmp.lt.s32.totalorder %v178, 0
      %v237 = vsub.s32 0, %v178
      %v238 = vsel %vm236, %v237, %v178
      %v239 = vshrl.u32 %v238, 1
      %v240 = vand.u32 %v238, 1
      %v241 = vsub.s32 0, %v240
      %v242 = vsel %vm236, %v241, %v240
      %vm243 = vcmp.lt.s32.totalorder %v179, 0
      %v244 = vsub.s32 0, %v179
      %v245 = vsel %vm243, %v244, %v179
      %v246 = vshrl.u32 %v245, 1
      %v247 = vand.u32 %v245, 1
      %v248 = vsub.s32 0, %v247
      %v249 = vsel %vm243, %v248, %v247
      %vm250 = vcmp.lt.s32.totalorder %v180, 0
      %v251 = vsub.s32 0, %v180
      %v252 = vsel %vm250, %v251, %v180
      %v253 = vshrl.u32 %v252, 1
      %v254 = vand.u32 %v252, 1
      %v255 = vsub.s32 0, %v254
      %v256 = vsel %vm250, %v255, %v254
      %vm257 = vcmp.lt.s32.totalorder %v181, 0
      %v258 = vsub.s32 0, %v181
      %v259 = vsel %vm257, %v258, %v181
      %v260 = vshrl.u32 %v259, 1
      %v261 = vand.u32 %v259, 1
      %v262 = vsub.s32 0, %v261
      %v263 = vsel %vm257, %v262, %v261
      %vm264 = vcmp.lt.s32.totalorder %v182, 0
      %v265 = vsub.s32 0, %v182
      %v266 = vsel %vm264, %v265, %v182
      %v267 = vshrl.u32 %v266, 1
      %v268 = vand.u32 %v266, 1
      %v269 = vsub.s32 0, %v268
      %v270 = vsel %vm264, %v269, %v268
      %vm271 = vcmp.lt.s32.totalorder %v183, 0
      %v272 = vsub.s32 0, %v183
      %v273 = vsel %vm271, %v272, %v183
      %v274 = vshrl.u32 %v273, 1
      %v275 = vand.u32 %v273, 1
      %v276 = vsub.s32 0, %v275
      %v277 = vsel %vm271, %v276, %v275
      %vm278 = vcmp.lt.s32.totalorder %v184, 0
      %v279 = vsub.s32 0, %v184
      %v280 = vsel %vm278, %v279, %v184
      %v281 = vshrl.u32 %v280, 1
      %v282 = vand.u32 %v280, 1
      %v283 = vsub.s32 0, %v282
      %v284 = vsel %vm278, %v283, %v282
      %vm285 = vcmp.lt.s32.totalorder %v185, 0
      %v286 = vsub.s32 0, %v185
      %v287 = vsel %vm285, %v286, %v185
      %v288 = vshrl.u32 %v287, 1
      %v289 = vand.u32 %v287, 1
      %v290 = vsub.s32 0, %v289
      %v291 = vsel %vm285, %v290, %v289
      %vm292 = vcmp.lt.s32.totalorder %v186, 0
      %v293 = vsub.s32 0, %v186
      %v294 = vsel %vm292, %v293, %v186
      %v295 = vshrl.u32 %v294, 1
      %v296 = vand.u32 %v294, 1
      %v297 = vsub.s32 0, %v296
      %v298 = vsel %vm292, %v297, %v296
      %vm299 = vcmp.lt.s32.totalorder %v187, 0
      %v300 = vsub.s32 0, %v187
      %v301 = vsel %vm299, %v300, %v187
      %v302 = vshrl.u32 %v301, 1
      %v303 = vand.u32 %v301, 1
      %v304 = vsub.s32 0, %v303
      %v305 = vsel %vm299, %v304, %v303
      %vm306 = vcmp.lt.s32.totalorder %v188, 0
      %v307 = vsub.s32 0, %v188
      %v308 = vsel %vm306, %v307, %v188
      %v309 = vshrl.u32 %v308, 1
      %v310 = vand.u32 %v308, 1
      %v311 = vsub.s32 0, %v310
      %v312 = vsel %vm306, %v311, %v310
      %vm313 = vcmp.lt.s32.totalorder %v189, 0
      %v314 = vsub.s32 0, %v189
      %v315 = vsel %vm313, %v314, %v189
      %v316 = vshrl.u32 %v315, 1
      %v317 = vand.u32 %v315, 1
      %v318 = vsub.s32 0, %v317
      %v319 = vsel %vm313, %v318, %v317
      %vm320 = vcmp.ne.s32.totalorder %v214, 0
      %vm321 = vcmp.ne.s32.totalorder %v221, 0
      %vm322 = vcmp.ne.s32.totalorder %v228, 0
      %vm323 = vcmp.ne.s32.totalorder %v235, 0
      %vm324 = vcmp.ne.s32.totalorder %v242, 0
      %vm325 = vcmp.ne.s32.totalorder %v249, 0
      %vm326 = vcmp.ne.s32.totalorder %v256, 0
      %vm327 = vcmp.ne.s32.totalorder %v263, 0
      %vm328 = vcmp.ne.s32.totalorder %v270, 0
      %vm329 = vcmp.ne.s32.totalorder %v277, 0
      %vm330 = vcmp.ne.s32.totalorder %v284, 0
      %vm331 = vcmp.ne.s32.totalorder %v291, 0
      %vm332 = vcmp.ne.s32.totalorder %v298, 0
      %vm333 = vcmp.ne.s32.totalorder %v305, 0
      %vm334 = vcmp.ne.s32.totalorder %v312, 0
      %vm335 = vcmp.ne.s32.totalorder %v319, 0
      %vm336 = vcmp.lt.s32.totalorder %v214, 0
      %vm337 = vcmp.lt.s32.totalorder %v221, 0
      %vm338 = vcmp.lt.s32.totalorder %v228, 0
      %vm339 = vcmp.lt.s32.totalorder %v235, 0
      %vm340 = vcmp.lt.s32.totalorder %v242, 0
      %vm341 = vcmp.lt.s32.totalorder %v249, 0
      %vm342 = vcmp.lt.s32.totalorder %v256, 0
      %vm343 = vcmp.lt.s32.totalorder %v263, 0
      %vm344 = vcmp.lt.s32.totalorder %v270, 0
      %vm345 = vcmp.lt.s32.totalorder %v277, 0
      %vm346 = vcmp.lt.s32.totalorder %v284, 0
      %vm347 = vcmp.lt.s32.totalorder %v291, 0
      %vm348 = vcmp.lt.s32.totalorder %v298, 0
      %vm349 = vcmp.lt.s32.totalorder %v305, 0
      %vm350 = vcmp.lt.s32.totalorder %v312, 0
      %vm351 = vcmp.lt.s32.totalorder %v319, 0
      %vm352 = vmand %vm336, %vm320
      %vm353 = vmand %vm337, %vm321
      %vm354 = vmand %vm338, %vm322
      %vm355 = vmand %vm339, %vm323
      %vm356 = vmand %vm340, %vm324
      %vm357 = vmand %vm341, %vm325
      %vm358 = vmand %vm342, %vm326
      %vm359 = vmand %vm343, %vm327
      %vm360 = vmand %vm344, %vm328
      %vm361 = vmand %vm345, %vm329
      %vm362 = vmand %vm346, %vm330
      %vm363 = vmand %vm347, %vm331
      %vm364 = vmand %vm348, %vm332
      %vm365 = vmand %vm349, %vm333
      %vm366 = vmand %vm350, %vm334
      %vm367 = vmand %vm351, %vm335
      %v368 = vadd.s32 %v214, 2
      %v369 = vadd.s32 %v221, 2
      %v370 = vadd.s32 %v228, 2
      %v371 = vadd.s32 %v235, 2
      %v372 = vadd.s32 %v242, 2
      %v373 = vadd.s32 %v249, 2
      %v374 = vadd.s32 %v256, 2
      %v375 = vadd.s32 %v263, 2
      %v376 = vadd.s32 %v270, 2
      %v377 = vadd.s32 %v277, 2
      %v378 = vadd.s32 %v284, 2
      %v379 = vadd.s32 %v291, 2
      %v380 = vadd.s32 %v298, 2
      %v381 = vadd.s32 %v305, 2
      %v382 = vadd.s32 %v312, 2
      %v383 = vadd.s32 %v319, 2
      %v384 = vsel %vm352, %v368, %v214
      %v385 = vsel %vm353, %v369, %v221
      %v386 = vsel %vm354, %v370, %v228
      %v387 = vsel %vm355, %v371, %v235
      %v388 = vsel %vm356, %v372, %v242
      %v389 = vsel %vm357, %v373, %v249
      %v390 = vsel %vm358, %v374, %v256
      %v391 = vsel %vm359, %v375, %v263
      %v392 = vsel %vm360, %v376, %v270
      %v393 = vsel %vm361, %v377, %v277
      %v394 = vsel %vm362, %v378, %v284
      %v395 = vsel %vm363, %v379, %v291
      %v396 = vsel %vm364, %v380, %v298
      %v397 = vsel %vm365, %v381, %v305
      %v398 = vsel %vm366, %v382, %v312
      %v399 = vsel %vm367, %v383, %v319
      %v400 = vmul.u32 %v384, 2
      %v401 = vmul.u32 %v385, 2
      %v402 = vmul.u32 %v386, 2
      %v403 = vmul.u32 %v387, 2
      %v404 = vmul.u32 %v388, 2
      %v405 = vmul.u32 %v389, 2
      %v406 = vmul.u32 %v390, 2
      %v407 = vmul.u32 %v391, 2
      %v408 = vmul.u32 %v392, 2
      %v409 = vmul.u32 %v393, 2
      %v410 = vmul.u32 %v394, 2
      %v411 = vmul.u32 %v395, 2
      %v412 = vmul.u32 %v396, 2
      %v413 = vmul.u32 %v397, 2
      %v414 = vmul.u32 %v398, 2
      %v415 = vmul.u32 %v399, 2
      %v416 = vsub.s32 %v192, %v400
      %v417 = vsub.s32 %v193, %v401
      %v418 = vsub.s32 %v194, %v402
      %v419 = vsub.s32 %v195, %v403
      %v420 = vsub.s32 %v196, %v404
      %v421 = vsub.s32 %v197, %v405
      %v422 = vsub.s32 %v198, %v406
      %v423 = vsub.s32 %v199, %v407
      %v424 = vsub.s32 %v200, %v408
      %v425 = vsub.s32 %v201, %v409
      %v426 = vsub.s32 %v202, %v410
      %v427 = vsub.s32 %v203, %v411
      %v428 = vsub.s32 %v204, %v412
      %v429 = vsub.s32 %v205, %v413
      %v430 = vsub.s32 %v206, %v414
      %v431 = vsub.s32 %v207, %v415
      %vm432 = vcmp.eq.s32.totalorder %v191, %v416
      %vm433 = vcmp.eq.s32.totalorder %v191, %v417
      %vm434 = vcmp.eq.s32.totalorder %v191, %v418
      %vm435 = vcmp.eq.s32.totalorder %v191, %v419
      %vm436 = vcmp.eq.s32.totalorder %v191, %v420
      %vm437 = vcmp.eq.s32.totalorder %v191, %v421
      %vm438 = vcmp.eq.s32.totalorder %v191, %v422
      %vm439 = vcmp.eq.s32.totalorder %v191, %v423
      %vm440 = vcmp.eq.s32.totalorder %v191, %v424
      %vm441 = vcmp.eq.s32.totalorder %v191, %v425
      %vm442 = vcmp.eq.s32.totalorder %v191, %v426
      %vm443 = vcmp.eq.s32.totalorder %v191, %v427
      %vm444 = vcmp.eq.s32.totalorder %v191, %v428
      %vm445 = vcmp.eq.s32.totalorder %v191, %v429
      %vm446 = vcmp.eq.s32.totalorder %v191, %v430
      %vm447 = vcmp.eq.s32.totalorder %v191, %v431
      %v448 = vsel %vm432, 1, 0
      %v449 = vsel %vm433, 1, 0
      %v450 = vsel %vm434, 1, 0
      %v451 = vsel %vm435, 1, 0
      %v452 = vsel %vm436, 1, 0
      %v453 = vsel %vm437, 1, 0
      %v454 = vsel %vm438, 1, 0
      %v455 = vsel %vm439, 1, 0
      %v456 = vsel %vm440, 1, 0
      %v457 = vsel %vm441, 1, 0
      %v458 = vsel %vm442, 1, 0
      %v459 = vsel %vm443, 1, 0
      %v460 = vsel %vm444, 1, 0
      %v461 = vsel %vm445, 1, 0
      %v462 = vsel %vm446, 1, 0
      %v463 = vsel %vm447, 1, 0
      %v464 = vcvt.s32.f32 %v448
      %v465 = vcvt.s32.f32 %v449
      %v466 = vcvt.s32.f32 %v450
      %v467 = vcvt.s32.f32 %v451
      %v468 = vcvt.s32.f32 %v452
      %v469 = vcvt.s32.f32 %v453
      %v470 = vcvt.s32.f32 %v454
      %v471 = vcvt.s32.f32 %v455
      %v472 = vcvt.s32.f32 %v456
      %v473 = vcvt.s32.f32 %v457
      %v474 = vcvt.s32.f32 %v458
      %v475 = vcvt.s32.f32 %v459
      %v476 = vcvt.s32.f32 %v460
      %v477 = vcvt.s32.f32 %v461
      %v478 = vcvt.s32.f32 %v462
      %v479 = vcvt.s32.f32 %v463
      %v480 = vld [vmem:[%s1] sm:$0xff]
      %v481 = vld [vmem:[%s2] sm:$0xff]
      %482 = vmatprep.subr.mxu0 0.0
      %483 = vmatpush1.msra.mxu0 %v464
      %484 = vmatprep.subr.mxu0 0.0
      %485 = vmatpush1.msra.mxu0 %v465
      %486 = vmatprep.subr.mxu0 0.0
      %487 = vmatpush1.msra.mxu0 %v466
      %488 = vmatprep.subr.mxu0 0.0
      %489 = vmatpush1.msra.mxu0 %v467
      %490 = vmatprep.subr.mxu0 0.0
      %491 = vmatpush1.msra.mxu0 %v468
      %492 = vmatprep.subr.mxu0 0.0
      %493 = vmatpush1.msra.mxu0 %v469
      %494 = vmatprep.subr.mxu0 0.0
      %495 = vmatpush1.msra.mxu0 %v470
      %496 = vmatprep.subr.mxu0 0.0
      %497 = vmatpush1.msra.mxu0 %v471
      %498 = vmatprep.subr.mxu0 0.0
      %499 = vmatpush1.msra.mxu0 %v472
      %500 = vmatprep.subr.mxu0 0.0
      %501 = vmatpush1.msra.mxu0 %v473
      %502 = vmatprep.subr.mxu0 0.0
      %503 = vmatpush1.msra.mxu0 %v474
      %504 = vmatprep.subr.mxu0 0.0
      %505 = vmatpush1.msra.mxu0 %v475
      %506 = vmatprep.subr.mxu0 0.0
      %507 = vmatpush1.msra.mxu0 %v476
      %508 = vmatprep.subr.mxu0 0.0
      %509 = vmatpush1.msra.mxu0 %v477
      %510 = vmatprep.subr.mxu0 0.0
      %511 = vmatpush1.msra.mxu0 %v478
      %512 = vmatprep.subr.mxu0 0.0
      %513 = vmatpush1.msra.mxu0 %v479
      %514 = vmatprep.subr.mxu0 0.0
      %515 = vmatpush1.msra.mxu0 0.0
      %516 = vmatprep.subr.mxu0 0.0
      %517 = vmatpush1.msra.mxu0 0.0
      %518 = vmatprep.subr.mxu0 0.0
      %519 = vmatpush1.msra.mxu0 0.0
      %520 = vmatprep.subr.mxu0 0.0
      %521 = vmatpush1.msra.mxu0 0.0
      %522 = vmatprep.subr.mxu0 0.0
      %523 = vmatpush1.msra.mxu0 0.0
      %524 = vmatprep.subr.mxu0 0.0
      %525 = vmatpush1.msra.mxu0 0.0
      %526 = vmatprep.subr.mxu0 0.0
      %527 = vmatpush1.msra.mxu0 0.0
      %528 = vmatprep.subr.mxu0 0.0
      %529 = vmatpush1.msra.mxu0 0.0
      %530 = vmatprep.subr.mxu0 0.0
      %531 = vmatpush1.msra.mxu0 0.0
      %532 = vmatprep.subr.mxu0 0.0
      %533 = vmatpush1.msra.mxu0 0.0
      %534 = vmatprep.subr.mxu0 0.0
      %535 = vmatpush1.msra.mxu0 0.0
      %536 = vmatprep.subr.mxu0 0.0
      %537 = vmatpush1.msra.mxu0 0.0
      %538 = vmatprep.subr.mxu0 0.0
      %539 = vmatpush1.msra.mxu0 0.0
      %540 = vmatprep.subr.mxu0 0.0
      %541 = vmatpush1.msra.mxu0 0.0
      %542 = vmatprep.subr.mxu0 0.0
      %543 = vmatpush1.msra.mxu0 0.0
      %544 = vmatprep.subr.mxu0 0.0
      %545 = vmatpush1.msra.mxu0 0.0
      %546 = vmatprep.mubr.f32.mxu0 0.0
      %547 = vmatmul.mubr.f32.gmra.mrb[0].mxu0 %v170
      %v548 = vpop.f32.mrb[0].mxu0
      %v549 = vadd.f32 0.0, %v548
      %v550 = vpop.f32.mrb[0].mxu0
      %551 = vdwg.mxu0
      %v552 = vmul.f32 %v170, %v480
      %v553 = vmul.f32 %v549, %v481
      %v554 = vadd.f32 %v552, %v553
      %555 = vmatprep.subr.mxu0 0.0
      %556 = vmatpush1.msra.mxu0 %v464
      %557 = vmatprep.subr.mxu0 0.0
      %558 = vmatpush1.msra.mxu0 %v465
      %559 = vmatprep.subr.mxu0 0.0
      %560 = vmatpush1.msra.mxu0 %v466
      %561 = vmatprep.subr.mxu0 0.0
      %562 = vmatpush1.msra.mxu0 %v467
      %563 = vmatprep.subr.mxu0 0.0
      %564 = vmatpush1.msra.mxu0 %v468
      %565 = vmatprep.subr.mxu0 0.0
      %566 = vmatpush1.msra.mxu0 %v469
      %567 = vmatprep.subr.mxu0 0.0
      %568 = vmatpush1.msra.mxu0 %v470
      %569 = vmatprep.subr.mxu0 0.0
      %570 = vmatpush1.msra.mxu0 %v471
      %571 = vmatprep.subr.mxu0 0.0
      %572 = vmatpush1.msra.mxu0 %v472
      %573 = vmatprep.subr.mxu0 0.0
      %574 = vmatpush1.msra.mxu0 %v473
      %575 = vmatprep.subr.mxu0 0.0
      %576 = vmatpush1.msra.mxu0 %v474
      %577 = vmatprep.subr.mxu0 0.0
      %578 = vmatpush1.msra.mxu0 %v475
      %579 = vmatprep.subr.mxu0 0.0
      %580 = vmatpush1.msra.mxu0 %v476
      %581 = vmatprep.subr.mxu0 0.0
      %582 = vmatpush1.msra.mxu0 %v477
      %583 = vmatprep.subr.mxu0 0.0
      %584 = vmatpush1.msra.mxu0 %v478
      %585 = vmatprep.subr.mxu0 0.0
      %586 = vmatpush1.msra.mxu0 %v479
      %587 = vmatprep.subr.mxu0 0.0
      %588 = vmatpush1.msra.mxu0 0.0
      %589 = vmatprep.subr.mxu0 0.0
      %590 = vmatpush1.msra.mxu0 0.0
      %591 = vmatprep.subr.mxu0 0.0
      %592 = vmatpush1.msra.mxu0 0.0
      %593 = vmatprep.subr.mxu0 0.0
      %594 = vmatpush1.msra.mxu0 0.0
      %595 = vmatprep.subr.mxu0 0.0
      %596 = vmatpush1.msra.mxu0 0.0
      %597 = vmatprep.subr.mxu0 0.0
      %598 = vmatpush1.msra.mxu0 0.0
      %599 = vmatprep.subr.mxu0 0.0
      %600 = vmatpush1.msra.mxu0 0.0
      %601 = vmatprep.subr.mxu0 0.0
      %602 = vmatpush1.msra.mxu0 0.0
      %603 = vmatprep.subr.mxu0 0.0
      %604 = vmatpush1.msra.mxu0 0.0
      %605 = vmatprep.subr.mxu0 0.0
      %606 = vmatpush1.msra.mxu0 0.0
      %607 = vmatprep.subr.mxu0 0.0
      %608 = vmatpush1.msra.mxu0 0.0
      %609 = vmatprep.subr.mxu0 0.0
      %610 = vmatpush1.msra.mxu0 0.0
      %611 = vmatprep.subr.mxu0 0.0
      %612 = vmatpush1.msra.mxu0 0.0
      %613 = vmatprep.subr.mxu0 0.0
      %614 = vmatpush1.msra.mxu0 0.0
      %615 = vmatprep.subr.mxu0 0.0
      %616 = vmatpush1.msra.mxu0 0.0
      %617 = vmatprep.subr.mxu0 0.0
      %618 = vmatpush1.msra.mxu0 0.0
      %619 = vmatprep.mubr.f32.mxu0 0.0
      %620 = vmatmul.mubr.f32.gmra.mrb[0].mxu0 %v171
      %v621 = vpop.f32.mrb[0].mxu0
      %v622 = vadd.f32 0.0, %v621
      %v623 = vpop.f32.mrb[0].mxu0
      %624 = vdwg.mxu0
      %v625 = vmul.f32 %v171, %v480
      %v626 = vmul.f32 %v622, %v481
      %v627 = vadd.f32 %v625, %v626
      %vm628 = vcmp.le.s32.totalorder %v191, %v174
      %v629 = vpack.c.bf16 %v554, %v554
      %v630 = vpack.c.bf16 %v627, %v627
      %v631 = vpack.c.bf16 %v172, %v172
      %vm632 = vcmask 261120
      %v634 = vsel %vm632, %v629, 0
      %v637 = vsel %vm632, %v630, 0
      %639 = vmatprep.subr.bf16.mxu0 0
      %640 = vmatpush1.bf16.xpose.msra.mxu0 %v637
      %641 = vmatprep.subr.bf16.mxu0 0
      %642 = vmatpush1.bf16.xpose.msra.mxu0 0
      %643 = vmatprep.subr.bf16.mxu0 0
      %644 = vmatpush1.bf16.xpose.msra.mxu0 0
      %645 = vmatprep.subr.bf16.mxu0 0
      %646 = vmatpush1.bf16.xpose.msra.mxu0 0
      %647 = vmatprep.subr.bf16.mxu0 0
      %648 = vmatpush1.bf16.xpose.msra.mxu0 0
      %649 = vmatprep.subr.bf16.mxu0 0
      %650 = vmatpush1.bf16.xpose.msra.mxu0 0
      %651 = vmatprep.subr.bf16.mxu0 0
      %652 = vmatpush1.bf16.xpose.msra.mxu0 0
      %653 = vmatprep.subr.bf16.mxu0 0
      %654 = vmatpush1.bf16.xpose.msra.mxu0 0
      %655 = vmatprep.subr.bf16.mxu0 0
      %656 = vmatpush1.bf16.xpose.msra.mxu0 0
      %657 = vmatprep.subr.bf16.mxu0 0
      %658 = vmatpush1.bf16.xpose.msra.mxu0 0
      %659 = vmatprep.subr.bf16.mxu0 0
      %660 = vmatpush1.bf16.xpose.msra.mxu0 0
      %661 = vmatprep.subr.bf16.mxu0 0
      %662 = vmatpush1.bf16.xpose.msra.mxu0 0
      %663 = vmatprep.subr.bf16.mxu0 0
      %664 = vmatpush1.bf16.xpose.msra.mxu0 0
      %665 = vmatprep.subr.bf16.mxu0 0
      %666 = vmatpush1.bf16.xpose.msra.mxu0 0
      %667 = vmatprep.subr.bf16.mxu0 0
      %668 = vmatpush1.bf16.xpose.msra.mxu0 0
      %669 = vmatprep.subr.bf16.mxu0 0
      %670 = vmatpush1.bf16.xpose.msra.mxu0 0
      %671 = vmatprep.mubr.bf16.mxu0 0
      %672 = vmatmul.mubr.bf16.gmra.mrb[0].mxu0 %v634
      %v673 = vpop.f32.mrb[0].mxu0
      %v674 = vadd.f32 0.0, %v673
      %v675 = vpop.f32.mrb[0].mxu0
      %v676 = vpop.f32.mrb[0].mxu0
      %v677 = vpop.f32.mrb[0].mxu0
      %678 = vdwg.mxu0
      %v679 = vmul.f32 %v674, 0.17677669
      %v680 = vsel %vm628, %v679, -1e+30
      %vm681 = vcmask 64512
      %v682 = vsel %vm681, %v680, -inf
      %683 = vmax.xlane.f32.xlu0 %v682
      %v684 = vpop.xlane.xlu0 %683
      %v685 = vsub.f32 %v680, %v684
      %v686 = vmul.f32 %v685, 1.442695
      %v687 = vpow.pop %v686
      %v688 = vsel %vm681, %v687, 0.0
      %689 = vadd.xlane.f32.xlu0 %v688
      %v690 = vpop.xlane.xlu0 %689
      %v691 = vpack.c.bf16 %v687, %v687
      %v693 = vsel %vm681, %v691, 0
      %vm695 = vcmask 1043456
      %v697 = vsel %vm695, %v631, 0
      %699 = vmatprep.subr.bf16.mxu0 0
      %700 = vmatpush1.bf16.msra.mxu0 %v697
      %701 = vmatprep.subr.bf16.mxu0 0
      %702 = vmatpush1.bf16.msra.mxu0 0
      %703 = vmatprep.subr.bf16.mxu0 0
      %704 = vmatpush1.bf16.msra.mxu0 0
      %705 = vmatprep.subr.bf16.mxu0 0
      %706 = vmatpush1.bf16.msra.mxu0 0
      %707 = vmatprep.subr.bf16.mxu0 0
      %708 = vmatpush1.bf16.msra.mxu0 0
      %709 = vmatprep.subr.bf16.mxu0 0
      %710 = vmatpush1.bf16.msra.mxu0 0
      %711 = vmatprep.subr.bf16.mxu0 0
      %712 = vmatpush1.bf16.msra.mxu0 0
      %713 = vmatprep.subr.bf16.mxu0 0
      %714 = vmatpush1.bf16.msra.mxu0 0
      %715 = vmatprep.subr.bf16.mxu0 0
      %716 = vmatpush1.bf16.msra.mxu0 0
      %717 = vmatprep.subr.bf16.mxu0 0
      %718 = vmatpush1.bf16.msra.mxu0 0
      %719 = vmatprep.subr.bf16.mxu0 0
      %720 = vmatpush1.bf16.msra.mxu0 0
      %721 = vmatprep.subr.bf16.mxu0 0
      %722 = vmatpush1.bf16.msra.mxu0 0
      %723 = vmatprep.subr.bf16.mxu0 0
      %724 = vmatpush1.bf16.msra.mxu0 0
      %725 = vmatprep.subr.bf16.mxu0 0
      %726 = vmatpush1.bf16.msra.mxu0 0
      %727 = vmatprep.subr.bf16.mxu0 0
      %728 = vmatpush1.bf16.msra.mxu0 0
      %729 = vmatprep.subr.bf16.mxu0 0
      %730 = vmatpush1.bf16.msra.mxu0 0
      %731 = vmatprep.mubr.bf16.mxu0 0
      %732 = vmatmul.mubr.bf16.gmra.mrb[0].mxu0 %v693
      %v733 = vpop.f32.mrb[0].mxu0
      %v734 = vadd.f32 0.0, %v733
      %v735 = vpop.f32.mrb[0].mxu0
      %v736 = vpop.f32.mrb[0].mxu0
      %v737 = vpop.f32.mrb[0].mxu0
      %738 = vdwg.mxu0
      %v739 = vrcp.pop %v690
      %v740 = vmul.f32 %v734, %v739
      %742 = vrot.lane.b32.xlu0 %v629, 96
      %v743 = vpop.permute.xlu0 %742
      %745 = vrot.lane.b32.xlu0 %v630, 96
      %v746 = vpop.permute.xlu0 %745
      %v748 = vsel %vm632, %v743, 0
      %v751 = vsel %vm632, %v746, 0
      %753 = vmatprep.subr.bf16.mxu0 0
      %754 = vmatpush1.bf16.xpose.msra.mxu0 %v751
      %755 = vmatprep.subr.bf16.mxu0 0
      %756 = vmatpush1.bf16.xpose.msra.mxu0 0
      %757 = vmatprep.subr.bf16.mxu0 0
      %758 = vmatpush1.bf16.xpose.msra.mxu0 0
      %759 = vmatprep.subr.bf16.mxu0 0
      %760 = vmatpush1.bf16.xpose.msra.mxu0 0
      %761 = vmatprep.subr.bf16.mxu0 0
      %762 = vmatpush1.bf16.xpose.msra.mxu0 0
      %763 = vmatprep.subr.bf16.mxu0 0
      %764 = vmatpush1.bf16.xpose.msra.mxu0 0
      %765 = vmatprep.subr.bf16.mxu0 0
      %766 = vmatpush1.bf16.xpose.msra.mxu0 0
      %767 = vmatprep.subr.bf16.mxu0 0
      %768 = vmatpush1.bf16.xpose.msra.mxu0 0
      %769 = vmatprep.subr.bf16.mxu0 0
      %770 = vmatpush1.bf16.xpose.msra.mxu0 0
      %771 = vmatprep.subr.bf16.mxu0 0
      %772 = vmatpush1.bf16.xpose.msra.mxu0 0
      %773 = vmatprep.subr.bf16.mxu0 0
      %774 = vmatpush1.bf16.xpose.msra.mxu0 0
      %775 = vmatprep.subr.bf16.mxu0 0
      %776 = vmatpush1.bf16.xpose.msra.mxu0 0
      %777 = vmatprep.subr.bf16.mxu0 0
      %778 = vmatpush1.bf16.xpose.msra.mxu0 0
      %779 = vmatprep.subr.bf16.mxu0 0
      %780 = vmatpush1.bf16.xpose.msra.mxu0 0
      %781 = vmatprep.subr.bf16.mxu0 0
      %782 = vmatpush1.bf16.xpose.msra.mxu0 0
      %783 = vmatprep.subr.bf16.mxu0 0
      %784 = vmatpush1.bf16.xpose.msra.mxu0 0
      %785 = vmatprep.mubr.bf16.mxu0 0
      %786 = vmatmul.mubr.bf16.gmra.mrb[0].mxu0 %v748
      %v787 = vpop.f32.mrb[0].mxu0
      %v788 = vadd.f32 0.0, %v787
      %v789 = vpop.f32.mrb[0].mxu0
      %v790 = vpop.f32.mrb[0].mxu0
      %v791 = vpop.f32.mrb[0].mxu0
      %792 = vdwg.mxu0
      %v793 = vmul.f32 %v788, 0.17677669
      %v794 = vsel %vm628, %v793, -1e+30
      %v795 = vsel %vm681, %v794, -inf
      %796 = vmax.xlane.f32.xlu0 %v795
      %v797 = vpop.xlane.xlu0 %796
      %v798 = vsub.f32 %v794, %v797
      %v799 = vmul.f32 %v798, 1.442695
      %v800 = vpow.pop %v799
      %v801 = vsel %vm681, %v800, 0.0
      %802 = vadd.xlane.f32.xlu0 %v801
      %v803 = vpop.xlane.xlu0 %802
      %v804 = vpack.c.bf16 %v800, %v800
      %806 = vrot.lane.b32.xlu0 %v631, 96
      %v807 = vpop.permute.xlu0 %806
      %v809 = vsel %vm681, %v804, 0
      %v812 = vsel %vm695, %v807, 0
      %814 = vmatprep.subr.bf16.mxu0 0
      %815 = vmatpush1.bf16.msra.mxu0 %v812
      %816 = vmatprep.subr.bf16.mxu0 0
      %817 = vmatpush1.bf16.msra.mxu0 0
      %818 = vmatprep.subr.bf16.mxu0 0
      %819 = vmatpush1.bf16.msra.mxu0 0
      %820 = vmatprep.subr.bf16.mxu0 0
      %821 = vmatpush1.bf16.msra.mxu0 0
      %822 = vmatprep.subr.bf16.mxu0 0
      %823 = vmatpush1.bf16.msra.mxu0 0
      %824 = vmatprep.subr.bf16.mxu0 0
      %825 = vmatpush1.bf16.msra.mxu0 0
      %826 = vmatprep.subr.bf16.mxu0 0
      %827 = vmatpush1.bf16.msra.mxu0 0
      %828 = vmatprep.subr.bf16.mxu0 0
      %829 = vmatpush1.bf16.msra.mxu0 0
      %830 = vmatprep.subr.bf16.mxu0 0
      %831 = vmatpush1.bf16.msra.mxu0 0
      %832 = vmatprep.subr.bf16.mxu0 0
      %833 = vmatpush1.bf16.msra.mxu0 0
      %834 = vmatprep.subr.bf16.mxu0 0
      %835 = vmatpush1.bf16.msra.mxu0 0
      %836 = vmatprep.subr.bf16.mxu0 0
      %837 = vmatpush1.bf16.msra.mxu0 0
      %838 = vmatprep.subr.bf16.mxu0 0
      %839 = vmatpush1.bf16.msra.mxu0 0
      %840 = vmatprep.subr.bf16.mxu0 0
      %841 = vmatpush1.bf16.msra.mxu0 0
      %842 = vmatprep.subr.bf16.mxu0 0
      %843 = vmatpush1.bf16.msra.mxu0 0
      %844 = vmatprep.subr.bf16.mxu0 0
      %845 = vmatpush1.bf16.msra.mxu0 0
      %846 = vmatprep.mubr.bf16.mxu0 0
      %847 = vmatmul.mubr.bf16.gmra.mrb[0].mxu0 %v809
      %v848 = vpop.f32.mrb[0].mxu0
      %v849 = vadd.f32 0.0, %v848
      %v850 = vpop.f32.mrb[0].mxu0
      %v851 = vpop.f32.mrb[0].mxu0
      %v852 = vpop.f32.mrb[0].mxu0
      %853 = vdwg.mxu0
      %v854 = vrcp.pop %v803
      %v855 = vmul.f32 %v849, %v854
      %856 = vrot.lane.b32.xlu0 %v629, 64
      %v857 = vpop.permute.xlu0 %856
      %858 = vrot.lane.b32.xlu0 %v630, 64
      %v859 = vpop.permute.xlu0 %858
      %v861 = vsel %vm632, %v857, 0
      %v864 = vsel %vm632, %v859, 0
      %866 = vmatprep.subr.bf16.mxu0 0
      %867 = vmatpush1.bf16.xpose.msra.mxu0 %v864
      %868 = vmatprep.subr.bf16.mxu0 0
      %869 = vmatpush1.bf16.xpose.msra.mxu0 0
      %870 = vmatprep.subr.bf16.mxu0 0
      %871 = vmatpush1.bf16.xpose.msra.mxu0 0
      %872 = vmatprep.subr.bf16.mxu0 0
      %873 = vmatpush1.bf16.xpose.msra.mxu0 0
      %874 = vmatprep.subr.bf16.mxu0 0
      %875 = vmatpush1.bf16.xpose.msra.mxu0 0
      %876 = vmatprep.subr.bf16.mxu0 0
      %877 = vmatpush1.bf16.xpose.msra.mxu0 0
      %878 = vmatprep.subr.bf16.mxu0 0
      %879 = vmatpush1.bf16.xpose.msra.mxu0 0
      %880 = vmatprep.subr.bf16.mxu0 0
      %881 = vmatpush1.bf16.xpose.msra.mxu0 0
      %882 = vmatprep.subr.bf16.mxu0 0
      %883 = vmatpush1.bf16.xpose.msra.mxu0 0
      %884 = vmatprep.subr.bf16.mxu0 0
      %885 = vmatpush1.bf16.xpose.msra.mxu0 0
      %886 = vmatprep.subr.bf16.mxu0 0
      %887 = vmatpush1.bf16.xpose.msra.mxu0 0
      %888 = vmatprep.subr.bf16.mxu0 0
      %889 = vmatpush1.bf16.xpose.msra.mxu0 0
      %890 = vmatprep.subr.bf16.mxu0 0
      %891 = vmatpush1.bf16.xpose.msra.mxu0 0
      %892 = vmatprep.subr.bf16.mxu0 0
      %893 = vmatpush1.bf16.xpose.msra.mxu0 0
      %894 = vmatprep.subr.bf16.mxu0 0
      %895 = vmatpush1.bf16.xpose.msra.mxu0 0
      %896 = vmatprep.subr.bf16.mxu0 0
      %897 = vmatpush1.bf16.xpose.msra.mxu0 0
      %898 = vmatprep.mubr.bf16.mxu0 0
      %899 = vmatmul.mubr.bf16.gmra.mrb[0].mxu0 %v861
      %v900 = vpop.f32.mrb[0].mxu0
      %v901 = vadd.f32 0.0, %v900
      %v902 = vpop.f32.mrb[0].mxu0
      %v903 = vpop.f32.mrb[0].mxu0
      %v904 = vpop.f32.mrb[0].mxu0
      %905 = vdwg.mxu0
      %v906 = vmul.f32 %v901, 0.17677669
      %v907 = vsel %vm628, %v906, -1e+30
      %v908 = vsel %vm681, %v907, -inf
      %909 = vmax.xlane.f32.xlu0 %v908
      %v910 = vpop.xlane.xlu0 %909
      %v911 = vsub.f32 %v907, %v910
      %v912 = vmul.f32 %v911, 1.442695
      %v913 = vpow.pop %v912
      %v914 = vsel %vm681, %v913, 0.0
      %915 = vadd.xlane.f32.xlu0 %v914
      %v916 = vpop.xlane.xlu0 %915
      %v917 = vpack.c.bf16 %v913, %v913
      %918 = vrot.lane.b32.xlu0 %v631, 64
      %v919 = vpop.permute.xlu0 %918
      %v921 = vsel %vm681, %v917, 0
      %v924 = vsel %vm695, %v919, 0
      %926 = vmatprep.subr.bf16.mxu0 0
      %927 = vmatpush1.bf16.msra.mxu0 %v924
      %928 = vmatprep.subr.bf16.mxu0 0
      %929 = vmatpush1.bf16.msra.mxu0 0
      %930 = vmatprep.subr.bf16.mxu0 0
      %931 = vmatpush1.bf16.msra.mxu0 0
      %932 = vmatprep.subr.bf16.mxu0 0
      %933 = vmatpush1.bf16.msra.mxu0 0
      %934 = vmatprep.subr.bf16.mxu0 0
      %935 = vmatpush1.bf16.msra.mxu0 0
      %936 = vmatprep.subr.bf16.mxu0 0
      %937 = vmatpush1.bf16.msra.mxu0 0
      %938 = vmatprep.subr.bf16.mxu0 0
      %939 = vmatpush1.bf16.msra.mxu0 0
      %940 = vmatprep.subr.bf16.mxu0 0
      %941 = vmatpush1.bf16.msra.mxu0 0
      %942 = vmatprep.subr.bf16.mxu0 0
      %943 = vmatpush1.bf16.msra.mxu0 0
      %944 = vmatprep.subr.bf16.mxu0 0
      %945 = vmatpush1.bf16.msra.mxu0 0
      %946 = vmatprep.subr.bf16.mxu0 0
      %947 = vmatpush1.bf16.msra.mxu0 0
      %948 = vmatprep.subr.bf16.mxu0 0
      %949 = vmatpush1.bf16.msra.mxu0 0
      %950 = vmatprep.subr.bf16.mxu0 0
      %951 = vmatpush1.bf16.msra.mxu0 0
      %952 = vmatprep.subr.bf16.mxu0 0
      %953 = vmatpush1.bf16.msra.mxu0 0
      %954 = vmatprep.subr.bf16.mxu0 0
      %955 = vmatpush1.bf16.msra.mxu0 0
      %956 = vmatprep.subr.bf16.mxu0 0
      %957 = vmatpush1.bf16.msra.mxu0 0
      %958 = vmatprep.mubr.bf16.mxu0 0
      %959 = vmatmul.mubr.bf16.gmra.mrb[0].mxu0 %v921
      %v960 = vpop.f32.mrb[0].mxu0
      %v961 = vadd.f32 0.0, %v960
      %v962 = vpop.f32.mrb[0].mxu0
      %v963 = vpop.f32.mrb[0].mxu0
      %v964 = vpop.f32.mrb[0].mxu0
      %965 = vdwg.mxu0
      %v966 = vrcp.pop %v916
      %v967 = vmul.f32 %v961, %v966
      %968 = vrot.lane.b32.xlu0 %v629, 32
      %v969 = vpop.permute.xlu0 %968
      %970 = vrot.lane.b32.xlu0 %v630, 32
      %v971 = vpop.permute.xlu0 %970
      %v973 = vsel %vm632, %v969, 0
      %v976 = vsel %vm632, %v971, 0
      %978 = vmatprep.subr.bf16.mxu0 0
      %979 = vmatpush1.bf16.xpose.msra.mxu0 %v976
      %980 = vmatprep.subr.bf16.mxu0 0
      %981 = vmatpush1.bf16.xpose.msra.mxu0 0
      %982 = vmatprep.subr.bf16.mxu0 0
      %983 = vmatpush1.bf16.xpose.msra.mxu0 0
      %984 = vmatprep.subr.bf16.mxu0 0
      %985 = vmatpush1.bf16.xpose.msra.mxu0 0
      %986 = vmatprep.subr.bf16.mxu0 0
      %987 = vmatpush1.bf16.xpose.msra.mxu0 0
      %988 = vmatprep.subr.bf16.mxu0 0
      %989 = vmatpush1.bf16.xpose.msra.mxu0 0
      %990 = vmatprep.subr.bf16.mxu0 0
      %991 = vmatpush1.bf16.xpose.msra.mxu0 0
      %992 = vmatprep.subr.bf16.mxu0 0
      %993 = vmatpush1.bf16.xpose.msra.mxu0 0
      %994 = vmatprep.subr.bf16.mxu0 0
      %995 = vmatpush1.bf16.xpose.msra.mxu0 0
      %996 = vmatprep.subr.bf16.mxu0 0
      %997 = vmatpush1.bf16.xpose.msra.mxu0 0
      %998 = vmatprep.subr.bf16.mxu0 0
      %999 = vmatpush1.bf16.xpose.msra.mxu0 0
      %1000 = vmatprep.subr.bf16.mxu0 0
      %1001 = vmatpush1.bf16.xpose.msra.mxu0 0
      %1002 = vmatprep.subr.bf16.mxu0 0
      %1003 = vmatpush1.bf16.xpose.msra.mxu0 0
      %1004 = vmatprep.subr.bf16.mxu0 0
      %1005 = vmatpush1.bf16.xpose.msra.mxu0 0
      %1006 = vmatprep.subr.bf16.mxu0 0
      %1007 = vmatpush1.bf16.xpose.msra.mxu0 0
      %1008 = vmatprep.subr.bf16.mxu0 0
      %1009 = vmatpush1.bf16.xpose.msra.mxu0 0
      %1010 = vmatprep.mubr.bf16.mxu0 0
      %1011 = vmatmul.mubr.bf16.gmra.mrb[0].mxu0 %v973
      %v1012 = vpop.f32.mrb[0].mxu0
      %v1013 = vadd.f32 0.0, %v1012
      %v1014 = vpop.f32.mrb[0].mxu0
      %v1015 = vpop.f32.mrb[0].mxu0
      %v1016 = vpop.f32.mrb[0].mxu0
      %1017 = vdwg.mxu0
      %v1018 = vmul.f32 %v1013, 0.17677669
      %v1019 = vsel %vm628, %v1018, -1e+30
      %v1020 = vsel %vm681, %v1019, -inf
      %1021 = vmax.xlane.f32.xlu0 %v1020
      %v1022 = vpop.xlane.xlu0 %1021
      %v1023 = vsub.f32 %v1019, %v1022
      %v1024 = vmul.f32 %v1023, 1.442695
      %v1025 = vpow.pop %v1024
      %v1026 = vsel %vm681, %v1025, 0.0
      %1027 = vadd.xlane.f32.xlu0 %v1026
      %v1028 = vpop.xlane.xlu0 %1027
      %v1029 = vpack.c.bf16 %v1025, %v1025
      %1030 = vrot.lane.b32.xlu0 %v631, 32
      %v1031 = vpop.permute.xlu0 %1030
      %v1033 = vsel %vm681, %v1029, 0
      %v1036 = vsel %vm695, %v1031, 0
      %1038 = vmatprep.subr.bf16.mxu0 0
      %1039 = vmatpush1.bf16.msra.mxu0 %v1036
      %1040 = vmatprep.subr.bf16.mxu0 0
      %1041 = vmatpush1.bf16.msra.mxu0 0
      %1042 = vmatprep.subr.bf16.mxu0 0
      %1043 = vmatpush1.bf16.msra.mxu0 0
      %1044 = vmatprep.subr.bf16.mxu0 0
      %1045 = vmatpush1.bf16.msra.mxu0 0
      %1046 = vmatprep.subr.bf16.mxu0 0
      %1047 = vmatpush1.bf16.msra.mxu0 0
      %1048 = vmatprep.subr.bf16.mxu0 0
      %1049 = vmatpush1.bf16.msra.mxu0 0
      %1050 = vmatprep.subr.bf16.mxu0 0
      %1051 = vmatpush1.bf16.msra.mxu0 0
      %1052 = vmatprep.subr.bf16.mxu0 0
      %1053 = vmatpush1.bf16.msra.mxu0 0
      %1054 = vmatprep.subr.bf16.mxu0 0
      %1055 = vmatpush1.bf16.msra.mxu0 0
      %1056 = vmatprep.subr.bf16.mxu0 0
      %1057 = vmatpush1.bf16.msra.mxu0 0
      %1058 = vmatprep.subr.bf16.mxu0 0
      %1059 = vmatpush1.bf16.msra.mxu0 0
      %1060 = vmatprep.subr.bf16.mxu0 0
      %1061 = vmatpush1.bf16.msra.mxu0 0
      %1062 = vmatprep.subr.bf16.mxu0 0
      %1063 = vmatpush1.bf16.msra.mxu0 0
      %1064 = vmatprep.subr.bf16.mxu0 0
      %1065 = vmatpush1.bf16.msra.mxu0 0
      %1066 = vmatprep.subr.bf16.mxu0 0
      %1067 = vmatpush1.bf16.msra.mxu0 0
      %1068 = vmatprep.subr.bf16.mxu0 0
      %1069 = vmatpush1.bf16.msra.mxu0 0
      %1070 = vmatprep.mubr.bf16.mxu0 0
      %1071 = vmatmul.mubr.bf16.gmra.mrb[0].mxu0 %v1033
      %v1072 = vpop.f32.mrb[0].mxu0
      %v1073 = vadd.f32 0.0, %v1072
      %v1074 = vpop.f32.mrb[0].mxu0
      %v1075 = vpop.f32.mrb[0].mxu0
      %v1076 = vpop.f32.mrb[0].mxu0
      %1077 = vdwg.mxu0
      %v1078 = vrcp.pop %v1028
      %v1079 = vmul.f32 %v1073, %v1078
      %1081 = vrot.lane.b32.xlu0 %v855, 32
      %v1082 = vpop.permute.xlu0 %1081
      %1085 = vrot.lane.b32.xlu0 %v967, 64
      %v1086 = vpop.permute.xlu0 %1085
      %1089 = vrot.lane.b32.xlu0 %v1079, 96
      %v1090 = vpop.permute.xlu0 %1089
      %v1092 = vsel %vm632, %v740, %v1082
      %vm1093 = vcmask 523264
      %v1094 = vsel %vm1093, %v1092, %v1086
      %vm1095 = vcmask 785408
      %v1096 = vsel %vm1095, %v1094, %v1090
      %1097 = vst [vmem:[%s168] sm:$0xff] %v1096
      %p1098 = scmp.lt.s32.totalorder %s14, 1
      %s1099 = scalar_select %p1098, %s14, 1
      %s1100 = smul.addr %s1099, 8
      %s1101 = scalar_lea.vmem %s3, %s1100
      // Predicated region
      $region33: #{llama_forward.17} parent=31 // pred_check
        %p1102 = pneg %p100
      $region34: #{llama_forward.17} parent=31 // pred_check_branch
        %1104 = sbr.rel (%p1102) target = $region36
      $region35: #{llama_forward.17} parent=31 // pred_region
        _
      $region36: #{llama_forward.17} parent=31 // pred_fallthru
        _
    $region32: #{llama_forward.17} parent=5 // pred_fallthru
      _
    %p1105 = scmp.le.s32.totalorder 2, %s9
    // Predicated region
    $region37: #{llama_forward.17} parent=5 // pred_check
      %p1106 = pneg %p1105
    $region38: #{llama_forward.17} parent=5 // pred_check_branch
      %1108 = sbr.rel (%p1106) target = $region40
    $region39: #{llama_forward.17} parent=5 // pred_region
      %s1109 = ssub.s32 %s9, 2
      // Predicated region
      $region41: #{llama_forward.17} parent=39 // pred_check
        %p1110 = pneg %p106
      $region42: #{llama_forward.17} parent=39 // pred_check_branch
        %1112 = sbr.rel (%p1110) target = $region44
      $region43: #{llama_forward.17} parent=39 // pred_region
        %p1113 = scmp.lt.s32.totalorder %s15, 1
        %s1114 = scalar_select %p1113, %s15, 1
        %s1115 = smul.addr %s1114, 8
        %s1116 = scalar_lea.vmem %s3, %s1115
      $region44: #{llama_forward.17} parent=39 // pred_fallthru
        _
    $region40: #{llama_forward.17} parent=5 // pred_fallthru
      _
  $region6: #{llama_forward.17} parent=0 // loop_footer
    %s13 = sadd.s32 1, %s9
  $region7: #{llama_forward.17} parent=0 // loop_footer_branch
    %8 = sbr.rel target = $region3
  $region8: #{llama_forward.17} parent=0 // loop_exit
    _

// kernel: llama_forward.20
$region0: #{llama_forward.20}
  #allocation0 [shape = 'u32[]', space=smem, size = 0x4, offset = 0x4, fixed_abs, tag = 'smem constant byte address 0x4 - core index']
  #allocation1 [shape = 'u32[144,128]{1,0:T(1,128)}', space=vmem, size = 0x12000, scoped, tag = 'internal scratch']
  #allocation2 [shape = 'f32[16,128]{1,0:T(8,128)}', space=vmem, size = 0x2000, scoped, tag = 'scratch operand']
  %s0 = inlined_call_operand.vmem [shape: f32[16,512], index: 0, kind: input, shape index: {}, may-alias: {0,1}]
  %s1 = inlined_call_operand.vmem [shape: f32[16,512], index: 1, kind: input, shape index: {}, may-alias: {0,1}]
  %s2 = inlined_call_operand.hbm [shape: bf16[256,128], index: 2, kind: input, shape index: {}]
  %s3 = inlined_call_operand.vmem [shape: f32[16,128], index: 3, kind: output, shape index: {}]
  %s4 = sld [smem:[#allocation0]]
  $region80: #{llama_forward.20} parent=0
    _
  %s6 = ssub.s32 1, %s4
  %s7 = scalar_select 0, %s6, %s4
  $region1: #{llama_forward.20} parent=0
    #allocation3 [shape = 'u8[16384]{0}', space=vmem, size = 0x4000, scoped, tag = 'input window, operand 0, single buffered']
    #allocation4 [shape = 'u8[16384]{0}', space=vmem, size = 0x4000, scoped, tag = 'input window, operand 1, single buffered']
    #allocation5 [shape = 'u8[65536]{0}', space=vmem, size = 0x10000, scoped, tag = 'input window, operand 2, single buffered']
    #allocation6 [shape = 's32[1]{0}', space=sflag, size = 0x4, scoped, tag = 'scoped memory for llama_forward.20']
    %8 = vsyncpa [#allocation6], 0
    // Predicated region
    $region2: #{llama_forward.20} parent=1 // pred_check
      _
    $region3: #{llama_forward.20} parent=1 // pred_check_branch
      %10 = sbr.rel (0) target = $region5
    $region4: #{llama_forward.20} parent=1 // pred_region
      // Predicated region
      $region6: #{llama_forward.20} parent=4 // pred_check
        _
      $region7: #{llama_forward.20} parent=4 // pred_check_branch
        %12 = sbr.rel (0) target = $region9
      $region8: #{llama_forward.20} parent=4 // pred_region
        // Predicated region
        $region10: #{llama_forward.20} parent=8 // pred_check
          _
        $region11: #{llama_forward.20} parent=8 // pred_check_branch
          %14 = sbr.rel (0) target = $region13
        $region12: #{llama_forward.20} parent=8 // pred_region
          loop: start=0, step=1, limit=1
          $region14: #{llama_forward.20} parent=12 // loop_pre_header
            _
          $region15: #{llama_forward.20} parent=12 // loop_header
            %s16 = sphi 0, %s20
            %p17 = scmp.ge.s32.totalorder %s16, 1
            %s21 = sphi %s0, %s0
            %s22 = sphi [#allocation3], [#allocation3]
          $region16: #{llama_forward.20} parent=12 // loop_header_branch
            %19 = sbr.rel (%p17) target = $region20
          $region17: #{llama_forward.20} parent=12 // loop_body
            %v23 = vld [vmem:[%s21] sm:$0xff]
            %24 = vst [vmem:[%s22] sm:$0xff] %v23
            %v25 = vld [vmem:[%s21 + $0x8] sm:$0xff]
            %26 = vst [vmem:[%s22 + $0x8] sm:$0xff] %v25
            %v27 = vld [vmem:[%s21 + $0x20] sm:$0xff]
            %28 = vst [vmem:[%s22 + $0x10] sm:$0xff] %v27
            %v29 = vld [vmem:[%s21 + $0x28] sm:$0xff]
            %30 = vst [vmem:[%s22 + $0x18] sm:$0xff] %v29
          $region18: #{llama_forward.20} parent=12 // loop_footer
            %s20 = sadd.s32 1, %s16
          $region19: #{llama_forward.20} parent=12 // loop_footer_branch
            %15 = sbr.rel target = $region15
          $region20: #{llama_forward.20} parent=12 // loop_exit
            _
        $region13: #{llama_forward.20} parent=8 // pred_fallthru
          _
        // Predicated region
        $region21: #{llama_forward.20} parent=8 // pred_check
          _
        $region22: #{llama_forward.20} parent=8 // pred_check_branch
          %32 = sbr.rel target = $region24
        $region23: #{llama_forward.20} parent=8 // pred_region
          _
        $region24: #{llama_forward.20} parent=8 // pred_fallthru
          _
      $region9: #{llama_forward.20} parent=4 // pred_fallthru
        _
      %33 = vnop
    $region5: #{llama_forward.20} parent=1 // pred_fallthru
      _
    // Predicated region
    $region25: #{llama_forward.20} parent=1 // pred_check
      _
    $region26: #{llama_forward.20} parent=1 // pred_check_branch
      %35 = sbr.rel (0) target = $region28
    $region27: #{llama_forward.20} parent=1 // pred_region
      %s36 = sadd.s32 0, 1
      %s37 = smul.u32 2, %s36
      %s38 = smul.addr %s37, 8
      %s39 = scalar_lea.vmem %s1, %s38
      // Predicated region
      $region29: #{llama_forward.20} parent=27 // pred_check
        _
      $region30: #{llama_forward.20} parent=27 // pred_check_branch
        %41 = sbr.rel (0) target = $region32
      $region31: #{llama_forward.20} parent=27 // pred_region
        // Predicated region
        $region33: #{llama_forward.20} parent=31 // pred_check
          _
        $region34: #{llama_forward.20} parent=31 // pred_check_branch
          %43 = sbr.rel (0) target = $region36
        $region35: #{llama_forward.20} parent=31 // pred_region
          loop: start=0, step=1, limit=1
          $region37: #{llama_forward.20} parent=35 // loop_pre_header
            _
          $region38: #{llama_forward.20} parent=35 // loop_header
            %s45 = sphi 0, %s49
            %p46 = scmp.ge.s32.totalorder %s45, 1
            %s50 = sphi %s39, %s39
            %s51 = sphi [#allocation4], [#allocation4]
          $region39: #{llama_forward.20} parent=35 // loop_header_branch
            %48 = sbr.rel (%p46) target = $region43
          $region40: #{llama_forward.20} parent=35 // loop_body
            %v52 = vld [vmem:[%s50] sm:$0xff]
            %53 = vst [vmem:[%s51] sm:$0xff] %v52
            %v54 = vld [vmem:[%s50 + $0x8] sm:$0xff]
            %55 = vst [vmem:[%s51 + $0x8] sm:$0xff] %v54
            %v56 = vld [vmem:[%s50 + $0x20] sm:$0xff]
            %57 = vst [vmem:[%s51 + $0x10] sm:$0xff] %v56
            %v58 = vld [vmem:[%s50 + $0x28] sm:$0xff]
            %59 = vst [vmem:[%s51 + $0x18] sm:$0xff] %v58
          $region41: #{llama_forward.20} parent=35 // loop_footer
            %s49 = sadd.s32 1, %s45
          $region42: #{llama_forward.20} parent=35 // loop_footer_branch
            %44 = sbr.rel target = $region38
          $region43: #{llama_forward.20} parent=35 // loop_exit
            _
        $region36: #{llama_forward.20} parent=31 // pred_fallthru
          _
        // Predicated region
        $region44: #{llama_forward.20} parent=31 // pred_check
          _
        $region45: #{llama_forward.20} parent=31 // pred_check_branch
          %61 = sbr.rel target = $region47
        $region46: #{llama_forward.20} parent=31 // pred_region
          _
        $region47: #{llama_forward.20} parent=31 // pred_fallthru
          _
      $region32: #{llama_forward.20} parent=27 // pred_fallthru
        _
      %62 = vnop
    $region28: #{llama_forward.20} parent=1 // pred_fallthru
      _
    // Predicated region
    $region48: #{llama_forward.20} parent=1 // pred_check
      _
    $region49: #{llama_forward.20} parent=1 // pred_check_branch
      %64 = sbr.rel (0) target = $region51
    $region50: #{llama_forward.20} parent=1 // pred_region
      %s66 = ssub.s32 2048, 2048
      %67 = vsyncadd [#allocation6], %s66
      %s68 = sshll.u32 [#allocation5], 4
      %s69 = int_to_ptr.vmem [resolvable:$true] %s68
      %74 = dma.hbm_to_vmem [thread:$0]  %s2, 2048, %s69, [#allocation6], 64, 64, 4
    $region51: #{llama_forward.20} parent=1 // pred_fallthru
      _
    // Predicated region
    $region52: #{llama_forward.20} parent=1 // pred_check
      _
    $region53: #{llama_forward.20} parent=1 // pred_check_branch
      %76 = sbr.rel (0) target = $region55
    $region54: #{llama_forward.20} parent=1 // pred_region
      _
    $region55: #{llama_forward.20} parent=1 // pred_fallthru
      _
    // Predicated region
    $region56: #{llama_forward.20} parent=1 // pred_check
      _
    $region57: #{llama_forward.20} parent=1 // pred_check_branch
      %78 = sbr.rel (0) target = $region59
    $region58: #{llama_forward.20} parent=1 // pred_region
      _
    $region59: #{llama_forward.20} parent=1 // pred_fallthru
      _
    // Predicated region
    $region60: #{llama_forward.20} parent=1 // pred_check
      _
    $region61: #{llama_forward.20} parent=1 // pred_check_branch
      %80 = sbr.rel (0) target = $region63
    $region62: #{llama_forward.20} parent=1 // pred_region
      %81 = dma.done [#allocation6], 2048
    $region63: #{llama_forward.20} parent=1 // pred_fallthru
      _
    %s82 = sadd.s32 0, 1
    %s83 = smul.u32 2, %s82
    %p85 = scmp.eq.s32.totalorder 0, 0
    // Predicated region
    $region64: #{llama_forward.20} parent=1 // pred_check
      %p86 = pneg %p85
    $region65: #{llama_forward.20} parent=1 // pred_check_branch
      %88 = sbr.rel (%p86) target = $region67
    $region66: #{llama_forward.20} parent=1 // pred_region
      %89 = vst [vmem:[#allocation2] sm:$0xff] 0.0
      %90 = vst [vmem:[#allocation2 + $0x8] sm:$0xff] 0.0
    $region67: #{llama_forward.20} parent=1 // pred_fallthru
      _
    %v91 = vld [vmem:[#allocation3] sm:$0xff]
    %v92 = vld [vmem:[#allocation3 + $0x8] sm:$0xff]
    %v93 = vld [vmem:[#allocation3 + $0x10] sm:$0xff]
    %v94 = vld [vmem:[#allocation3 + $0x18] sm:$0xff]
    %v95 = vsub.f32 0.0, %v91
    %v96 = vsub.f32 0.0, %v92
    %v97 = vsub.f32 0.0, %v93
    %v98 = vsub.f32 0.0, %v94
    %v99 = vmul.f32 %v95, 1.442695
    %v100 = vpow.pop %v99
    %v101 = vmul.f32 %v96, 1.442695
    %v102 = vpow.pop %v101
    %v103 = vmul.f32 %v97, 1.442695
    %v104 = vpow.pop %v103
    %v105 = vmul.f32 %v98, 1.442695
    %v106 = vpow.pop %v105
    %v107 = vadd.f32 %v100, 1.0
    %v108 = vadd.f32 %v102, 1.0
    %v109 = vadd.f32 %v104, 1.0
    %v110 = vadd.f32 %v106, 1.0
    %v111 = vrcp.pop %v107
    %v112 = vrcp.pop %v108
    %v113 = vrcp.pop %v109
    %v114 = vrcp.pop %v110
    %v115 = vmul.f32 %v91, %v111
    %v116 = vmul.f32 %v92, %v112
    %v117 = vmul.f32 %v93, %v113
    %v118 = vmul.f32 %v94, %v114
    %v119 = vld [vmem:[#allocation4] sm:$0xff]
    %v120 = vld [vmem:[#allocation4 + $0x8] sm:$0xff]
    %v121 = vld [vmem:[#allocation4 + $0x10] sm:$0xff]
    %v122 = vld [vmem:[#allocation4 + $0x18] sm:$0xff]
    %v123 = vmul.f32 %v115, %v119
    %v124 = vmul.f32 %v116, %v120
    %v125 = vmul.f32 %v117, %v121
    %v126 = vmul.f32 %v118, %v122
    %v127 = vpack.c.bf16 %v125, %v123
    %v128 = vpack.c.bf16 %v126, %v124
    %v129 = vld [vmem:[#allocation2] sm:$0xff]
    %v130 = vld [vmem:[#allocation2 + $0x8] sm:$0xff]
    %v131 = vld [vmem:[#allocation5] sm:$0xf]
    %v132 = vld [vmem:[#allocation5 + $0x4] sm:$0xf]
    %v133 = vld [vmem:[#allocation5 + $0x8] sm:$0xf]
    %v134 = vld [vmem:[#allocation5 + $0xc] sm:$0xf]
    %v135 = vld [vmem:[#allocation5 + $0x10] sm:$0xf]
    %v136 = vld [vmem:[#allocation5 + $0x14] sm:$0xf]
    %v137 = vld [vmem:[#allocation5 + $0x18] sm:$0xf]
    %v138 = vld [vmem:[#allocation5 + $0x1c] sm:$0xf]
    %v139 = vld [vmem:[#allocation5 + $0x20] sm:$0xf]
    %v140 = vld [vmem:[#allocation5 + $0x24] sm:$0xf]
    %v141 = vld [vmem:[#allocation5 + $0x28] sm:$0xf]
    %v142 = vld [vmem:[#allocation5 + $0x2c] sm:$0xf]
    %v143 = vld [vmem:[#allocation5 + $0x30] sm:$0xf]
    %v144 = vld [vmem:[#allocation5 + $0x34] sm:$0xf]
    %v145 = vld [vmem:[#allocation5 + $0x38] sm:$0xf]
    %v146 = vld [vmem:[#allocation5 + $0x3c] sm:$0xf]
    %v147 = vld [vmem:[#allocation5 + $0x40] sm:$0xf]
    %v148 = vld [vmem:[#allocation5 + $0x44] sm:$0xf]
    %v149 = vld [vmem:[#allocation5 + $0x48] sm:$0xf]
    %v150 = vld [vmem:[#allocation5 + $0x4c] sm:$0xf]
    %v151 = vld [vmem:[#allocation5 + $0x50] sm:$0xf]
    %v152 = vld [vmem:[#allocation5 + $0x54] sm:$0xf]
    %v153 = vld [vmem:[#allocation5 + $0x58] sm:$0xf]
    %v154 = vld [vmem:[#allocation5 + $0x5c] sm:$0xf]
    %v155 = vld [vmem:[#allocation5 + $0x60] sm:$0xf]
    %v156 = vld [vmem:[#allocation5 + $0x64] sm:$0xf]
    %v157 = vld [vmem:[#allocation5 + $0x68] sm:$0xf]
    %v158 = vld [vmem:[#allocation5 + $0x6c] sm:$0xf]
    %v159 = vld [vmem:[#allocation5 + $0x70] sm:$0xf]
    %v160 = vld [vmem:[#allocation5 + $0x74] sm:$0xf]
    %v161 = vld [vmem:[#allocation5 + $0x78] sm:$0xf]
    %v162 = vld [vmem:[#allocation5 + $0x7c] sm:$0xf]
    %v195 = vunpack.c.l.b16 %v131
    %v196 = vunpack.c.l.b16 %v132
    %v197 = vunpack.c.l.b16 %v133
    %v198 = vunpack.c.l.b16 %v134
    %v199 = vunpack.c.l.b16 %v135
    %v200 = vunpack.c.l.b16 %v136
    %v201 = vunpack.c.l.b16 %v137
    %v202 = vunpack.c.l.b16 %v138
    %v203 = vunpack.c.l.b16 %v139
    %v204 = vunpack.c.l.b16 %v140
    %v205 = vunpack.c.l.b16 %v141
    %v206 = vunpack.c.l.b16 %v142
    %v207 = vunpack.c.l.b16 %v143
    %v208 = vunpack.c.l.b16 %v144
    %v209 = vunpack.c.l.b16 %v145
    %v210 = vunpack.c.l.b16 %v146
    %v211 = vunpack.c.l.b16 %v147
    %v212 = vunpack.c.l.b16 %v148
    %v213 = vunpack.c.l.b16 %v149
    %v214 = vunpack.c.l.b16 %v150
    %v215 = vunpack.c.l.b16 %v151
    %v216 = vunpack.c.l.b16 %v152
    %v217 = vunpack.c.l.b16 %v153
    %v218 = vunpack.c.l.b16 %v154
    %v219 = vunpack.c.l.b16 %v155
    %v220 = vunpack.c.l.b16 %v156
    %v221 = vunpack.c.l.b16 %v157
    %v222 = vunpack.c.l.b16 %v158
    %v223 = vunpack.c.l.b16 %v159
    %v224 = vunpack.c.l.b16 %v160
    %v225 = vunpack.c.l.b16 %v161
    %v226 = vunpack.c.l.b16 %v162
    %v227 = vpack.c.b16 %v196, %v195
    %v228 = vpack.c.b16 %v198, %v197
    %v229 = vpack.c.b16 %v200, %v199
    %v230 = vpack.c.b16 %v202, %v201
    %v231 = vpack.c.b16 %v204, %v203
    %v232 = vpack.c.b16 %v206, %v205
    %v233 = vpack.c.b16 %v208, %v207
    %v234 = vpack.c.b16 %v210, %v209
    %v235 = vpack.c.b16 %v212, %v211
    %v236 = vpack.c.b16 %v214, %v213
    %v237 = vpack.c.b16 %v216, %v215
    %v238 = vpack.c.b16 %v218, %v217
    %v239 = vpack.c.b16 %v220, %v219
    %v240 = vpack.c.b16 %v222, %v221
    %v241 = vpack.c.b16 %v224, %v223
    %v242 = vpack.c.b16 %v226, %v225
    %259 = vmatprep.subr.bf16.mxu0 0
    %260 = vmatpush1.bf16.msra.mxu0 %v227
    %261 = vmatprep.subr.bf16.mxu0 0
    %262 = vmatpush1.bf16.msra.mxu0 %v228
    %263 = vmatprep.subr.bf16.mxu0 0
    %264 = vmatpush1.bf16.msra.mxu0 %v229
    %265 = vmatprep.subr.bf16.mxu0 0
    %266 = vmatpush1.bf16.msra.mxu0 %v230
    %267 = vmatprep.subr.bf16.mxu0 0
    %268 = vmatpush1.bf16.msra.mxu0 %v231
    %269 = vmatprep.subr.bf16.mxu0 0
    %270 = vmatpush1.bf16.msra.mxu0 %v232
    %271 = vmatprep.subr.bf16.mxu0 0
    %272 = vmatpush1.bf16.msra.mxu0 %v233
    %273 = vmatprep.subr.bf16.mxu0 0
    %274 = vmatpush1.bf16.msra.mxu0 %v234
    %275 = vmatprep.subr.bf16.mxu0 0
    %276 = vmatpush1.bf16.msra.mxu0 %v235
    %277 = vmatprep.subr.bf16.mxu0 0
    %278 = vmatpush1.bf16.msra.mxu0 %v236
    %279 = vmatprep.subr.bf16.mxu0 0
    %280 = vmatpush1.bf16.msra.mxu0 %v237
    %281 = vmatprep.subr.bf16.mxu0 0
    %282 = vmatpush1.bf16.msra.mxu0 %v238
    %283 = vmatprep.subr.bf16.mxu0 0
    %284 = vmatpush1.bf16.msra.mxu0 %v239
    %285 = vmatprep.subr.bf16.mxu0 0
    %286 = vmatpush1.bf16.msra.mxu0 %v240
    %287 = vmatprep.subr.bf16.mxu0 0
    %288 = vmatpush1.bf16.msra.mxu0 %v241
    %289 = vmatprep.subr.bf16.mxu0 0
    %290 = vmatpush1.bf16.msra.mxu0 %v242
    %291 = vmatprep.mubr.bf16.mxu0 %v128
    %292 = vmatmul.mubr.bf16.gmra.mrb[0].mxu0 %v127
    %v293 = vpop.f32.mrb[0].mxu0
    %v294 = vadd.f32 0.0, %v293
    %v295 = vpop.f32.mrb[0].mxu0
    %v296 = vpop.f32.mrb[0].mxu0
    %v297 = vadd.f32 0.0, %v296
    %v298 = vpop.f32.mrb[0].mxu0
    %299 = vdwg.mxu0
    %v300 = vadd.f32 %v129, %v294
    %v301 = vadd.f32 %v130, %v297
    %302 = vst [vmem:[#allocation2] sm:$0xff] %v300
    %303 = vst [vmem:[#allocation2 + $0x8] sm:$0xff] %v301
    // Predicated region
    $region68: #{llama_forward.20} parent=1 // pred_check
      %p304 = pneg %p85
    $region69: #{llama_forward.20} parent=1 // pred_check_branch
      %306 = sbr.rel (%p304) target = $region71
    $region70: #{llama_forward.20} parent=1 // pred_region
      %v307 = vld [vmem:[#allocation2] sm:$0xff]
      %v308 = vld [vmem:[#allocation2 + $0x8] sm:$0xff]
      %309 = vst [vmem:[%s3] sm:$0xff] %v307
      %310 = vst [vmem:[%s3 + $0x8] sm:$0xff] %v308
    $region71: #{llama_forward.20} parent=1 // pred_fallthru
      _
    // Predicated region
    $region72: #{llama_forward.20} parent=1 // pred_check
      _
    $region73: #{llama_forward.20} parent=1 // pred_check_branch
      %312 = sbr.rel (0) target = $region75
    $region74: #{llama_forward.20} parent=1 // pred_region
      _
    $region75: #{llama_forward.20} parent=1 // pred_fallthru
      _
    // Predicated region
    $region76: #{llama_forward.20} parent=1 // pred_check
      _
    $region77: #{llama_forward.20} parent=1 // pred_check_branch
      %314 = sbr.rel (0) target = $region79
    $region78: #{llama_forward.20} parent=1 // pred_region
      _
    $region79: #{llama_forward.20} parent=1 // pred_fallthru
      _
    %315 = vsyncpa [#allocation6], 1

// kernel: llama_forward.31
$region0: #{llama_forward.31}
  #allocation0 [shape = 'u32[]', space=smem, size = 0x4, offset = 0x4, fixed_abs, tag = 'smem constant byte address 0x4 - core index']
  #allocation1 [shape = 'u32[144,128]{1,0:T(1,128)}', space=vmem, size = 0x12000, scoped, tag = 'internal scratch']
  %s0 = inlined_call_operand.vmem [shape: f32[16,128], index: 0, kind: input, shape index: {}]
  %s1 = inlined_call_operand.hbm [shape: f32[1,128], index: 1, kind: input, shape index: {}]
  %s2 = inlined_call_operand.hbm [shape: bf16[128,32000], index: 2, kind: input, shape index: {}]
  %s3 = inlined_call_operand.hbm [shape: f32[16,32000], index: 3, kind: output, shape index: {}]
  %s4 = sld [smem:[#allocation0]]
  $region53: #{llama_forward.31} parent=0
    _
  %s6 = ssub.s32 1, %s4
  %s7 = scalar_select 0, %s6, %s4
  $region1: #{llama_forward.31} parent=0
    #allocation2 [shape = 'u8[512]{0}', space=vmem, size = 0x400, scoped, tag = 'input window, operand 1, single buffered']
    #allocation3 [shape = 's32[2]{0}', space=sflag, size = 0x8, scoped, tag = 'scoped memory for llama_forward.31']
    #allocation4 [shape = 's32[2]{0}', space=sflag, size = 0x8, scoped, tag = 'scoped memory for llama_forward.31']
    #allocation5 [shape = 'u8[655360]{0}', space=vmem, size = 0xa0000, scoped, tag = 'input window, operand 2']
    #allocation6 [shape = 's32[2]{0}', space=sflag, size = 0x8, scoped, tag = 'scoped memory for llama_forward.31']
    #allocation7 [shape = 'u8[163840]{0}', space=vmem, size = 0x28000, scoped, tag = 'output window, operand 0']
    %8 = vsyncpa [#allocation3], 0
    %9 = vsyncpa [#allocation6], 0
    %s10 = scalar_lea.sflag [#allocation6], 1
    %11 = vsyncpa %s10, 0
    %12 = vsyncpa [#allocation4], 0
    %s13 = scalar_lea.sflag [#allocation4], 1
    %14 = vsyncpa %s13, 0
    loop: start=0, step=1, limit=27
    $region2: #{llama_forward.31} parent=1 // loop_pre_header
      _
    $region3: #{llama_forward.31} parent=1 // loop_header
      %s16 = sphi 0, %s20
      %p17 = scmp.ge.s32.totalorder %s16, 27
      %s23 = sphi 0, %s35
      %s24 = sphi 0, %s31
      %s25 = sphi 0, %s23
      %s26 = sphi 0, %s24
      %s27 = sphi 0, %s25
      %s28 = sphi 0, %s26
      %s38 = sphi 0, %s40
      %s41 = sphi 0, %s38
      %s42 = sphi 0, %s41
      %s58 = sphi 0, %s42
      %s62 = sphi 0, %s62
      %s64 = sphi 0, %s62
      %s65 = sphi 0, %s64
      %s79 = sphi 0, %s65
      %s85 = sphi 0, %s87
      %s88 = sphi 0, %s85
      %s89 = sphi 0, %s88
      %s105 = sphi 0, %s89
      %s113 = sphi 0, %s115
      %s116 = sphi 0, %s113
      %s117 = sphi 0, %s116
      %s133 = sphi 0, %s117
    $region4: #{llama_forward.31} parent=1 // loop_header_branch
      %19 = sbr.rel (%p17) target = $region8
    $region5: #{llama_forward.31} parent=1 // loop_body
      %s21 = ssub.s32 %s16, 1
      %s22 = ssub.s32 %s16, 2
      %s29 = sadd.s32 1, %s24
      %p30 = scmp.ge.s32.totalorder %s29, 25
      %s31 = scalar_select %p30, 0, %s29
      %s32 = sadd.s32 1, %s23
      %s33 = scalar_select %p30, %s32, %s23
      %p34 = scmp.ge.s32.totalorder %s33, 1
      %s35 = scalar_select %p34, 0, %s33
      %s36 = ssub.s32 %s23, %s35
      %p37 = scmp.eq.s32.totalorder %s36, 0
      %s39 = sadd.s32 %s38, 1
      %s40 = scalar_select %p37, %s38, %s39
      %p43 = pneg %p37
      %p44 = scmp.eq.s32.totalorder %s16, 24
      %p45 = por %p43, %p44
      %p46 = scmp.ne.s32.totalorder %s38, %s41
      %p47 = scmp.eq.s32.totalorder %s16, 0
      %p48 = por %p46, %p47
      %p49 = scmp.ne.s32.totalorder %s38, %s41
      %p50 = scmp.eq.s32.totalorder %s21, 24
      %p51 = por %p49, %p50
      %p52 = scmp.ne.s32.totalorder %s41, %s42
      %p53 = scmp.eq.s32.totalorder %s21, 0
      %p54 = por %p52, %p53
      %p55 = scmp.ne.s32.totalorder %s41, %s42
      %p56 = scmp.eq.s32.totalorder %s22, 24
      %p57 = por %p55, %p56
      %p59 = scmp.ne.s32.totalorder %s42, %s58
      %p60 = scmp.eq.s32.totalorder %s22, 0
      %p61 = por %p59, %p60
      %s63 = sadd.s32 %s62, 1
      %p66 = scmp.eq.s32.totalorder %s16, 24
      %p67 = scmp.ne.s32.totalorder %s62, %s64
      %p68 = scmp.eq.s32.totalorder %s16, 0
      %p69 = por %p67, %p68
      %p70 = scmp.ne.s32.totalorder %s62, %s64
      %p71 = scmp.eq.s32.totalorder %s21, 24
      %p72 = por %p70, %p71
      %p73 = scmp.ne.s32.totalorder %s64, %s65
      %p74 = scmp.eq.s32.totalorder %s21, 0
      %p75 = por %p73, %p74
      %p76 = scmp.ne.s32.totalorder %s64, %s65
      %p77 = scmp.eq.s32.totalorder %s22, 24
      %p78 = por %p76, %p77
      %p80 = scmp.ne.s32.totalorder %s65, %s79
      %p81 = scmp.eq.s32.totalorder %s22, 0
      %p82 = por %p80, %p81
      %s83 = ssub.s32 %s24, %s31
      %p84 = scmp.eq.s32.totalorder %s83, 0
      %s86 = sadd.s32 %s85, 1
      %s87 = scalar_select %p84, %s85, %s86
      %p90 = pneg %p84
      %p91 = scmp.eq.s32.totalorder %s16, 24
      %p92 = por %p90, %p91
      %p93 = scmp.ne.s32.totalorder %s85, %s88
      %p94 = scmp.eq.s32.totalorder %s16, 0
      %p95 = por %p93, %p94
      %p96 = scmp.ne.s32.totalorder %s85, %s88
      %p97 = scmp.eq.s32.totalorder %s21, 24
      %p98 = por %p96, %p97
      %p99 = scmp.ne.s32.totalorder %s88, %s89
      %p100 = scmp.eq.s32.totalorder %s21, 0
      %p101 = por %p99, %p100
      %p102 = scmp.ne.s32.totalorder %s88, %s89
      %p103 = scmp.eq.s32.totalorder %s22, 24
      %p104 = por %p102, %p103
      %p106 = scmp.ne.s32.totalorder %s89, %s105
      %p107 = scmp.eq.s32.totalorder %s22, 0
      %p108 = por %p106, %p107
      %s109 = ssub.s32 %s23, %s35
      %s110 = ssub.s32 %s24, %s31
      %s111 = sor.u32 %s109, %s110
      %p112 = scmp.eq.s32.totalorder %s111, 0
      %s114 = sadd.s32 %s113, 1
      %s115 = scalar_select %p112, %s113, %s114
      %p118 = pneg %p112
      %p119 = scmp.eq.s32.totalorder %s16, 24
      %p120 = por %p118, %p119
      %p121 = scmp.ne.s32.totalorder %s113, %s116
      %p122 = scmp.eq.s32.totalorder %s16, 0
      %p123 = por %p121, %p122
      %p124 = scmp.ne.s32.totalorder %s113, %s116
      %p125 = scmp.eq.s32.totalorder %s21, 24
      %p126 = por %p124, %p125
      %p127 = scmp.ne.s32.totalorder %s116, %s117
      %p128 = scmp.eq.s32.totalorder %s21, 0
      %p129 = por %p127, %p128
      %p130 = scmp.ne.s32.totalorder %s116, %s117
      %p131 = scmp.eq.s32.totalorder %s22, 24
      %p132 = por %p130, %p131
      %p134 = scmp.ne.s32.totalorder %s117, %s133
      %p135 = scmp.eq.s32.totalorder %s22, 0
      %p136 = por %p134, %p135
      %p137 = scmp.le.s32.totalorder 1, %s16
      %p138 = scmp.lt.s32.totalorder %s16, 26
      %p139 = pnand %p137, %p138
      %p140 = pneg %p139
      // Predicated region
      $region9: #{llama_forward.31} parent=5 // pred_check
        _
      $region10: #{llama_forward.31} parent=5 // pred_check_branch
        %142 = sbr.rel (%p139) target = $region12
      $region11: #{llama_forward.31} parent=5 // pred_region
        %s143 = ssub.s32 %s16, 1
        // Predicated region
        $region13: #{llama_forward.31} parent=11 // pred_check
          %p144 = pneg %p54
        $region14: #{llama_forward.31} parent=11 // pred_check_branch
          %146 = sbr.rel (%p144) target = $region16
        $region15: #{llama_forward.31} parent=11 // pred_region
          %s147 = smul.u32 2, %s25
          %p148 = scmp.lt.s32.totalorder %s147, 1
          %s149 = scalar_select %p148, %s147, 1
          %s150 = smul.addr %s149, 8
          %s151 = scalar_lea.vmem %s0, %s150
          %s152 = smul.u32 2, %s25
        $region16: #{llama_forward.31} parent=11 // pred_fallthru
          _
        // Predicated region
        $region17: #{llama_forward.31} parent=11 // pred_check
          %p153 = pneg %p75
        $region18: #{llama_forward.31} parent=11 // pred_check_branch
          %155 = sbr.rel (%p153) target = $region20
        $region19: #{llama_forward.31} parent=11 // pred_region
          %s157 = ssub.s32 16, 16
          %158 = vsyncadd [#allocation3], %s157
          %s160 = sshll.u32 [#allocation2], 4
          %s161 = int_to_ptr.vmem [resolvable:$true] %s160
          %163 = dma.hbm_to_vmem [thread:$0]  %s1, 16, %s161, [#allocation3]
        $region20: #{llama_forward.31} parent=11 // pred_fallthru
          _
      $region12: #{llama_forward.31} parent=5 // pred_fallthru
        _
      %p164 = scmp.lt.s32.totalorder %s16, 25
      // Predicated region
      $region21: #{llama_forward.31} parent=5 // pred_check
        %p165 = pneg %p164
      $region22: #{llama_forward.31} parent=5 // pred_check_branch
        %167 = sbr.rel (%p165) target = $region24
      $region23: #{llama_forward.31} parent=5 // pred_region
        // Predicated region
        $region25: #{llama_forward.31} parent=23 // pred_check
          %p168 = pneg %p95
        $region26: #{llama_forward.31} parent=23 // pred_check_branch
          %170 = sbr.rel (%p168) target = $region28
        $region27: #{llama_forward.31} parent=23 // pred_region
          %s171 = sand.u32 %s85, 1
          %s172 = scalar_lea.sflag [#allocation6], %s171
          %s173 = sand.u32 %s85, 1
          %s174 = smul.addr %s173, 640
          %s175 = scalar_lea.vmem [#allocation5], %s174
          %s176 = smul.u32 10, %s24
          %s178 = ssub.s32 10240, 10240
          %179 = vsyncadd %s172, %s178
          %s180 = smul.addr %s176, 64
          %s181 = scalar_lea.hbm %s2, %s180
          %s182 = sshll.u32 %s175, 4
          %s183 = int_to_ptr.vmem [resolvable:$true] %s182
          %188 = dma.hbm_to_vmem [thread:$0]  %s181, 10240, %s183, %s172, 16000, 640, 40
        $region28: #{llama_forward.31} parent=23 // pred_fallthru
          _
      $region24: #{llama_forward.31} parent=5 // pred_fallthru
        _
      %p189 = scmp.le.s32.totalorder 1, %s16
      %p190 = scmp.lt.s32.totalorder %s16, 26
      %p191 = pnand %p189, %p190
      %p192 = pneg %p191
      // Predicated region
      $region29: #{llama_forward.31} parent=5 // pred_check
        _
      $region30: #{llama_forward.31} parent=5 // pred_check_branch
        %194 = sbr.rel (%p191) target = $region32
      $region31: #{llama_forward.31} parent=5 // pred_region
        %s195 = ssub.s32 %s16, 1
        // Predicated region
        $region33: #{llama_forward.31} parent=31 // pred_check
          %p196 = pneg %p75
        $region34: #{llama_forward.31} parent=31 // pred_check_branch
          %198 = sbr.rel (%p196) target = $region36
        $region35: #{llama_forward.31} parent=31 // pred_region
          %199 = dma.done [#allocation3], 16
        $region36: #{llama_forward.31} parent=31 // pred_fallthru
          _
        %s200 = sand.u32 %s88, 1
        %s201 = scalar_lea.sflag [#allocation6], %s200
        %s202 = sand.u32 %s88, 1
        %s203 = smul.addr %s202, 640
        %s204 = scalar_lea.vmem [#allocation5], %s203
        // Predicated region
        $region37: #{llama_forward.31} parent=31 // pred_check
          %p205 = pneg %p101
        $region38: #{llama_forward.31} parent=31 // pred_check_branch
          %207 = sbr.rel (%p205) target = $region40
        $region39: #{llama_forward.31} parent=31 // pred_region
          %208 = dma.done %s201, 10240
        $region40: #{llama_forward.31} parent=31 // pred_fallthru
          _
        %s209 = smul.u32 2, %s25
        %p210 = scmp.lt.s32.totalorder %s209, 1
        %s211 = scalar_select %p210, %s209, 1
        %s212 = smul.addr %s211, 8
        %s213 = scalar_lea.vmem %s0, %s212
        %p214 = pneg %p54
        %p215 = pneg %p51
        %p216 = pneg %p75
        %p217 = pneg %p72
        %s218 = sand.u32 %s88, 1
        %s219 = scalar_lea.sflag [#allocation6], %s218
        %s220 = sand.u32 %s88, 1
        %s221 = smul.addr %s220, 640
        %s222 = scalar_lea.vmem [#allocation5], %s221
        %p223 = pneg %p101
        %p224 = pneg %p98
        %p225 = pneg %p129
        %p226 = pneg %p126
        %s227 = sand.u32 %s116, 1
        %s228 = scalar_lea.sflag [#allocation4], %s227
        %s229 = sand.u32 %s116, 1
        %s230 = smul.addr %s229, 160
        %s231 = scalar_lea.vmem [#allocation7], %s230
        %s232 = smul.u32 2, %s25
        %p233 = scmp.lt.s32.totalorder %s232, 1
        %s234 = scalar_select %p233, %s232, 1
        %s235 = smul.addr %s234, 8
        %s236 = scalar_lea.vmem %s0, %s235
        %s237 = smul.u32 2, %s25
        %s238 = smul.u32 10, %s26
        %s239 = smul.u32 2, %s25
        %s240 = smul.u32 10, %s26
        %v242 = vld [vmem:[%s236] sm:$0xff]
        %v243 = vld [vmem:[%s236 + $0x8] sm:$0xff]
        %v244 = vmul.f32 %v242, %v242
        %v245 = vmul.f32 %v243, %v243
        %246 = vadd.xlane.f32.xlu0 %v244
        %v247 = vpop.xlane.xlu0 %246
        %248 = vadd.xlane.f32.xlu0 %v245
        %v249 = vpop.xlane.xlu0 %248
        %v250 = vrcp.pop 128.0
        %v251 = vmul.f32 %v247, %v250
        %v252 = vmul.f32 %v249, %v250
        %v253 = vadd.f32 %v251, 1e-06
        %v254 = vadd.f32 %v252, 1e-06
        %v255 = vrsqrt.pop %v253
        %v256 = vrsqrt.pop %v254
        %v257 = vmul.f32 %v242, %v255
        %v258 = vmul.f32 %v243, %v256
        %v259 = vld [vmem:[#allocation2] sm:$0x1]
        %v261 = vlaneseq
        %v262 = vshrl.u32 %v261, 7
        %v263 = vsub.s32 0, %v262
        %v264 = vrot.slane %v259, %v263
        %v266 = vmul.f32 %v257, %v264
        %v267 = vmul.f32 %v258, %v264
        %v268 = vpack.c.bf16 %v267, %v266
        %v269 = vld [vmem:[%s204] sm:$0xff]
        %v270 = vld [vmem:[%s204 + $0x8] sm:$0xff]
        %v271 = vld [vmem:[%s204 + $0x10] sm:$0xff]
        %v272 = vld [vmem:[%s204 + $0x18] sm:$0xff]
        %v273 = vld [vmem:[%s204 + $0x20] sm:$0xff]
        %v274 = vld [vmem:[%s204 + $0x28] sm:$0xff]
        %v275 = vld [vmem:[%s204 + $0x30] sm:$0xff]
        %v276 = vld [vmem:[%s204 + $0x38] sm:$0xff]
        %v277 = vld [vmem:[%s204 + $0x40] sm:$0xff]
        %v278 = vld [vmem:[%s204 + $0x48] sm:$0xff]
        %v279 = vld [vmem:[%s204 + $0x50] sm:$0xff]
        %v280 = vld [vmem:[%s204 + $0x58] sm:$0xff]
        %v281 = vld [vmem:[%s204 + $0x60] sm:$0xff]
        %v282 = vld [vmem:[%s204 + $0x68] sm:$0xff]
        %v283 = vld [vmem:[%s204 + $0x70] sm:$0xff]
        %v284 = vld [vmem:[%s204 + $0x78] sm:$0xff]
        %v285 = vld [vmem:[%s204 + $0x80] sm:$0xff]
        %v286 = vld [vmem:[%s204 + $0x88] sm:$0xff]
        %v287 = vld [vmem:[%s204 + $0x90] sm:$0xff]
        %v288 = vld [vmem:[%s204 + $0x98] sm:$0xff]
        %v289 = vld [vmem:[%s204 + $0xa0] sm:$0xff]
        %v290 = vld [vmem:[%s204 + $0xa8] sm:$0xff]
        %v291 = vld [vmem:[%s204 + $0xb0] sm:$0xff]
        %v292 = vld [vmem:[%s204 + $0xb8] sm:$0xff]
        %v293 = vld [vmem:[%s204 + $0xc0] sm:$0xff]
        %v294 = vld [vmem:[%s204 + $0xc8] sm:$0xff]
        %v295 = vld [vmem:[%s204 + $0xd0] sm:$0xff]
        %v296 = vld [vmem:[%s204 + $0xd8] sm:$0xff]
        %v297 = vld [vmem:[%s204 + $0xe0] sm:$0xff]
        %v298 = vld [vmem:[%s204 + $0xe8] sm:$0xff]
        %v299 = vld [vmem:[%s204 + $0xf0] sm:$0xff]
        %v300 = vld [vmem:[%s204 + $0xf8] sm:$0xff]
        %v301 = vld [vmem:[%s204 + $0x100] sm:$0xff]
        %v302 = vld [vmem:[%s204 + $0x108] sm:$0xff]
        %v303 = vld [vmem:[%s204 + $0x110] sm:$0xff]
        %v304 = vld [vmem:[%s204 + $0x118] sm:$0xff]
        %v305 = vld [vmem:[%s204 + $0x120] sm:$0xff]
        %v306 = vld [vmem:[%s204 + $0x128] sm:$0xff]
        %v307 = vld [vmem:[%s204 + $0x130] sm:$0xff]
        %v308 = vld [vmem:[%s204 + $0x138] sm:$0xff]
        %v309 = vld [vmem:[%s204 + $0x140] sm:$0xff]
        %v310 = vld [vmem:[%s204 + $0x148] sm:$0xff]
        %v311 = vld [vmem:[%s204 + $0x150] sm:$0xff]
        %v312 = vld [vmem:[%s204 + $0x158] sm:$0xff]
        %v313 = vld [vmem:[%s204 + $0x160] sm:$0xff]
        %v314 = vld [vmem:[%s204 + $0x168] sm:$0xff]
        %v315 = vld [vmem:[%s204 + $0x170] sm:$0xff]
        %v316 = vld [vmem:[%s204 + $0x178] sm:$0xff]
        %v317 = vld [vmem:[%s204 + $0x180] sm:$0xff]
        %v318 = vld [vmem:[%s204 + $0x188] sm:$0xff]
        %v319 = vld [vmem:[%s204 + $0x190] sm:$0xff]
        %v320 = vld [vmem:[%s204 + $0x198] sm:$0xff]
        %v321 = vld [vmem:[%s204 + $0x1a0] sm:$0xff]
        %v322 = vld [vmem:[%s204 + $0x1a8] sm:$0xff]
        %v323 = vld [vmem:[%s204 + $0x1b0] sm:$0xff]
        %v324 = vld [vmem:[%s204 + $0x1b8] sm:$0xff]
        %v325 = vld [vmem:[%s204 + $0x1c0] sm:$0xff]
        %v326 = vld [vmem:[%s204 + $0x1c8] sm:$0xff]
        %v327 = vld [vmem:[%s204 + $0x1d0] sm:$0xff]
        %v328 = vld [vmem:[%s204 + $0x1d8] sm:$0xff]
        %v329 = vld [vmem:[%s204 + $0x1e0] sm:$0xff]
        %v330 = vld [vmem:[%s204 + $0x1e8] sm:$0xff]
        %v331 = vld [vmem:[%s204 + $0x1f0] sm:$0xff]
        %v332 = vld [vmem:[%s204 + $0x1f8] sm:$0xff]
        %v333 = vld [vmem:[%s204 + $0x200] sm:$0xff]
        %v334 = vld [vmem:[%s204 + $0x208] sm:$0xff]
        %v335 = vld [vmem:[%s204 + $0x210] sm:$0xff]
        %v336 = vld [vmem:[%s204 + $0x218] sm:$0xff]
        %v337 = vld [vmem:[%s204 + $0x220] sm:$0xff]
        %v338 = vld [vmem:[%s204 + $0x228] sm:$0xff]
        %v339 = vld [vmem:[%s204 + $0x230] sm:$0xff]
        %v340 = vld [vmem:[%s204 + $0x238] sm:$0xff]
        %v341 = vld [vmem:[%s204 + $0x240] sm:$0xff]
        %v342 = vld [vmem:[%s204 + $0x248] sm:$0xff]
        %v343 = vld [vmem:[%s204 + $0x250] sm:$0xff]
        %v344 = vld [vmem:[%s204 + $0x258] sm:$0xff]
        %v345 = vld [vmem:[%s204 + $0x260] sm:$0xff]
        %v346 = vld [vmem:[%s204 + $0x268] sm:$0xff]
        %v347 = vld [vmem:[%s204 + $0x270] sm:$0xff]
        %v348 = vld [vmem:[%s204 + $0x278] sm:$0xff]
        %v429 = vunpack.c.l.b16 %v269
        %v430 = vunpack.c.h.b16 %v269
        %v431 = vunpack.c.l.b16 %v270
        %v432 = vunpack.c.h.b16 %v270
        %v433 = vunpack.c.l.b16 %v271
        %v434 = vunpack.c.h.b16 %v271
        %v435 = vunpack.c.l.b16 %v272
        %v436 = vunpack.c.h.b16 %v272
        %v437 = vunpack.c.l.b16 %v273
        %v438 = vunpack.c.h.b16 %v273
        %v439 = vunpack.c.l.b16 %v274
        %v440 = vunpack.c.h.b16 %v274
        %v441 = vunpack.c.l.b16 %v275
        %v442 = vunpack.c.h.b16 %v275
        %v443 = vunpack.c.l.b16 %v276
        %v444 = vunpack.c.h.b16 %v276
        %v445 = vunpack.c.l.b16 %v277
        %v446 = vunpack.c.h.b16 %v277
        %v447 = vunpack.c.l.b16 %v278
        %v448 = vunpack.c.h.b16 %v278
        %v449 = vunpack.c.l.b16 %v279
        %v450 = vunpack.c.h.b16 %v279
        %v451 = vunpack.c.l.b16 %v280
        %v452 = vunpack.c.h.b16 %v280
        %v453 = vunpack.c.l.b16 %v281
        %v454 = vunpack.c.h.b16 %v281
        %v455 = vunpack.c.l.b16 %v282
        %v456 = vunpack.c.h.b16 %v282
        %v457 = vunpack.c.l.b16 %v283
        %v458 = vunpack.c.h.b16 %v283
        %v459 = vunpack.c.l.b16 %v284
        %v460 = vunpack.c.h.b16 %v284
        %v461 = vunpack.c.l.b16 %v285
        %v462 = vunpack.c.h.b16 %v285
        %v463 = vunpack.c.l.b16 %v286
        %v464 = vunpack.c.h.b16 %v286
        %v465 = vunpack.c.l.b16 %v287
        %v466 = vunpack.c.h.b16 %v287
        %v467 = vunpack.c.l.b16 %v288
        %v468 = vunpack.c.h.b16 %v288
        %v469 = vunpack.c.l.b16 %v289
        %v470 = vunpack.c.h.b16 %v289
        %v471 = vunpack.c.l.b16 %v290
        %v472 = vunpack.c.h.b16 %v290
        %v473 = vunpack.c.l.b16 %v291
        %v474 = vunpack.c.h.b16 %v291
        %v475 = vunpack.c.l.b16 %v292
        %v476 = vunpack.c.h.b16 %v292
        %v477 = vunpack.c.l.b16 %v293
        %v478 = vunpack.c.h.b16 %v293
        %v479 = vunpack.c.l.b16 %v294
        %v480 = vunpack.c.h.b16 %v294
        %v481 = vunpack.c.l.b16 %v295
        %v482 = vunpack.c.h.b16 %v295
        %v483 = vunpack.c.l.b16 %v296
        %v484 = vunpack.c.h.b16 %v296
        %v485 = vunpack.c.l.b16 %v297
        %v486 = vunpack.c.h.b16 %v297
        %v487 = vunpack.c.l.b16 %v298
        %v488 = vunpack.c.h.b16 %v298
        %v489 = vunpack.c.l.b16 %v299
        %v490 = vunpack.c.h.b16 %v299
        %v491 = vunpack.c.l.b16 %v300
        %v492 = vunpack.c.h.b16 %v300
        %v493 = vunpack.c.l.b16 %v301
        %v494 = vunpack.c.h.b16 %v301
        %v495 = vunpack.c.l.b16 %v302
        %v496 = vunpack.c.h.b16 %v302
        %v497 = vunpack.c.l.b16 %v303
        %v498 = vunpack.c.h.b16 %v303
        %v499 = vunpack.c.l.b16 %v304
        %v500 = vunpack.c.h.b16 %v304
        %v501 = vunpack.c.l.b16 %v305
        %v502 = vunpack.c.h.b16 %v305
        %v503 = vunpack.c.l.b16 %v306
        %v504 = vunpack.c.h.b16 %v306
        %v505 = vunpack.c.l.b16 %v307
        %v506 = vunpack.c.h.b16 %v307
        %v507 = vunpack.c.l.b16 %v308
        %v508 = vunpack.c.h.b16 %v308
        %v509 = vunpack.c.l.b16 %v309
        %v510 = vunpack.c.h.b16 %v309
        %v511 = vunpack.c.l.b16 %v310
        %v512 = vunpack.c.h.b16 %v310
        %v513 = vunpack.c.l.b16 %v311
        %v514 = vunpack.c.h.b16 %v311
        %v515 = vunpack.c.l.b16 %v312
        %v516 = vunpack.c.h.b16 %v312
        %v517 = vunpack.c.l.b16 %v313
        %v518 = vunpack.c.h.b16 %v313
        %v519 = vunpack.c.l.b16 %v314
        %v520 = vunpack.c.h.b16 %v314
        %v521 = vunpack.c.l.b16 %v315
        %v522 = vunpack.c.h.b16 %v315
        %v523 = vunpack.c.l.b16 %v316
        %v524 = vunpack.c.h.b16 %v316
        %v525 = vunpack.c.l.b16 %v317
        %v526 = vunpack.c.h.b16 %v317
        %v527 = vunpack.c.l.b16 %v318
        %v528 = vunpack.c.h.b16 %v318
        %v529 = vunpack.c.l.b16 %v319
        %v530 = vunpack.c.h.b16 %v319
        %v531 = vunpack.c.l.b16 %v320
        %v532 = vunpack.c.h.b16 %v320
        %v533 = vunpack.c.l.b16 %v321
        %v534 = vunpack.c.h.b16 %v321
        %v535 = vunpack.c.l.b16 %v322
        %v536 = vunpack.c.h.b16 %v322
        %v537 = vunpack.c.l.b16 %v323
        %v538 = vunpack.c.h.b16 %v323
        %v539 = vunpack.c.l.b16 %v324
        %v540 = vunpack.c.h.b16 %v324
        %v541 = vunpack.c.l.b16 %v325
        %v542 = vunpack.c.h.b16 %v325
        %v543 = vunpack.c.l.b16 %v326
        %v544 = vunpack.c.h.b16 %v326
        %v545 = vunpack.c.l.b16 %v327
        %v546 = vunpack.c.h.b16 %v327
        %v547 = vunpack.c.l.b16 %v328
        %v548 = vunpack.c.h.b16 %v328
        %v549 = vunpack.c.l.b16 %v329
        %v550 = vunpack.c.h.b16 %v329
        %v551 = vunpack.c.l.b16 %v330
        %v552 = vunpack.c.h.b16 %v330
        %v553 = vunpack.c.l.b16 %v331
        %v554 = vunpack.c.h.b16 %v331
        %v555 = vunpack.c.l.b16 %v332
        %v556 = vunpack.c.h.b16 %v332
        %v557 = vunpack.c.l.b16 %v333
        %v558 = vunpack.c.h.b16 %v333
        %v559 = vunpack.c.l.b16 %v334
        %v560 = vunpack.c.h.b16 %v334
        %v561 = vunpack.c.l.b16 %v335
        %v562 = vunpack.c.h.b16 %v335
        %v563 = vunpack.c.l.b16 %v336
        %v564 = vunpack.c.h.b16 %v336
        %v565 = vunpack.c.l.b16 %v337
        %v566 = vunpack.c.h.b16 %v337
        %v567 = vunpack.c.l.b16 %v338
        %v568 = vunpack.c.h.b16 %v338
        %v569 = vunpack.c.l.b16 %v339
        %v570 = vunpack.c.h.b16 %v339
        %v571 = vunpack.c.l.b16 %v340
        %v572 = vunpack.c.h.b16 %v340
        %v573 = vunpack.c.l.b16 %v341
        %v574 = vunpack.c.h.b16 %v341
        %v575 = vunpack.c.l.b16 %v342
        %v576 = vunpack.c.h.b16 %v342
        %v577 = vunpack.c.l.b16 %v343
        %v578 = vunpack.c.h.b16 %v343
        %v579 = vunpack.c.l.b16 %v344
        %v580 = vunpack.c.h.b16 %v344
        %v581 = vunpack.c.l.b16 %v345
        %v582 = vunpack.c.h.b16 %v345
        %v583 = vunpack.c.l.b16 %v346
        %v584 = vunpack.c.h.b16 %v346
        %v585 = vunpack.c.l.b16 %v347
        %v586 = vunpack.c.h.b16 %v347
        %v587 = vunpack.c.l.b16 %v348
        %v588 = vunpack.c.h.b16 %v348
        %v589 = vpack.c.b16 %v439, %v429
        %v590 = vpack.c.b16 %v440, %v430
        %v591 = vpack.c.b16 %v441, %v431
        %v592 = vpack.c.b16 %v442, %v432
        %v593 = vpack.c.b16 %v443, %v433
        %v594 = vpack.c.b16 %v444, %v434
        %v595 = vpack.c.b16 %v445, %v435
        %v596 = vpack.c.b16 %v446, %v436
        %v597 = vpack.c.b16 %v447, %v437
        %v598 = vpack.c.b16 %v448, %v438
        %v599 = vpack.c.b16 %v459, %v449
        %v600 = vpack.c.b16 %v460, %v450
        %v601 = vpack.c.b16 %v461, %v451
        %v602 = vpack.c.b16 %v462, %v452
        %v603 = vpack.c.b16 %v463, %v453
        %v604 = vpack.c.b16 %v464, %v454
        %v605 = vpack.c.b16 %v465, %v455
        %v606 = vpack.c.b16 %v466, %v456
        %v607 = vpack.c.b16 %v467, %v457
        %v608 = vpack.c.b16 %v468, %v458
        %v609 = vpack.c.b16 %v479, %v469
        %v610 = vpack.c.b16 %v480, %v470
        %v611 = vpack.c.b16 %v481, %v471
        %v612 = vpack.c.b16 %v482, %v472
        %v613 = vpack.c.b16 %v483, %v473
        %v614 = vpack.c.b16 %v484, %v474
        %v615 = vpack.c.b16 %v485, %v475
        %v616 = vpack.c.b16 %v486, %v476
        %v617 = vpack.c.b16 %v487, %v477
        %v618 = vpack.c.b16 %v488, %v478
        %v619 = vpack.c.b16 %v499, %v489
        %v620 = vpack.c.b16 %v500, %v490
        %v621 = vpack.c.b16 %v501, %v491
        %v622 = vpack.c.b16 %v502, %v492
        %v623 = vpack.c.b16 %v503, %v493
        %v624 = vpack.c.b16 %v504, %v494
        %v625 = vpack.c.b16 %v505, %v495
        %v626 = vpack.c.b16 %v506, %v496
        %v627 = vpack.c.b16 %v507, %v497
        %v628 = vpack.c.b16 %v508, %v498
        %v629 = vpack.c.b16 %v519, %v509
        %v630 = vpack.c.b16 %v520, %v510
        %v631 = vpack.c.b16 %v521, %v511
        %v632 = vpack.c.b16 %v522, %v512
        %v633 = vpack.c.b16 %v523, %v513
        %v634 = vpack.c.b16 %v524, %v514
        %v635 = vpack.c.b16 %v525, %v515
        %v636 = vpack.c.b16 %v526, %v516
        %v637 = vpack.c.b16 %v527, %v517
        %v638 = vpack.c.b16 %v528, %v518
        %v639 = vpack.c.b16 %v539, %v529
        %v640 = vpack.c.b16 %v540, %v530
        %v641 = vpack.c.b16 %v541, %v531
        %v642 = vpack.c.b16 %v542, %v532
        %v643 = vpack.c.b16 %v543, %v533
        %v644 = vpack.c.b16 %v544, %v534
        %v645 = vpack.c.b16 %v545, %v535
        %v646 = vpack.c.b16 %v546, %v536
        %v647 = vpack.c.b16 %v547, %v537
        %v648 = vpack.c.b16 %v548, %v538
        %v649 = vpack.c.b16 %v559, %v549
        %v650 = vpack.c.b16 %v560, %v550
        %v651 = vpack.c.b16 %v561, %v551
        %v652 = vpack.c.b16 %v562, %v552
        %v653 = vpack.c.b16 %v563, %v553
        %v654 = vpack.c.b16 %v564, %v554
        %v655 = vpack.c.b16 %v565, %v555
        %v656 = vpack.c.b16 %v566, %v556
        %v657 = vpack.c.b16 %v567, %v557
        %v658 = vpack.c.b16 %v568, %v558
        %v659 = vpack.c.b16 %v579, %v569
        %v660 = vpack.c.b16 %v580, %v570
        %v661 = vpack.c.b16 %v581, %v571
        %v662 = vpack.c.b16 %v582, %v572
        %v663 = vpack.c.b16 %v583, %v573
        %v664 = vpack.c.b16 %v584, %v574
        %v665 = vpack.c.b16 %v585, %v575
        %v666 = vpack.c.b16 %v586, %v576
        %v667 = vpack.c.b16 %v587, %v577
        %v668 = vpack.c.b16 %v588, %v578
        %749 = vmatprep.subr.bf16.mxu0 %v590
        %750 = vmatpush1.bf16.msra.mxu0 %v589
        %751 = vmatprep.subr.bf16.mxu0 %v600
        %752 = vmatpush1.bf16.msra.mxu0 %v599
        %753 = vmatprep.subr.bf16.mxu0 %v610
        %754 = vmatpush1.bf16.msra.mxu0 %v609
        %755 = vmatprep.subr.bf16.mxu0 %v620
        %756 = vmatpush1.bf16.msra.mxu0 %v619
        %757 = vmatprep.subr.bf16.mxu0 %v630
        %758 = vmatpush1.bf16.msra.mxu0 %v629
        %759 = vmatprep.subr.bf16.mxu0 %v640
        %760 = vmatpush1.bf16.msra.mxu0 %v639
        %761 = vmatprep.subr.bf16.mxu0 %v650
        %762 = vmatpush1.bf16.msra.mxu0 %v649
        %763 = vmatprep.subr.bf16.mxu0 %v660
        %764 = vmatpush1.bf16.msra.mxu0 %v659
        %765 = vmatprep.subr.bf16.mxu0 0
        %766 = vmatpush1.bf16.msra.mxu0 0
        %767 = vmatprep.subr.bf16.mxu0 0
        %768 = vmatpush1.bf16.msra.mxu0 0
        %769 = vmatprep.subr.bf16.mxu0 0
        %770 = vmatpush1.bf16.msra.mxu0 0
        %771 = vmatprep.subr.bf16.mxu0 0
        %772 = vmatpush1.bf16.msra.mxu0 0
        %773 = vmatprep.subr.bf16.mxu0 0
        %774 = vmatpush1.bf16.msra.mxu0 0
        %775 = vmatprep.subr.bf16.mxu0 0
        %776 = vmatpush1.bf16.msra.mxu0 0
        %777 = vmatprep.subr.bf16.mxu0 0
        %778 = vmatpush1.bf16.msra.mxu0 0
        %779 = vmatprep.subr.bf16.mxu0 0
        %780 = vmatpush1.bf16.msra.mxu0 0
        %781 = vmatprep.mubr.bf16.mxu0 0
        %782 = vmatmul.mubr.bf16.gmra.mrb[0].mxu0 %v268
        %v783 = vpop.f32.mrb[0].mxu0
        %v784 = vadd.f32 0.0, %v783
        %v785 = vpop.f32.mrb[0].mxu0
        %v786 = vadd.f32 0.0, %v785
        %v787 = vpop.f32.mrb[0].mxu0
        %v788 = vadd.f32 0.0, %v787
        %v789 = vpop.f32.mrb[0].mxu0
        %v790 = vadd.f32 0.0, %v789
        %791 = vdwg.mxu0
        %792 = vmatprep.subr.bf16.mxu0 %v592
        %793 = vmatpush1.bf16.msra.mxu0 %v591
        %794 = vmatprep.subr.bf16.mxu0 %v602
        %795 = vmatpush1.bf16.msra.mxu0 %v601
        %796 = vmatprep.subr.bf16.mxu0 %v612
        %797 = vmatpush1.bf16.msra.mxu0 %v611
        %798 = vmatprep.subr.bf16.mxu0 %v622
        %799 = vmatpush1.bf16.msra.mxu0 %v621
        %800 = vmatprep.subr.bf16.mxu0 %v632
        %801 = vmatpush1.bf16.msra.mxu0 %v631
        %802 = vmatprep.subr.bf16.mxu0 %v642
        %803 = vmatpush1.bf16.msra.mxu0 %v641
        %804 = vmatprep.subr.bf16.mxu0 %v652
        %805 = vmatpush1.bf16.msra.mxu0 %v651
        %806 = vmatprep.subr.bf16.mxu0 %v662
        %807 = vmatpush1.bf16.msra.mxu0 %v661
        %808 = vmatprep.subr.bf16.mxu0 0
        %809 = vmatpush1.bf16.msra.mxu0 0
        %810 = vmatprep.subr.bf16.mxu0 0
        %811 = vmatpush1.bf16.msra.mxu0 0
        %812 = vmatprep.subr.bf16.mxu0 0
        %813 = vmatpush1.bf16.msra.mxu0 0
        %814 = vmatprep.subr.bf16.mxu0 0
        %815 = vmatpush1.bf16.msra.mxu0 0
        %816 = vmatprep.subr.bf16.mxu0 0
        %817 = vmatpush1.bf16.msra.mxu0 0
        %818 = vmatprep.subr.bf16.mxu0 0
        %819 = vmatpush1.bf16.msra.mxu0 0
        %820 = vmatprep.subr.bf16.mxu0 0
        %821 = vmatpush1.bf16.msra.mxu0 0
        %822 = vmatprep.subr.bf16.mxu0 0
        %823 = vmatpush1.bf16.msra.mxu0 0
        %824 = vmatprep.mubr.bf16.mxu0 0
        %825 = vmatmul.mubr.bf16.gmra.mrb[0].mxu0 %v268
        %v826 = vpop.f32.mrb[0].mxu0
        %v827 = vadd.f32 0.0, %v826
        %v828 = vpop.f32.mrb[0].mxu0
        %v829 = vadd.f32 0.0, %v828
        %v830 = vpop.f32.mrb[0].mxu0
        %v831 = vadd.f32 0.0, %v830
        %v832 = vpop.f32.mrb[0].mxu0
        %v833 = vadd.f32 0.0, %v832
        %834 = vdwg.mxu0
        %835 = vmatprep.subr.bf16.mxu0 %v594
        %836 = vmatpush1.bf16.msra.mxu0 %v593
        %837 = vmatprep.subr.bf16.mxu0 %v604
        %838 = vmatpush1.bf16.msra.mxu0 %v603
        %839 = vmatprep.subr.bf16.mxu0 %v614
        %840 = vmatpush1.bf16.msra.mxu0 %v613
        %841 = vmatprep.subr.bf16.mxu0 %v624
        %842 = vmatpush1.bf16.msra.mxu0 %v623
        %843 = vmatprep.subr.bf16.mxu0 %v634
        %844 = vmatpush1.bf16.msra.mxu0 %v633
        %845 = vmatprep.subr.bf16.mxu0 %v644
        %846 = vmatpush1.bf16.msra.mxu0 %v643
        %847 = vmatprep.subr.bf16.mxu0 %v654
        %848 = vmatpush1.bf16.msra.mxu0 %v653
        %849 = vmatprep.subr.bf16.mxu0 %v664
        %850 = vmatpush1.bf16.msra.mxu0 %v663
        %851 = vmatprep.subr.bf16.mxu0 0
        %852 = vmatpush1.bf16.msra.mxu0 0
        %853 = vmatprep.subr.bf16.mxu0 0
        %854 = vmatpush1.bf16.msra.mxu0 0
        %855 = vmatprep.subr.bf16.mxu0 0
        %856 = vmatpush1.bf16.msra.mxu0 0
        %857 = vmatprep.subr.bf16.mxu0 0
        %858 = vmatpush1.bf16.msra.mxu0 0
        %859 = vmatprep.subr.bf16.mxu0 0
        %860 = vmatpush1.bf16.msra.mxu0 0
        %861 = vmatprep.subr.bf16.mxu0 0
        %862 = vmatpush1.bf16.msra.mxu0 0
        %863 = vmatprep.subr.bf16.mxu0 0
        %864 = vmatpush1.bf16.msra.mxu0 0
        %865 = vmatprep.subr.bf16.mxu0 0
        %866 = vmatpush1.bf16.msra.mxu0 0
        %867 = vmatprep.mubr.bf16.mxu0 0
        %868 = vmatmul.mubr.bf16.gmra.mrb[0].mxu0 %v268
        %v869 = vpop.f32.mrb[0].mxu0
        %v870 = vadd.f32 0.0, %v869
        %v871 = vpop.f32.mrb[0].mxu0
        %v872 = vadd.f32 0.0, %v871
        %v873 = vpop.f32.mrb[0].mxu0
        %v874 = vadd.f32 0.0, %v873
        %v875 = vpop.f32.mrb[0].mxu0
        %v876 = vadd.f32 0.0, %v875
        %877 = vdwg.mxu0
        %878 = vmatprep.subr.bf16.mxu0 %v596
        %879 = vmatpush1.bf16.msra.mxu0 %v595
        %880 = vmatprep.subr.bf16.mxu0 %v606
        %881 = vmatpush1.bf16.msra.mxu0 %v605
        %882 = vmatprep.subr.bf16.mxu0 %v616
        %883 = vmatpush1.bf16.msra.mxu0 %v615
        %884 = vmatprep.subr.bf16.mxu0 %v626
        %885 = vmatpush1.bf16.msra.mxu0 %v625
        %886 = vmatprep.subr.bf16.mxu0 %v636
        %887 = vmatpush1.bf16.msra.mxu0 %v635
        %888 = vmatprep.subr.bf16.mxu0 %v646
        %889 = vmatpush1.bf16.msra.mxu0 %v645
        %890 = vmatprep.subr.bf16.mxu0 %v656
        %891 = vmatpush1.bf16.msra.mxu0 %v655
        %892 = vmatprep.subr.bf16.mxu0 %v666
        %893 = vmatpush1.bf16.msra.mxu0 %v665
        %894 = vmatprep.subr.bf16.mxu0 0
        %895 = vmatpush1.bf16.msra.mxu0 0
        %896 = vmatprep.subr.bf16.mxu0 0
        %897 = vmatpush1.bf16.msra.mxu0 0
        %898 = vmatprep.subr.bf16.mxu0 0
        %899 = vmatpush1.bf16.msra.mxu0 0
        %900 = vmatprep.subr.bf16.mxu0 0
        %901 = vmatpush1.bf16.msra.mxu0 0
        %902 = vmatprep.subr.bf16.mxu0 0
        %903 = vmatpush1.bf16.msra.mxu0 0
        %904 = vmatprep.subr.bf16.mxu0 0
        %905 = vmatpush1.bf16.msra.mxu0 0
        %906 = vmatprep.subr.bf16.mxu0 0
        %907 = vmatpush1.bf16.msra.mxu0 0
        %908 = vmatprep.subr.bf16.mxu0 0
        %909 = vmatpush1.bf16.msra.mxu0 0
        %910 = vmatprep.mubr.bf16.mxu0 0
        %911 = vmatmul.mubr.bf16.gmra.mrb[0].mxu0 %v268
        %v912 = vpop.f32.mrb[0].mxu0
        %v913 = vadd.f32 0.0, %v912
        %v914 = vpop.f32.mrb[0].mxu0
        %v915 = vadd.f32 0.0, %v914
        %v916 = vpop.f32.mrb[0].mxu0
        %v917 = vadd.f32 0.0, %v916
        %v918 = vpop.f32.mrb[0].mxu0
        %v919 = vadd.f32 0.0, %v918
        %920 = vdwg.mxu0
        %921 = vmatprep.subr.bf16.mxu0 %v598
        %922 = vmatpush1.bf16.msra.mxu0 %v597
        %923 = vmatprep.subr.bf16.mxu0 %v608
        %924 = vmatpush1.bf16.msra.mxu0 %v607
        %925 = vmatprep.subr.bf16.mxu0 %v618
        %926 = vmatpush1.bf16.msra.mxu0 %v617
        %927 = vmatprep.subr.bf16.mxu0 %v628
        %928 = vmatpush1.bf16.msra.mxu0 %v627
        %929 = vmatprep.subr.bf16.mxu0 %v638
        %930 = vmatpush1.bf16.msra.mxu0 %v637
        %931 = vmatprep.subr.bf16.mxu0 %v648
        %932 = vmatpush1.bf16.msra.mxu0 %v647
        %933 = vmatprep.subr.bf16.mxu0 %v658
        %934 = vmatpush1.bf16.msra.mxu0 %v657
        %935 = vmatprep.subr.bf16.mxu0 %v668
        %936 = vmatpush1.bf16.msra.mxu0 %v667
        %937 = vmatprep.subr.bf16.mxu0 0
        %938 = vmatpush1.bf16.msra.mxu0 0
        %939 = vmatprep.subr.bf16.mxu0 0
        %940 = vmatpush1.bf16.msra.mxu0 0
        %941 = vmatprep.subr.bf16.mxu0 0
        %942 = vmatpush1.bf16.msra.mxu0 0
        %943 = vmatprep.subr.bf16.mxu0 0
        %944 = vmatpush1.bf16.msra.mxu0 0
        %945 = vmatprep.subr.bf16.mxu0 0
        %946 = vmatpush1.bf16.msra.mxu0 0
        %947 = vmatprep.subr.bf16.mxu0 0
        %948 = vmatpush1.bf16.msra.mxu0 0
        %949 = vmatprep.subr.bf16.mxu0 0
        %950 = vmatpush1.bf16.msra.mxu0 0
        %951 = vmatprep.subr.bf16.mxu0 0
        %952 = vmatpush1.bf16.msra.mxu0 0
        %953 = vmatprep.mubr.bf16.mxu0 0
        %954 = vmatmul.mubr.bf16.gmra.mrb[0].mxu0 %v268
        %v955 = vpop.f32.mrb[0].mxu0
        %v956 = vadd.f32 0.0, %v955
        %v957 = vpop.f32.mrb[0].mxu0
        %v958 = vadd.f32 0.0, %v957
        %v959 = vpop.f32.mrb[0].mxu0
        %v960 = vadd.f32 0.0, %v959
        %v961 = vpop.f32.mrb[0].mxu0
        %v962 = vadd.f32 0.0, %v961
        %963 = vdwg.mxu0
        %964 = vst [vmem:[%s231] sm:$0xff] %v784
        %965 = vst [vmem:[%s231 + $0x8] sm:$0xff] %v786
        %966 = vst [vmem:[%s231 + $0x10] sm:$0xff] %v827
        %967 = vst [vmem:[%s231 + $0x18] sm:$0xff] %v829
        %968 = vst [vmem:[%s231 + $0x20] sm:$0xff] %v870
        %969 = vst [vmem:[%s231 + $0x28] sm:$0xff] %v872
        %970 = vst [vmem:[%s231 + $0x30] sm:$0xff] %v913
        %971 = vst [vmem:[%s231 + $0x38] sm:$0xff] %v915
        %972 = vst [vmem:[%s231 + $0x40] sm:$0xff] %v956
        %973 = vst [vmem:[%s231 + $0x48] sm:$0xff] %v958
        %974 = vst [vmem:[%s231 + $0x50] sm:$0xff] %v788
        %975 = vst [vmem:[%s231 + $0x58] sm:$0xff] %v790
        %976 = vst [vmem:[%s231 + $0x60] sm:$0xff] %v831
        %977 = vst [vmem:[%s231 + $0x68] sm:$0xff] %v833
        %978 = vst [vmem:[%s231 + $0x70] sm:$0xff] %v874
        %979 = vst [vmem:[%s231 + $0x78] sm:$0xff] %v876
        %980 = vst [vmem:[%s231 + $0x80] sm:$0xff] %v917
        %981 = vst [vmem:[%s231 + $0x88] sm:$0xff] %v919
        %982 = vst [vmem:[%s231 + $0x90] sm:$0xff] %v960
        %983 = vst [vmem:[%s231 + $0x98] sm:$0xff] %v962
        %s984 = sand.u32 %s116, 1
        %s985 = scalar_lea.sflag [#allocation4], %s984
        %s986 = sand.u32 %s116, 1
        %s987 = smul.addr %s986, 160
        %s988 = scalar_lea.vmem [#allocation7], %s987
        // Predicated region
        $region41: #{llama_forward.31} parent=31 // pred_check
          %p989 = pneg %p126
        $region42: #{llama_forward.31} parent=31 // pred_check_branch
          %991 = sbr.rel (%p989) target = $region44
        $region43: #{llama_forward.31} parent=31 // pred_region
          %s992 = smul.u32 2, %s25
          %s993 = smul.u32 10, %s26
          %s995 = ssub.s32 2560, 2560
          %996 = vsyncadd %s985, %s995
          %s997 = smul.addr %s992, 250
          %s998 = sadd.s32 %s993, %s997
          %s999 = smul.addr %s998, 128
          %s1000 = scalar_lea.hbm %s3, %s999
          %s1001 = sshll.u32 %s988, 4
          %s1002 = int_to_ptr.vmem [resolvable:$true] %s1001
          %1007 = dma.vmem_to_hbm [thread:$0]  %s1002, 2560, %s1000, %s985, 1280, 32000, 80
        $region44: #{llama_forward.31} parent=31 // pred_fallthru
          _
      $region32: #{llama_forward.31} parent=5 // pred_fallthru
        _
      %p1008 = scmp.le.s32.totalorder 2, %s16
      // Predicated region
      $region45: #{llama_forward.31} parent=5 // pred_check
        %p1009 = pneg %p1008
      $region46: #{llama_forward.31} parent=5 // pred_check_branch
        %1011 = sbr.rel (%p1009) target = $region48
      $region47: #{llama_forward.31} parent=5 // pred_region
        %s1012 = ssub.s32 %s16, 2
        // Predicated region
        $region49: #{llama_forward.31} parent=47 // pred_check
          %p1013 = pneg %p132
        $region50: #{llama_forward.31} parent=47 // pred_check_branch
          %1015 = sbr.rel (%p1013) target = $region52
        $region51: #{llama_forward.31} parent=47 // pred_region
          %s1016 = sand.u32 %s117, 1
          %s1017 = scalar_lea.sflag [#allocation4], %s1016
          %s1018 = sand.u32 %s117, 1
          %s1019 = smul.addr %s1018, 160
          %s1020 = scalar_lea.vmem [#allocation7], %s1019
          %1021 = dma.done %s1017, 2560
        $region52: #{llama_forward.31} parent=47 // pred_fallthru
          _
      $region48: #{llama_forward.31} parent=5 // pred_fallthru
        _
    $region6: #{llama_forward.31} parent=1 // loop_footer
      %s20 = sadd.s32 1, %s16
    $region7: #{llama_forward.31} parent=1 // loop_footer_branch
      %15 = sbr.rel target = $region3
    $region8: #{llama_forward.31} parent=1 // loop_exit
      _
    %1022 = vsyncpa [#allocation3], 1
    %s1023 = scalar_lea.sflag [#allocation3], 1
    %1024 = vsyncpa %s1023, 1
    %1025 = vsyncpa [#allocation6], 1
    %s1026 = scalar_lea.sflag [#allocation6], 1
    %1027 = vsyncpa %s1026, 1
    %1028 = vsyncpa [#allocation4], 1
    %s1029 = scalar_lea.sflag [#allocation4], 1
    %1030 = vsyncpa %s1029, 1

</llo_original>
